<compile_context>
chip_gen: v7x
topology: tpu7x:2x2x1
jax: 0.10.0
libtpu: 0.0.40
codegen_flags: <defaults>
</compile_context>

<pallas_src>
import functools

import numpy as np

import jax
import jax.numpy as jnp
from jax.experimental import pallas as pl
from jax.experimental.pallas import tpu as pltpu


# --------------------------------------------------------------------------------------
# Kernel 1: depthwise conv, channels-on-lanes, one image per grid step.
# Output channels are stored in "grouped" order q = j*Cin + c  (j = multiplier index,
# c = input channel); the wrapper permutes gamma/beta/1x1-weights to match, so no data
# permutation of the big tensors is ever needed.  Also emits per-image per-channel
# sum / sum^2 (f32) for the BatchNorm batch statistics.
# --------------------------------------------------------------------------------------
def _dw_kernel(x_ref, w_ref, b_ref, y_ref, ssum_ref, ssq_ref, *,
               cin, mult, kh_size, kw_size, ho, wo, stride, hh, ww):
    # x_ref:  (1, s*Hh, s*Ww, Cin) VMEM  -- one padded, parity-rearranged image
    # w_ref:  (mult*kH*kW, Cin)    VMEM  -- depthwise taps, grouped channel order
    # b_ref:  (mult, Cin)          VMEM  -- depthwise bias, grouped channel order
    # y_ref:  (1, Ho, Wo, Cout)    VMEM  -- depthwise output (channels on lanes)
    # ssum/ssq_ref: (1, mult, Cin) VMEM  -- per-image BN partial stats (f32)
    s = stride
    k2 = kh_size * kw_size
    for j in range(mult):                      # channel multiplier (tiny, static)
        acc = jnp.zeros((ho, wo, cin), jnp.float32)
        for kh in range(kh_size):              # kH*kW taps (static, e.g. 9)
            r0 = (kh % s) * hh + kh // s
            for kw in range(kw_size):
                c0 = (kw % s) * ww + kw // s
                # Unit-stride slice (leading + sublane dims), full lane width: one
                # lane-dense VPU FMA over all input channels of this group.
                patch = x_ref[0, r0:r0 + ho, c0:c0 + wo, :].astype(jnp.float32)
                acc = acc + patch * w_ref[j * k2 + kh * kw_size + kw]
        yj = acc + b_ref[j]                                           # + depthwise bias
        y_ref[0, :, :, j * cin:(j + 1) * cin] = yj.astype(y_ref.dtype)
        ssum_ref[0, j] = jnp.sum(yj, axis=(0, 1))                     # BN stats in f32
        ssq_ref[0, j] = jnp.sum(yj * yj, axis=(0, 1))


def _prep_input(x, kh_size, kw_size, stride, padding):
    """NCHW -> padded NHWC, parity-rearranged so strided taps become unit-stride slices.

    prepared[n, p_h*Hh + hh, p_w*Ww + ww, c] = x_pad[n, hh*stride + p_h, ww*stride + p_w, c]
    One fused XLA pass over the (small) input; for stride=1 it is just pad + NHWC.
    """
    # TODO(synk): fold this prep into kernel 1 via a zero-initialised VMEM scratch DMA.
    n, cin, h, w = x.shape
    s = stride
    hp, wp = h + 2 * padding, w + 2 * padding
    ho = (hp - kh_size) // s + 1
    wo = (wp - kw_size) // s + 1
    hh = -(-hp // s)          # ceil(hp / s)
    ww = -(-wp // s)
    x_nhwc = jnp.transpose(x, (0, 2, 3, 1))
    x_pad = jnp.pad(x_nhwc, ((0, 0),
                             (padding, hh * s - h - padding),
                             (padding, ww * s - w - padding),
                             (0, 0)))
    xp = x_pad.reshape(n, hh, s, ww, s, cin)
    xp = jnp.transpose(xp, (0, 2, 1, 4, 3, 5)).reshape(n, s * hh, s * ww, cin)
    return xp, ho, wo, hh, ww


def depthwise_conv2d(x, w_dw, b_dw, *, stride=1, padding=0, out_dtype=jnp.float32):
    """Returns (y, sum, sumsq): y (N, Ho, Wo, Cout) grouped channel order; stats (N, Cout) f32."""
    n, cin, _, _ = x.shape
    cout, _, kh_size, kw_size = w_dw.shape
    assert cout % cin == 0, "groups=in_channels requires out_channels % in_channels == 0"
    mult = cout // cin

    xp, ho, wo, hh, ww = _prep_input(x, kh_size, kw_size, stride, padding)

    # Depthwise weights / bias in grouped channel order q = j*Cin + c.
    w_g = (w_dw[:, 0].reshape(cin, mult, kh_size, kw_size)
           .transpose(1, 2, 3, 0).reshape(mult * kh_size * kw_size, cin)
           .astype(jnp.float32))
    b_g = b_dw.reshape(cin, mult).T.astype(jnp.float32)          # (mult, Cin)

    kernel = functools.partial(_dw_kernel, cin=cin, mult=mult, kh_size=kh_size,
                               kw_size=kw_size, ho=ho, wo=wo, stride=stride,
                               hh=hh, ww=ww)
    y, ssum, ssq = pl.pallas_call(
        kernel,
        out_shape=(jax.ShapeDtypeStruct((n, ho, wo, cout), out_dtype),
                   jax.ShapeDtypeStruct((n, mult, cin), jnp.float32),
                   jax.ShapeDtypeStruct((n, mult, cin), jnp.float32)),
        grid=(n,),
        in_specs=[
            pl.BlockSpec((1, stride * hh, stride * ww, cin), lambda i: (i, 0, 0, 0)),
            pl.BlockSpec((mult * kh_size * kw_size, cin), lambda i: (0, 0)),
            pl.BlockSpec((mult, cin), lambda i: (0, 0)),
        ],
        out_specs=(
            pl.BlockSpec((1, ho, wo, cout), lambda i: (i, 0, 0, 0)),
            pl.BlockSpec((1, mult, cin), lambda i: (i, 0, 0)),
            pl.BlockSpec((1, mult, cin), lambda i: (i, 0, 0)),
        ),
        compiler_params=pltpu.CompilerParams(
            dimension_semantics=("parallel",),
            vmem_limit_bytes=48 * 1024 * 1024),
        # TODO(synk): add a second parallel grid axis over channel blocks (v7x megacore
        # balance / VMEM at the widest PiT stages).
    )(xp, w_g, b_g)
    return y, ssum.reshape(n, cout), ssq.reshape(n, cout)


# --------------------------------------------------------------------------------------
# Kernel 2: (BN folded into weights) + 1x1 conv = one lane-dense MXU matmul + bias.
# Emits (N, Co, Ho*Wo), which reshapes for free to NCHW.
# --------------------------------------------------------------------------------------
def _pw_kernel(y_ref, w_ref, b_ref, o_ref):
    # y_ref: (1, TM, C)  tokens on sublanes, channels on lanes (bf16 or f32)
    # w_ref: (Co, C)     BN-folded 1x1 weights, same dtype as y
    # b_ref: (Co, 1)     BN-folded bias, f32
    # o_ref: (1, Co, TM) lane-dense output tile
    y = y_ref[0]
    out = jnp.dot(w_ref[...], y.T, preferred_element_type=jnp.float32)   # (Co, TM)
    o_ref[0] = (out + b_ref[...]).astype(o_ref.dtype)


def pointwise_folded(y, w_folded, bias_folded):
    # y: (N, M, C); w_folded: (Co, C) in y.dtype; bias_folded: (Co,) f32.
    n, m, c = y.shape
    co = w_folded.shape[0]
    tm = m if m <= 1024 else 1024
    # TODO(synk): when M < 128 (last PiT stage) fold several images into one grid step
    # to keep the output stores lane-dense.
    return pl.pallas_call(
        _pw_kernel,
        out_shape=jax.ShapeDtypeStruct((n, co, m), jnp.float32),
        grid=(n, pl.cdiv(m, tm)),
        in_specs=[
            pl.BlockSpec((1, tm, c), lambda i, j: (i, j, 0)),
            pl.BlockSpec((co, c), lambda i, j: (0, 0)),
            pl.BlockSpec((co, 1), lambda i, j: (0, 0)),
        ],
        out_specs=pl.BlockSpec((1, co, tm), lambda i, j: (i, 0, j)),
        compiler_params=pltpu.CompilerParams(
            dimension_semantics=("parallel", "parallel"),
            vmem_limit_bytes=48 * 1024 * 1024),
    )(y, w_folded, bias_folded.reshape(co, 1).astype(jnp.float32))


# --------------------------------- full module forward --------------------------------
def depthwise_conv2d_module(x, params, *, stride=1, padding=0, eps=1e-5,
                            inter_dtype=jnp.bfloat16):
    n, cin, _, _ = x.shape
    cout = params["w_dw"].shape[0]
    mult = cout // cin
    co = params["w_pw"].shape[0]

    # 1) depthwise conv + per-image BN partial stats (f32) from the same kernel.
    y, ssum, ssq = depthwise_conv2d(x, params["w_dw"], params["b_dw"],
                                    stride=stride, padding=padding,
                                    out_dtype=inter_dtype)
    _, ho, wo, _ = y.shape

    # 2) BatchNorm batch statistics -> per-channel affine (grouped channel order).
    #    (single-pass E[y^2]-E[y]^2 in f32; fine at BN activation scales.)
    count = n * ho * wo
    mean = jnp.sum(ssum, axis=0) / count
    var = jnp.sum(ssq, axis=0) / count - jnp.square(mean)
    gamma_g = params["gamma"].reshape(cin, mult).T.reshape(cout).astype(jnp.float32)
    beta_g = params["beta"].reshape(cin, mult).T.reshape(cout).astype(jnp.float32)
    a = gamma_g * jax.lax.rsqrt(var + eps)
    b = beta_g - mean * a

    # 3) Fold BN into the 1x1 conv (host side, tiny), then one matmul kernel.
    w2 = params["w_pw"][:, :, 0, 0].astype(jnp.float32)           # (Co, Cout) orig order
    w2_g = w2.reshape(co, cin, mult).transpose(0, 2, 1).reshape(co, cout)
    w_folded = (w2_g * a[None, :]).astype(inter_dtype)
    bias_folded = w2_g @ b + params["b_pw"].astype(jnp.float32)

    out = pointwise_folded(y.reshape(n, ho * wo, cout), w_folded, bias_folded)
    return out.reshape(n, co, ho, wo)                             # NCHW, free reshape


# -------------------------------------- references ------------------------------------
def reference(x, params, *, stride=1, padding=0, eps=1e-5):
    y1 = jax.lax.conv_general_dilated(
        x, params["w_dw"], window_strides=(stride, stride),
        padding=[(padding, padding), (padding, padding)],
        dimension_numbers=("NCHW", "OIHW", "NCHW"),
        feature_group_count=x.shape[1])
    y1 = y1 + params["b_dw"][None, :, None, None]
    mean = jnp.mean(y1, axis=(0, 2, 3), keepdims=True)
    var = jnp.mean(jnp.square(y1 - mean), axis=(0, 2, 3), keepdims=True)
    yn = (y1 - mean) / jnp.sqrt(var + eps)
    yn = yn * params["gamma"][None, :, None, None] + params["beta"][None, :, None, None]
    w_pw = params["w_pw"][:, :, 0, 0]
    return jnp.einsum("nchw,oc->nohw", yn, w_pw) + params["b_pw"][None, :, None, None]


def np_depthwise_grouped(x, w_dw, b_dw, *, stride, padding, mult):
    """float64 numpy depthwise conv; output NHWC, channels in grouped order q=j*Cin+c."""
    x = np.asarray(x, np.float64)
    w = np.asarray(w_dw, np.float64)
    b = np.asarray(b_dw, np.float64)
    n, cin, h, ww = x.shape
    cout, _, kh, kw = w.shape
    xp = np.pad(x, ((0, 0), (0, 0), (padding, padding), (padding, padding)))
    ho = (h + 2 * padding - kh) // stride + 1
    wo = (ww + 2 * padding - kw) // stride + 1
    y = np.zeros((n, ho, wo, cout))
    for o in range(cout):
        c, j = o // mult, o % mult
        acc = np.zeros((n, ho, wo))
        for a in range(kh):
            for bb in range(kw):
                acc += xp[:, c,
                          a:a + (ho - 1) * stride + 1:stride,
                          bb:bb + (wo - 1) * stride + 1:stride] * w[o, 0, a, bb]
        y[..., j * cin + c] = acc + b[o]
    return y


if __name__ == "__main__":
    # DepthWiseConv2d(in_channels=4, out_channels=8, kernel_size=3, padding=1)
    N, Cin, H, W = 2, 4, 16, 16
    Cout, K = 8, 3
    mult = Cout // Cin

    key = jax.random.PRNGKey(0)
    k1, k2, k3, k4, k5 = jax.random.split(key, 5)
    x = jax.random.normal(k1, (N, Cin, H, W), jnp.float32)
    params = {
        "w_dw": jax.random.normal(k2, (Cout, 1, K, K), jnp.float32) * 0.2,
        "b_dw": jax.random.normal(k3, (Cout,), jnp.float32) * 0.1,
        "gamma": jnp.ones((Cout,), jnp.float32),     # nn.BatchNorm2d default init
        "beta": jnp.zeros((Cout,), jnp.float32),
        "w_pw": jax.random.normal(k4, (Cout, Cout, 1, 1), jnp.float32) * 0.2,
        "b_pw": jax.random.normal(k5, (Cout,), jnp.float32) * 0.1,
    }

    # Tight check of the depthwise kernel (f32 intermediate) vs float64 numpy,
    # for both stride=1 and the PiT pooling stride=2 path.
    for stride, padding in ((1, 1), (2, 1)):
        y, _, _ = depthwise_conv2d(x, params["w_dw"], params["b_dw"],
                                   stride=stride, padding=padding,
                                   out_dtype=jnp.float32)
        y = jax.block_until_ready(y)
        y_ref = np_depthwise_grouped(x, params["w_dw"], params["b_dw"],
                                     stride=stride, padding=padding, mult=mult)
        err = float(np.max(np.abs(np.asarray(y, np.float64) - y_ref)))
        assert err < 1e-4, f"depthwise stride={stride} max err {err}"

    # Full module vs XLA reference.  Tolerances account for TPU default matmul
    # precision and (for the default path) the bf16 depthwise intermediate.
    checks = (
        (1, 1, jnp.float32, 2e-2),    # f32 intermediate
        (1, 1, jnp.bfloat16, 5e-2),   # bf16 intermediate (production setting)
        (2, 1, jnp.bfloat16, 5e-2),   # PiT pooling configuration (stride 2)
    )
    for stride, padding, inter_dtype, tol in checks:
        out = depthwise_conv2d_module(x, params, stride=stride, padding=padding,
                                      inter_dtype=inter_dtype)
        out = jax.block_until_ready(out)
        ref = jax.block_until_ready(reference(x, params, stride=stride, padding=padding))
        assert out.shape == ref.shape, (out.shape, ref.shape)
        err = float(jnp.max(jnp.abs(out - ref)))
        assert jnp.allclose(out, ref, atol=tol, rtol=tol), (stride, str(inter_dtype), err)

    print("KERNEL_OK")
</pallas_src>

<mosaic_0001>
module attributes {stable_mosaic.version = 11 : i64} {
  func.func @_dw_kernel(%arg0: i32, %arg1: memref<1x18x18x4xf32, #tpu.memory_space<vmem>>, %arg2: memref<18x4xf32, #tpu.memory_space<vmem>>, %arg3: memref<2x4xf32, #tpu.memory_space<vmem>>, %arg4: memref<1x16x16x8xf32, #tpu.memory_space<vmem>>, %arg5: memref<1x2x4xf32, #tpu.memory_space<vmem>>, %arg6: memref<1x2x4xf32, #tpu.memory_space<vmem>>) attributes {dimension_semantics = [#tpu.dimension_semantics<parallel>], iteration_bounds = array<i64: 2>, scalar_prefetch = 0 : i64, scratch_operands = 0 : i64, tpu.core_type = #tpu.core_type<tc>, window_params = [{transform_indices = @transform_0, window_bounds = array<i64: 1, 18, 18, 4>}, {pipeline_mode = #tpu.pipeline_mode<synchronous>, transform_indices = @transform_1, window_bounds = array<i64: 18, 4>}, {pipeline_mode = #tpu.pipeline_mode<synchronous>, transform_indices = @transform_2, window_bounds = array<i64: 2, 4>}, {transform_indices = @transform_3, window_bounds = array<i64: 1, 16, 16, 8>}, {transform_indices = @transform_4, window_bounds = array<i64: 1, 2, 4>}, {transform_indices = @transform_5, window_bounds = array<i64: 1, 2, 4>}]} {
    %cst = arith.constant 0.000000e+00 : f32
    %0 = vector.broadcast %cst : f32 to vector<16x16x4xf32>
    %c0 = arith.constant 0 : index
    %c0_0 = arith.constant 0 : index
    %c0_1 = arith.constant 0 : index
    %c0_2 = arith.constant 0 : index
    %1 = vector.load %arg1[%c0, %c0_0, %c0_1, %c0_2] : memref<1x18x18x4xf32, #tpu.memory_space<vmem>>, vector<1x16x16x4xf32>
    %2 = vector.shape_cast %1 : vector<1x16x16x4xf32> to vector<16x16x4xf32>
    %c0_3 = arith.constant 0 : index
    %c0_4 = arith.constant 0 : index
    %3 = vector.load %arg2[%c0_3, %c0_4] : memref<18x4xf32, #tpu.memory_space<vmem>>, vector<1x4xf32>
    %4 = vector.shape_cast %3 : vector<1x4xf32> to vector<4xf32>
    %5 = vector.shape_cast %4 : vector<4xf32> to vector<1x1x4xf32>
    %6 = vector.broadcast %5 : vector<1x1x4xf32> to vector<16x16x4xf32>
    %7 = arith.mulf %2, %6 : vector<16x16x4xf32>
    %8 = arith.addf %0, %7 : vector<16x16x4xf32>
    %c0_5 = arith.constant 0 : index
    %c0_6 = arith.constant 0 : index
    %c1 = arith.constant 1 : index
    %c0_7 = arith.constant 0 : index
    %9 = vector.load %arg1[%c0_5, %c0_6, %c1, %c0_7] : memref<1x18x18x4xf32, #tpu.memory_space<vmem>>, vector<1x16x16x4xf32>
    %10 = vector.shape_cast %9 : vector<1x16x16x4xf32> to vector<16x16x4xf32>
    %c1_8 = arith.constant 1 : index
    %c0_9 = arith.constant 0 : index
    %11 = vector.load %arg2[%c1_8, %c0_9] : memref<18x4xf32, #tpu.memory_space<vmem>>, vector<1x4xf32>
    %12 = vector.shape_cast %11 : vector<1x4xf32> to vector<4xf32>
    %13 = vector.shape_cast %12 : vector<4xf32> to vector<1x1x4xf32>
    %14 = vector.broadcast %13 : vector<1x1x4xf32> to vector<16x16x4xf32>
    %15 = arith.mulf %10, %14 : vector<16x16x4xf32>
    %16 = arith.addf %8, %15 : vector<16x16x4xf32>
    %c0_10 = arith.constant 0 : index
    %c0_11 = arith.constant 0 : index
    %c2 = arith.constant 2 : index
    %c0_12 = arith.constant 0 : index
    %17 = vector.load %arg1[%c0_10, %c0_11, %c2, %c0_12] : memref<1x18x18x4xf32, #tpu.memory_space<vmem>>, vector<1x16x16x4xf32>
    %18 = vector.shape_cast %17 : vector<1x16x16x4xf32> to vector<16x16x4xf32>
    %c2_13 = arith.constant 2 : index
    %c0_14 = arith.constant 0 : index
    %19 = vector.load %arg2[%c2_13, %c0_14] : memref<18x4xf32, #tpu.memory_space<vmem>>, vector<1x4xf32>
    %20 = vector.shape_cast %19 : vector<1x4xf32> to vector<4xf32>
    %21 = vector.shape_cast %20 : vector<4xf32> to vector<1x1x4xf32>
    %22 = vector.broadcast %21 : vector<1x1x4xf32> to vector<16x16x4xf32>
    %23 = arith.mulf %18, %22 : vector<16x16x4xf32>
    %24 = arith.addf %16, %23 : vector<16x16x4xf32>
    %c0_15 = arith.constant 0 : index
    %c1_16 = arith.constant 1 : index
    %c0_17 = arith.constant 0 : index
    %c0_18 = arith.constant 0 : index
    %25 = vector.load %arg1[%c0_15, %c1_16, %c0_17, %c0_18] : memref<1x18x18x4xf32, #tpu.memory_space<vmem>>, vector<1x16x16x4xf32>
    %26 = vector.shape_cast %25 : vector<1x16x16x4xf32> to vector<16x16x4xf32>
    %c3 = arith.constant 3 : index
    %c0_19 = arith.constant 0 : index
    %27 = vector.load %arg2[%c3, %c0_19] : memref<18x4xf32, #tpu.memory_space<vmem>>, vector<1x4xf32>
    %28 = vector.shape_cast %27 : vector<1x4xf32> to vector<4xf32>
    %29 = vector.shape_cast %28 : vector<4xf32> to vector<1x1x4xf32>
    %30 = vector.broadcast %29 : vector<1x1x4xf32> to vector<16x16x4xf32>
    %31 = arith.mulf %26, %30 : vector<16x16x4xf32>
    %32 = arith.addf %24, %31 : vector<16x16x4xf32>
    %c0_20 = arith.constant 0 : index
    %c1_21 = arith.constant 1 : index
    %c1_22 = arith.constant 1 : index
    %c0_23 = arith.constant 0 : index
    %33 = vector.load %arg1[%c0_20, %c1_21, %c1_22, %c0_23] : memref<1x18x18x4xf32, #tpu.memory_space<vmem>>, vector<1x16x16x4xf32>
    %34 = vector.shape_cast %33 : vector<1x16x16x4xf32> to vector<16x16x4xf32>
    %c4 = arith.constant 4 : index
    %c0_24 = arith.constant 0 : index
    %35 = vector.load %arg2[%c4, %c0_24] : memref<18x4xf32, #tpu.memory_space<vmem>>, vector<1x4xf32>
    %36 = vector.shape_cast %35 : vector<1x4xf32> to vector<4xf32>
    %37 = vector.shape_cast %36 : vector<4xf32> to vector<1x1x4xf32>
    %38 = vector.broadcast %37 : vector<1x1x4xf32> to vector<16x16x4xf32>
    %39 = arith.mulf %34, %38 : vector<16x16x4xf32>
    %40 = arith.addf %32, %39 : vector<16x16x4xf32>
    %c0_25 = arith.constant 0 : index
    %c1_26 = arith.constant 1 : index
    %c2_27 = arith.constant 2 : index
    %c0_28 = arith.constant 0 : index
    %41 = vector.load %arg1[%c0_25, %c1_26, %c2_27, %c0_28] : memref<1x18x18x4xf32, #tpu.memory_space<vmem>>, vector<1x16x16x4xf32>
    %42 = vector.shape_cast %41 : vector<1x16x16x4xf32> to vector<16x16x4xf32>
    %c5 = arith.constant 5 : index
    %c0_29 = arith.constant 0 : index
    %43 = vector.load %arg2[%c5, %c0_29] : memref<18x4xf32, #tpu.memory_space<vmem>>, vector<1x4xf32>
    %44 = vector.shape_cast %43 : vector<1x4xf32> to vector<4xf32>
    %45 = vector.shape_cast %44 : vector<4xf32> to vector<1x1x4xf32>
    %46 = vector.broadcast %45 : vector<1x1x4xf32> to vector<16x16x4xf32>
    %47 = arith.mulf %42, %46 : vector<16x16x4xf32>
    %48 = arith.addf %40, %47 : vector<16x16x4xf32>
    %c0_30 = arith.constant 0 : index
    %c2_31 = arith.constant 2 : index
    %c0_32 = arith.constant 0 : index
    %c0_33 = arith.constant 0 : index
    %49 = vector.load %arg1[%c0_30, %c2_31, %c0_32, %c0_33] : memref<1x18x18x4xf32, #tpu.memory_space<vmem>>, vector<1x16x16x4xf32>
    %50 = vector.shape_cast %49 : vector<1x16x16x4xf32> to vector<16x16x4xf32>
    %c6 = arith.constant 6 : index
    %c0_34 = arith.constant 0 : index
    %51 = vector.load %arg2[%c6, %c0_34] : memref<18x4xf32, #tpu.memory_space<vmem>>, vector<1x4xf32>
    %52 = vector.shape_cast %51 : vector<1x4xf32> to vector<4xf32>
    %53 = vector.shape_cast %52 : vector<4xf32> to vector<1x1x4xf32>
    %54 = vector.broadcast %53 : vector<1x1x4xf32> to vector<16x16x4xf32>
    %55 = arith.mulf %50, %54 : vector<16x16x4xf32>
    %56 = arith.addf %48, %55 : vector<16x16x4xf32>
    %c0_35 = arith.constant 0 : index
    %c2_36 = arith.constant 2 : index
    %c1_37 = arith.constant 1 : index
    %c0_38 = arith.constant 0 : index
    %57 = vector.load %arg1[%c0_35, %c2_36, %c1_37, %c0_38] : memref<1x18x18x4xf32, #tpu.memory_space<vmem>>, vector<1x16x16x4xf32>
    %58 = vector.shape_cast %57 : vector<1x16x16x4xf32> to vector<16x16x4xf32>
    %c7 = arith.constant 7 : index
    %c0_39 = arith.constant 0 : index
    %59 = vector.load %arg2[%c7, %c0_39] : memref<18x4xf32, #tpu.memory_space<vmem>>, vector<1x4xf32>
    %60 = vector.shape_cast %59 : vector<1x4xf32> to vector<4xf32>
    %61 = vector.shape_cast %60 : vector<4xf32> to vector<1x1x4xf32>
    %62 = vector.broadcast %61 : vector<1x1x4xf32> to vector<16x16x4xf32>
    %63 = arith.mulf %58, %62 : vector<16x16x4xf32>
    %64 = arith.addf %56, %63 : vector<16x16x4xf32>
    %c0_40 = arith.constant 0 : index
    %c2_41 = arith.constant 2 : index
    %c2_42 = arith.constant 2 : index
    %c0_43 = arith.constant 0 : index
    %65 = vector.load %arg1[%c0_40, %c2_41, %c2_42, %c0_43] : memref<1x18x18x4xf32, #tpu.memory_space<vmem>>, vector<1x16x16x4xf32>
    %66 = vector.shape_cast %65 : vector<1x16x16x4xf32> to vector<16x16x4xf32>
    %c8 = arith.constant 8 : index
    %c0_44 = arith.constant 0 : index
    %67 = vector.load %arg2[%c8, %c0_44] : memref<18x4xf32, #tpu.memory_space<vmem>>, vector<1x4xf32>
    %68 = vector.shape_cast %67 : vector<1x4xf32> to vector<4xf32>
    %69 = vector.shape_cast %68 : vector<4xf32> to vector<1x1x4xf32>
    %70 = vector.broadcast %69 : vector<1x1x4xf32> to vector<16x16x4xf32>
    %71 = arith.mulf %66, %70 : vector<16x16x4xf32>
    %72 = arith.addf %64, %71 : vector<16x16x4xf32>
    %c0_45 = arith.constant 0 : index
    %c0_46 = arith.constant 0 : index
    %73 = vector.load %arg3[%c0_45, %c0_46] : memref<2x4xf32, #tpu.memory_space<vmem>>, vector<1x4xf32>
    %74 = vector.shape_cast %73 : vector<1x4xf32> to vector<4xf32>
    %75 = vector.shape_cast %74 : vector<4xf32> to vector<1x1x4xf32>
    %76 = vector.broadcast %75 : vector<1x1x4xf32> to vector<16x16x4xf32>
    %77 = arith.addf %72, %76 : vector<16x16x4xf32>
    %c0_47 = arith.constant 0 : index
    %c0_48 = arith.constant 0 : index
    %c0_49 = arith.constant 0 : index
    %c0_50 = arith.constant 0 : index
    %78 = vector.load %arg4[%c0_47, %c0_48, %c0_49, %c0_50] : memref<1x16x16x8xf32, #tpu.memory_space<vmem>>, vector<1x16x16x4xf32>
    %79 = vector.shape_cast %78 : vector<1x16x16x4xf32> to vector<16x16x4xf32>
    %80 = vector.shape_cast %77 : vector<16x16x4xf32> to vector<1x16x16x4xf32>
    tpu.vector_store %arg4[%c0_47, %c0_48, %c0_49, %c0_50], %80 {strides = array<i32>} : memref<1x16x16x8xf32, #tpu.memory_space<vmem>>, vector<1x16x16x4xf32>,
    %cst_51 = arith.constant dense<0.000000e+00> : vector<4xf32>
    %81 = vector.multi_reduction <add>, %77, %cst_51 [0, 1] : vector<16x16x4xf32> to vector<4xf32>
    %c0_52 = arith.constant 0 : index
    %c0_53 = arith.constant 0 : index
    %c0_54 = arith.constant 0 : index
    %82 = vector.load %arg5[%c0_52, %c0_53, %c0_54] : memref<1x2x4xf32, #tpu.memory_space<vmem>>, vector<1x1x4xf32>
    %83 = vector.shape_cast %82 : vector<1x1x4xf32> to vector<4xf32>
    %84 = vector.shape_cast %81 : vector<4xf32> to vector<1x1x4xf32>
    tpu.vector_store %arg5[%c0_52, %c0_53, %c0_54], %84 {strides = array<i32>} : memref<1x2x4xf32, #tpu.memory_space<vmem>>, vector<1x1x4xf32>,
    %85 = arith.mulf %77, %77 : vector<16x16x4xf32>
    %cst_55 = arith.constant dense<0.000000e+00> : vector<4xf32>
    %86 = vector.multi_reduction <add>, %85, %cst_55 [0, 1] : vector<16x16x4xf32> to vector<4xf32>
    %c0_56 = arith.constant 0 : index
    %c0_57 = arith.constant 0 : index
    %c0_58 = arith.constant 0 : index
    %87 = vector.load %arg6[%c0_56, %c0_57, %c0_58] : memref<1x2x4xf32, #tpu.memory_space<vmem>>, vector<1x1x4xf32>
    %88 = vector.shape_cast %87 : vector<1x1x4xf32> to vector<4xf32>
    %89 = vector.shape_cast %86 : vector<4xf32> to vector<1x1x4xf32>
    tpu.vector_store %arg6[%c0_56, %c0_57, %c0_58], %89 {strides = array<i32>} : memref<1x2x4xf32, #tpu.memory_space<vmem>>, vector<1x1x4xf32>,
    %cst_59 = arith.constant 0.000000e+00 : f32
    %90 = vector.broadcast %cst_59 : f32 to vector<16x16x4xf32>
    %c0_60 = arith.constant 0 : index
    %c0_61 = arith.constant 0 : index
    %c0_62 = arith.constant 0 : index
    %c0_63 = arith.constant 0 : index
    %91 = vector.load %arg1[%c0_60, %c0_61, %c0_62, %c0_63] : memref<1x18x18x4xf32, #tpu.memory_space<vmem>>, vector<1x16x16x4xf32>
    %92 = vector.shape_cast %91 : vector<1x16x16x4xf32> to vector<16x16x4xf32>
    %c9 = arith.constant 9 : index
    %c0_64 = arith.constant 0 : index
    %93 = vector.load %arg2[%c9, %c0_64] : memref<18x4xf32, #tpu.memory_space<vmem>>, vector<1x4xf32>
    %94 = vector.shape_cast %93 : vector<1x4xf32> to vector<4xf32>
    %95 = vector.shape_cast %94 : vector<4xf32> to vector<1x1x4xf32>
    %96 = vector.broadcast %95 : vector<1x1x4xf32> to vector<16x16x4xf32>
    %97 = arith.mulf %92, %96 : vector<16x16x4xf32>
    %98 = arith.addf %90, %97 : vector<16x16x4xf32>
    %c0_65 = arith.constant 0 : index
    %c0_66 = arith.constant 0 : index
    %c1_67 = arith.constant 1 : index
    %c0_68 = arith.constant 0 : index
    %99 = vector.load %arg1[%c0_65, %c0_66, %c1_67, %c0_68] : memref<1x18x18x4xf32, #tpu.memory_space<vmem>>, vector<1x16x16x4xf32>
    %100 = vector.shape_cast %99 : vector<1x16x16x4xf32> to vector<16x16x4xf32>
    %c10 = arith.constant 10 : index
    %c0_69 = arith.constant 0 : index
    %101 = vector.load %arg2[%c10, %c0_69] : memref<18x4xf32, #tpu.memory_space<vmem>>, vector<1x4xf32>
    %102 = vector.shape_cast %101 : vector<1x4xf32> to vector<4xf32>
    %103 = vector.shape_cast %102 : vector<4xf32> to vector<1x1x4xf32>
    %104 = vector.broadcast %103 : vector<1x1x4xf32> to vector<16x16x4xf32>
    %105 = arith.mulf %100, %104 : vector<16x16x4xf32>
    %106 = arith.addf %98, %105 : vector<16x16x4xf32>
    %c0_70 = arith.constant 0 : index
    %c0_71 = arith.constant 0 : index
    %c2_72 = arith.constant 2 : index
    %c0_73 = arith.constant 0 : index
    %107 = vector.load %arg1[%c0_70, %c0_71, %c2_72, %c0_73] : memref<1x18x18x4xf32, #tpu.memory_space<vmem>>, vector<1x16x16x4xf32>
    %108 = vector.shape_cast %107 : vector<1x16x16x4xf32> to vector<16x16x4xf32>
    %c11 = arith.constant 11 : index
    %c0_74 = arith.constant 0 : index
    %109 = vector.load %arg2[%c11, %c0_74] : memref<18x4xf32, #tpu.memory_space<vmem>>, vector<1x4xf32>
    %110 = vector.shape_cast %109 : vector<1x4xf32> to vector<4xf32>
    %111 = vector.shape_cast %110 : vector<4xf32> to vector<1x1x4xf32>
    %112 = vector.broadcast %111 : vector<1x1x4xf32> to vector<16x16x4xf32>
    %113 = arith.mulf %108, %112 : vector<16x16x4xf32>
    %114 = arith.addf %106, %113 : vector<16x16x4xf32>
    %c0_75 = arith.constant 0 : index
    %c1_76 = arith.constant 1 : index
    %c0_77 = arith.constant 0 : index
    %c0_78 = arith.constant 0 : index
    %115 = vector.load %arg1[%c0_75, %c1_76, %c0_77, %c0_78] : memref<1x18x18x4xf32, #tpu.memory_space<vmem>>, vector<1x16x16x4xf32>
    %116 = vector.shape_cast %115 : vector<1x16x16x4xf32> to vector<16x16x4xf32>
    %c12 = arith.constant 12 : index
    %c0_79 = arith.constant 0 : index
    %117 = vector.load %arg2[%c12, %c0_79] : memref<18x4xf32, #tpu.memory_space<vmem>>, vector<1x4xf32>
    %118 = vector.shape_cast %117 : vector<1x4xf32> to vector<4xf32>
    %119 = vector.shape_cast %118 : vector<4xf32> to vector<1x1x4xf32>
    %120 = vector.broadcast %119 : vector<1x1x4xf32> to vector<16x16x4xf32>
    %121 = arith.mulf %116, %120 : vector<16x16x4xf32>
    %122 = arith.addf %114, %121 : vector<16x16x4xf32>
    %c0_80 = arith.constant 0 : index
    %c1_81 = arith.constant 1 : index
    %c1_82 = arith.constant 1 : index
    %c0_83 = arith.constant 0 : index
    %123 = vector.load %arg1[%c0_80, %c1_81, %c1_82, %c0_83] : memref<1x18x18x4xf32, #tpu.memory_space<vmem>>, vector<1x16x16x4xf32>
    %124 = vector.shape_cast %123 : vector<1x16x16x4xf32> to vector<16x16x4xf32>
    %c13 = arith.constant 13 : index
    %c0_84 = arith.constant 0 : index
    %125 = vector.load %arg2[%c13, %c0_84] : memref<18x4xf32, #tpu.memory_space<vmem>>, vector<1x4xf32>
    %126 = vector.shape_cast %125 : vector<1x4xf32> to vector<4xf32>
    %127 = vector.shape_cast %126 : vector<4xf32> to vector<1x1x4xf32>
    %128 = vector.broadcast %127 : vector<1x1x4xf32> to vector<16x16x4xf32>
    %129 = arith.mulf %124, %128 : vector<16x16x4xf32>
    %130 = arith.addf %122, %129 : vector<16x16x4xf32>
    %c0_85 = arith.constant 0 : index
    %c1_86 = arith.constant 1 : index
    %c2_87 = arith.constant 2 : index
    %c0_88 = arith.constant 0 : index
    %131 = vector.load %arg1[%c0_85, %c1_86, %c2_87, %c0_88] : memref<1x18x18x4xf32, #tpu.memory_space<vmem>>, vector<1x16x16x4xf32>
    %132 = vector.shape_cast %131 : vector<1x16x16x4xf32> to vector<16x16x4xf32>
    %c14 = arith.constant 14 : index
    %c0_89 = arith.constant 0 : index
    %133 = vector.load %arg2[%c14, %c0_89] : memref<18x4xf32, #tpu.memory_space<vmem>>, vector<1x4xf32>
    %134 = vector.shape_cast %133 : vector<1x4xf32> to vector<4xf32>
    %135 = vector.shape_cast %134 : vector<4xf32> to vector<1x1x4xf32>
    %136 = vector.broadcast %135 : vector<1x1x4xf32> to vector<16x16x4xf32>
    %137 = arith.mulf %132, %136 : vector<16x16x4xf32>
    %138 = arith.addf %130, %137 : vector<16x16x4xf32>
    %c0_90 = arith.constant 0 : index
    %c2_91 = arith.constant 2 : index
    %c0_92 = arith.constant 0 : index
    %c0_93 = arith.constant 0 : index
    %139 = vector.load %arg1[%c0_90, %c2_91, %c0_92, %c0_93] : memref<1x18x18x4xf32, #tpu.memory_space<vmem>>, vector<1x16x16x4xf32>
    %140 = vector.shape_cast %139 : vector<1x16x16x4xf32> to vector<16x16x4xf32>
    %c15 = arith.constant 15 : index
    %c0_94 = arith.constant 0 : index
    %141 = vector.load %arg2[%c15, %c0_94] : memref<18x4xf32, #tpu.memory_space<vmem>>, vector<1x4xf32>
    %142 = vector.shape_cast %141 : vector<1x4xf32> to vector<4xf32>
    %143 = vector.shape_cast %142 : vector<4xf32> to vector<1x1x4xf32>
    %144 = vector.broadcast %143 : vector<1x1x4xf32> to vector<16x16x4xf32>
    %145 = arith.mulf %140, %144 : vector<16x16x4xf32>
    %146 = arith.addf %138, %145 : vector<16x16x4xf32>
    %c0_95 = arith.constant 0 : index
    %c2_96 = arith.constant 2 : index
    %c1_97 = arith.constant 1 : index
    %c0_98 = arith.constant 0 : index
    %147 = vector.load %arg1[%c0_95, %c2_96, %c1_97, %c0_98] : memref<1x18x18x4xf32, #tpu.memory_space<vmem>>, vector<1x16x16x4xf32>
    %148 = vector.shape_cast %147 : vector<1x16x16x4xf32> to vector<16x16x4xf32>
    %c16 = arith.constant 16 : index
    %c0_99 = arith.constant 0 : index
    %149 = vector.load %arg2[%c16, %c0_99] : memref<18x4xf32, #tpu.memory_space<vmem>>, vector<1x4xf32>
    %150 = vector.shape_cast %149 : vector<1x4xf32> to vector<4xf32>
    %151 = vector.shape_cast %150 : vector<4xf32> to vector<1x1x4xf32>
    %152 = vector.broadcast %151 : vector<1x1x4xf32> to vector<16x16x4xf32>
    %153 = arith.mulf %148, %152 : vector<16x16x4xf32>
    %154 = arith.addf %146, %153 : vector<16x16x4xf32>
    %c0_100 = arith.constant 0 : index
    %c2_101 = arith.constant 2 : index
    %c2_102 = arith.constant 2 : index
    %c0_103 = arith.constant 0 : index
    %155 = vector.load %arg1[%c0_100, %c2_101, %c2_102, %c0_103] : memref<1x18x18x4xf32, #tpu.memory_space<vmem>>, vector<1x16x16x4xf32>
    %156 = vector.shape_cast %155 : vector<1x16x16x4xf32> to vector<16x16x4xf32>
    %c17 = arith.constant 17 : index
    %c0_104 = arith.constant 0 : index
    %157 = vector.load %arg2[%c17, %c0_104] : memref<18x4xf32, #tpu.memory_space<vmem>>, vector<1x4xf32>
    %158 = vector.shape_cast %157 : vector<1x4xf32> to vector<4xf32>
    %159 = vector.shape_cast %158 : vector<4xf32> to vector<1x1x4xf32>
    %160 = vector.broadcast %159 : vector<1x1x4xf32> to vector<16x16x4xf32>
    %161 = arith.mulf %156, %160 : vector<16x16x4xf32>
    %162 = arith.addf %154, %161 : vector<16x16x4xf32>
    %c1_105 = arith.constant 1 : index
    %c0_106 = arith.constant 0 : index
    %163 = vector.load %arg3[%c1_105, %c0_106] : memref<2x4xf32, #tpu.memory_space<vmem>>, vector<1x4xf32>
    %164 = vector.shape_cast %163 : vector<1x4xf32> to vector<4xf32>
    %165 = vector.shape_cast %164 : vector<4xf32> to vector<1x1x4xf32>
    %166 = vector.broadcast %165 : vector<1x1x4xf32> to vector<16x16x4xf32>
    %167 = arith.addf %162, %166 : vector<16x16x4xf32>
    %c0_107 = arith.constant 0 : index
    %c0_108 = arith.constant 0 : index
    %c0_109 = arith.constant 0 : index
    %c4_110 = arith.constant 4 : index
    %168 = vector.load %arg4[%c0_107, %c0_108, %c0_109, %c4_110] : memref<1x16x16x8xf32, #tpu.memory_space<vmem>>, vector<1x16x16x4xf32>
    %169 = vector.shape_cast %168 : vector<1x16x16x4xf32> to vector<16x16x4xf32>
    %170 = vector.shape_cast %167 : vector<16x16x4xf32> to vector<1x16x16x4xf32>
    tpu.vector_store %arg4[%c0_107, %c0_108, %c0_109, %c4_110], %170 {strides = array<i32>} : memref<1x16x16x8xf32, #tpu.memory_space<vmem>>, vector<1x16x16x4xf32>,
    %cst_111 = arith.constant dense<0.000000e+00> : vector<4xf32>
    %171 = vector.multi_reduction <add>, %167, %cst_111 [0, 1] : vector<16x16x4xf32> to vector<4xf32>
    %c0_112 = arith.constant 0 : index
    %c1_113 = arith.constant 1 : index
    %c0_114 = arith.constant 0 : index
    %172 = vector.load %arg5[%c0_112, %c1_113, %c0_114] : memref<1x2x4xf32, #tpu.memory_space<vmem>>, vector<1x1x4xf32>
    %173 = vector.shape_cast %172 : vector<1x1x4xf32> to vector<4xf32>
    %174 = vector.shape_cast %171 : vector<4xf32> to vector<1x1x4xf32>
    tpu.vector_store %arg5[%c0_112, %c1_113, %c0_114], %174 {strides = array<i32>} : memref<1x2x4xf32, #tpu.memory_space<vmem>>, vector<1x1x4xf32>,
    %175 = arith.mulf %167, %167 : vector<16x16x4xf32>
    %cst_115 = arith.constant dense<0.000000e+00> : vector<4xf32>
    %176 = vector.multi_reduction <add>, %175, %cst_115 [0, 1] : vector<16x16x4xf32> to vector<4xf32>
    %c0_116 = arith.constant 0 : index
    %c1_117 = arith.constant 1 : index
    %c0_118 = arith.constant 0 : index
    %177 = vector.load %arg6[%c0_116, %c1_117, %c0_118] : memref<1x2x4xf32, #tpu.memory_space<vmem>>, vector<1x1x4xf32>
    %178 = vector.shape_cast %177 : vector<1x1x4xf32> to vector<4xf32>
    %179 = vector.shape_cast %176 : vector<4xf32> to vector<1x1x4xf32>
    tpu.vector_store %arg6[%c0_116, %c1_117, %c0_118], %179 {strides = array<i32>} : memref<1x2x4xf32, #tpu.memory_space<vmem>>, vector<1x1x4xf32>,
    return
  }
  func.func @transform_0(%arg0: i32) -> (i32, i32, i32, i32) {
    %c0_i32 = arith.constant 0 : i32
    %c0_i32_0 = arith.constant 0 : i32
    %c0_i32_1 = arith.constant 0 : i32
    %c0_i32_2 = arith.constant 0 : i32
    return %arg0, %c0_i32, %c0_i32_0, %c0_i32_1 : i32, i32, i32, i32
  }
  func.func @transform_1(%arg0: i32) -> (i32, i32) {
    %c0_i32 = arith.constant 0 : i32
    %c0_i32_0 = arith.constant 0 : i32
    %c0_i32_1 = arith.constant 0 : i32
    return %c0_i32, %c0_i32_0 : i32, i32
  }
  func.func @transform_2(%arg0: i32) -> (i32, i32) {
    %c0_i32 = arith.constant 0 : i32
    %c0_i32_0 = arith.constant 0 : i32
    %c0_i32_1 = arith.constant 0 : i32
    return %c0_i32, %c0_i32_0 : i32, i32
  }
  func.func @transform_3(%arg0: i32) -> (i32, i32, i32, i32) {
    %c0_i32 = arith.constant 0 : i32
    %c0_i32_0 = arith.constant 0 : i32
    %c0_i32_1 = arith.constant 0 : i32
    %c0_i32_2 = arith.constant 0 : i32
    return %arg0, %c0_i32, %c0_i32_0, %c0_i32_1 : i32, i32, i32, i32
  }
  func.func @transform_4(%arg0: i32) -> (i32, i32, i32) {
    %c0_i32 = arith.constant 0 : i32
    %c0_i32_0 = arith.constant 0 : i32
    %c0_i32_1 = arith.constant 0 : i32
    return %arg0, %c0_i32, %c0_i32_0 : i32, i32, i32
  }
  func.func @transform_5(%arg0: i32) -> (i32, i32, i32) {
    %c0_i32 = arith.constant 0 : i32
    %c0_i32_0 = arith.constant 0 : i32
    %c0_i32_1 = arith.constant 0 : i32
    return %arg0, %c0_i32, %c0_i32_0 : i32, i32, i32
  }
}

</mosaic_0001>

<llo_original>
// kernel: tpu_custom_call.1
$region0: #{tpu_custom_call.1}
  #allocation0 [shape = 'u32[]', space=smem, size = 0x4, offset = 0x4, fixed_abs, tag = 'smem constant byte address 0x4 - core index']
  #allocation1 [shape = 'u32[144,128]{1,0:T(1,128)}', space=vmem, size = 0x12000, scoped, tag = 'internal scratch']
  %s0 = inlined_call_operand.vmem [shape: f32[2,18,18,4], index: 0, kind: input, shape index: {}]
  %s1 = inlined_call_operand.vmem [shape: f32[18,4], index: 1, kind: input, shape index: {}]
  %s2 = inlined_call_operand.vmem [shape: f32[2,4], index: 2, kind: input, shape index: {}]
  %s3 = inlined_call_operand.vmem [shape: f32[2,16,16,8], index: 3, kind: output, shape index: {0}]
  %s4 = inlined_call_operand.hbm [shape: f32[2,2,4], index: 4, kind: output, shape index: {1}]
  %s5 = inlined_call_operand.hbm [shape: f32[2,2,4], index: 5, kind: output, shape index: {2}]
  %6 = xla_tuple %s3, %s4, %s5
  %s7 = sld [smem:[#allocation0]]
  $region61: #{tpu_custom_call.1} parent=0
    _
  %s9 = ssub.s32 1, %s7
  %s10 = scalar_select 0, %s9, %s7
  $region1: #{tpu_custom_call.1} parent=0
    #allocation2 [shape = 'u8[2048]{0}', space=vmem, size = 0x800, scoped, tag = 'output window, operand 1']
    #allocation3 [shape = 's32[2]{0}', space=sflag, size = 0x8, scoped, tag = 'scoped memory for tpu_custom_call.1']
    #allocation4 [shape = 'u8[2048]{0}', space=vmem, size = 0x800, scoped, tag = 'output window, operand 2']
    #allocation5 [shape = 's32[2]{0}', space=sflag, size = 0x8, scoped, tag = 'scoped memory for tpu_custom_call.1']
    %11 = vsyncpa [#allocation3], 0
    %s12 = scalar_lea.sflag [#allocation3], 1
    %13 = vsyncpa %s12, 0
    %14 = vsyncpa [#allocation5], 0
    %s15 = scalar_lea.sflag [#allocation5], 1
    %16 = vsyncpa %s15, 0
    loop: start=0, step=1, limit=4
    $region2: #{tpu_custom_call.1} parent=1 // loop_pre_header
      _
    $region3: #{tpu_custom_call.1} parent=1 // loop_header
      %s18 = sphi 0, %s22
      %p19 = scmp.ge.s32.totalorder %s18, 4
      %s28 = sphi 0, %s30
      %s31 = sphi 0, %s28
      %s32 = sphi 0, %s31
      %s48 = sphi 0, %s32
      %s52 = sphi 0, %s52
      %s54 = sphi 0, %s52
      %s55 = sphi 0, %s54
      %s69 = sphi 0, %s55
      %s73 = sphi 0, %s73
      %s75 = sphi 0, %s73
      %s76 = sphi 0, %s75
      %s90 = sphi 0, %s76
      %s96 = sphi 0, %s98
      %s99 = sphi 0, %s96
      %s100 = sphi 0, %s99
      %s116 = sphi 0, %s100
      %s122 = sphi 0, %s124
      %s125 = sphi 0, %s122
      %s126 = sphi 0, %s125
      %s142 = sphi 0, %s126
      %s148 = sphi 0, %s150
      %s151 = sphi 0, %s148
      %s152 = sphi 0, %s151
      %s168 = sphi 0, %s152
    $region4: #{tpu_custom_call.1} parent=1 // loop_header_branch
      %21 = sbr.rel (%p19) target = $region8
    $region5: #{tpu_custom_call.1} parent=1 // loop_body
      %s23 = ssub.s32 %s18, 1
      %s24 = ssub.s32 %s18, 2
      %s25 = sadd.s32 %s18, 1
      %s26 = ssub.s32 %s18, %s25
      %p27 = scmp.eq.s32.totalorder %s26, 0
      %s29 = sadd.s32 %s28, 1
      %s30 = scalar_select %p27, %s28, %s29
      %p33 = pneg %p27
      %p34 = scmp.eq.s32.totalorder %s18, 1
      %p35 = por %p33, %p34
      %p36 = scmp.ne.s32.totalorder %s28, %s31
      %p37 = scmp.eq.s32.totalorder %s18, 0
      %p38 = por %p36, %p37
      %p39 = scmp.ne.s32.totalorder %s28, %s31
      %p40 = scmp.eq.s32.totalorder %s23, 1
      %p41 = por %p39, %p40
      %p42 = scmp.ne.s32.totalorder %s31, %s32
      %p43 = scmp.eq.s32.totalorder %s23, 0
      %p44 = por %p42, %p43
      %p45 = scmp.ne.s32.totalorder %s31, %s32
      %p46 = scmp.eq.s32.totalorder %s24, 1
      %p47 = por %p45, %p46
      %p49 = scmp.ne.s32.totalorder %s32, %s48
      %p50 = scmp.eq.s32.totalorder %s24, 0
      %p51 = por %p49, %p50
      %s53 = sadd.s32 %s52, 1
      %p56 = scmp.eq.s32.totalorder %s18, 1
      %p57 = scmp.ne.s32.totalorder %s52, %s54
      %p58 = scmp.eq.s32.totalorder %s18, 0
      %p59 = por %p57, %p58
      %p60 = scmp.ne.s32.totalorder %s52, %s54
      %p61 = scmp.eq.s32.totalorder %s23, 1
      %p62 = por %p60, %p61
      %p63 = scmp.ne.s32.totalorder %s54, %s55
      %p64 = scmp.eq.s32.totalorder %s23, 0
      %p65 = por %p63, %p64
      %p66 = scmp.ne.s32.totalorder %s54, %s55
      %p67 = scmp.eq.s32.totalorder %s24, 1
      %p68 = por %p66, %p67
      %p70 = scmp.ne.s32.totalorder %s55, %s69
      %p71 = scmp.eq.s32.totalorder %s24, 0
      %p72 = por %p70, %p71
      %s74 = sadd.s32 %s73, 1
      %p77 = scmp.eq.s32.totalorder %s18, 1
      %p78 = scmp.ne.s32.totalorder %s73, %s75
      %p79 = scmp.eq.s32.totalorder %s18, 0
      %p80 = por %p78, %p79
      %p81 = scmp.ne.s32.totalorder %s73, %s75
      %p82 = scmp.eq.s32.totalorder %s23, 1
      %p83 = por %p81, %p82
      %p84 = scmp.ne.s32.totalorder %s75, %s76
      %p85 = scmp.eq.s32.totalorder %s23, 0
      %p86 = por %p84, %p85
      %p87 = scmp.ne.s32.totalorder %s75, %s76
      %p88 = scmp.eq.s32.totalorder %s24, 1
      %p89 = por %p87, %p88
      %p91 = scmp.ne.s32.totalorder %s76, %s90
      %p92 = scmp.eq.s32.totalorder %s24, 0
      %p93 = por %p91, %p92
      %s94 = ssub.s32 %s18, %s25
      %p95 = scmp.eq.s32.totalorder %s94, 0
      %s97 = sadd.s32 %s96, 1
      %s98 = scalar_select %p95, %s96, %s97
      %p101 = pneg %p95
      %p102 = scmp.eq.s32.totalorder %s18, 1
      %p103 = por %p101, %p102
      %p104 = scmp.ne.s32.totalorder %s96, %s99
      %p105 = scmp.eq.s32.totalorder %s18, 0
      %p106 = por %p104, %p105
      %p107 = scmp.ne.s32.totalorder %s96, %s99
      %p108 = scmp.eq.s32.totalorder %s23, 1
      %p109 = por %p107, %p108
      %p110 = scmp.ne.s32.totalorder %s99, %s100
      %p111 = scmp.eq.s32.totalorder %s23, 0
      %p112 = por %p110, %p111
      %p113 = scmp.ne.s32.totalorder %s99, %s100
      %p114 = scmp.eq.s32.totalorder %s24, 1
      %p115 = por %p113, %p114
      %p117 = scmp.ne.s32.totalorder %s100, %s116
      %p118 = scmp.eq.s32.totalorder %s24, 0
      %p119 = por %p117, %p118
      %s120 = ssub.s32 %s18, %s25
      %p121 = scmp.eq.s32.totalorder %s120, 0
      %s123 = sadd.s32 %s122, 1
      %s124 = scalar_select %p121, %s122, %s123
      %p127 = pneg %p121
      %p128 = scmp.eq.s32.totalorder %s18, 1
      %p129 = por %p127, %p128
      %p130 = scmp.ne.s32.totalorder %s122, %s125
      %p131 = scmp.eq.s32.totalorder %s18, 0
      %p132 = por %p130, %p131
      %p133 = scmp.ne.s32.totalorder %s122, %s125
      %p134 = scmp.eq.s32.totalorder %s23, 1
      %p135 = por %p133, %p134
      %p136 = scmp.ne.s32.totalorder %s125, %s126
      %p137 = scmp.eq.s32.totalorder %s23, 0
      %p138 = por %p136, %p137
      %p139 = scmp.ne.s32.totalorder %s125, %s126
      %p140 = scmp.eq.s32.totalorder %s24, 1
      %p141 = por %p139, %p140
      %p143 = scmp.ne.s32.totalorder %s126, %s142
      %p144 = scmp.eq.s32.totalorder %s24, 0
      %p145 = por %p143, %p144
      %s146 = ssub.s32 %s18, %s25
      %p147 = scmp.eq.s32.totalorder %s146, 0
      %s149 = sadd.s32 %s148, 1
      %s150 = scalar_select %p147, %s148, %s149
      %p153 = pneg %p147
      %p154 = scmp.eq.s32.totalorder %s18, 1
      %p155 = por %p153, %p154
      %p156 = scmp.ne.s32.totalorder %s148, %s151
      %p157 = scmp.eq.s32.totalorder %s18, 0
      %p158 = por %p156, %p157
      %p159 = scmp.ne.s32.totalorder %s148, %s151
      %p160 = scmp.eq.s32.totalorder %s23, 1
      %p161 = por %p159, %p160
      %p162 = scmp.ne.s32.totalorder %s151, %s152
      %p163 = scmp.eq.s32.totalorder %s23, 0
      %p164 = por %p162, %p163
      %p165 = scmp.ne.s32.totalorder %s151, %s152
      %p166 = scmp.eq.s32.totalorder %s24, 1
      %p167 = por %p165, %p166
      %p169 = scmp.ne.s32.totalorder %s152, %s168
      %p170 = scmp.eq.s32.totalorder %s24, 0
      %p171 = por %p169, %p170
      %p172 = scmp.le.s32.totalorder 1, %s18
      %p173 = scmp.lt.s32.totalorder %s18, 3
      %p174 = pnand %p172, %p173
      %p175 = pneg %p174
      // Predicated region
      $region9: #{tpu_custom_call.1} parent=5 // pred_check
        _
      $region10: #{tpu_custom_call.1} parent=5 // pred_check_branch
        %177 = sbr.rel (%p174) target = $region12
      $region11: #{tpu_custom_call.1} parent=5 // pred_region
        %s178 = ssub.s32 %s18, 1
        // Predicated region
        $region13: #{tpu_custom_call.1} parent=11 // pred_check
          %p179 = pneg %p65
        $region14: #{tpu_custom_call.1} parent=11 // pred_check_branch
          %181 = sbr.rel (%p179) target = $region16
        $region15: #{tpu_custom_call.1} parent=11 // pred_region
          _
        $region16: #{tpu_custom_call.1} parent=11 // pred_fallthru
          _
        // Predicated region
        $region17: #{tpu_custom_call.1} parent=11 // pred_check
          %p182 = pneg %p86
        $region18: #{tpu_custom_call.1} parent=11 // pred_check_branch
          %184 = sbr.rel (%p182) target = $region20
        $region19: #{tpu_custom_call.1} parent=11 // pred_region
          _
        $region20: #{tpu_custom_call.1} parent=11 // pred_fallthru
          _
      $region12: #{tpu_custom_call.1} parent=5 // pred_fallthru
        _
      %p185 = scmp.lt.s32.totalorder %s18, 2
      // Predicated region
      $region21: #{tpu_custom_call.1} parent=5 // pred_check
        %p186 = pneg %p185
      $region22: #{tpu_custom_call.1} parent=5 // pred_check_branch
        %188 = sbr.rel (%p186) target = $region24
      $region23: #{tpu_custom_call.1} parent=5 // pred_region
        // Predicated region
        $region25: #{tpu_custom_call.1} parent=23 // pred_check
          %p189 = pneg %p38
        $region26: #{tpu_custom_call.1} parent=23 // pred_check_branch
          %191 = sbr.rel (%p189) target = $region28
        $region27: #{tpu_custom_call.1} parent=23 // pred_region
          %p192 = scmp.lt.s32.totalorder %s18, 1
          %s193 = scalar_select %p192, %s18, 1
          %s194 = smul.addr %s193, 54
          %s195 = smul.addr %s194, 8
          %s196 = scalar_lea.vmem %s0, %s195
        $region28: #{tpu_custom_call.1} parent=23 // pred_fallthru
          _
      $region24: #{tpu_custom_call.1} parent=5 // pred_fallthru
        _
      %p197 = scmp.le.s32.totalorder 1, %s18
      %p198 = scmp.lt.s32.totalorder %s18, 3
      %p199 = pnand %p197, %p198
      %p200 = pneg %p199
      // Predicated region
      $region29: #{tpu_custom_call.1} parent=5 // pred_check
        _
      $region30: #{tpu_custom_call.1} parent=5 // pred_check_branch
        %202 = sbr.rel (%p199) target = $region32
      $region31: #{tpu_custom_call.1} parent=5 // pred_region
        %s203 = ssub.s32 %s18, 1
        %p204 = scmp.lt.s32.totalorder %s23, 1
        %s205 = scalar_select %p204, %s23, 1
        %s206 = smul.addr %s205, 54
        %s207 = smul.addr %s206, 8
        %s208 = scalar_lea.vmem %s0, %s207
        %p209 = pneg %p44
        %p210 = pneg %p41
        %p211 = pneg %p65
        %p212 = pneg %p62
        %p213 = pneg %p86
        %p214 = pneg %p83
        %p215 = pneg %p112
        %p216 = pneg %p109
        %p217 = scmp.lt.s32.totalorder %s23, 1
        %s218 = scalar_select %p217, %s23, 1
        %s219 = smul.addr %s218, 32
        %s220 = smul.addr %s219, 8
        %s221 = scalar_lea.vmem %s3, %s220
        %p222 = pneg %p138
        %p223 = pneg %p135
        %s224 = sand.u32 %s125, 1
        %s225 = scalar_lea.sflag [#allocation3], %s224
        %s226 = sand.u32 %s125, 1
        %s227 = smul.addr %s226, 2
        %s228 = scalar_lea.vmem [#allocation2], %s227
        %p229 = pneg %p164
        %p230 = pneg %p161
        %s231 = sand.u32 %s151, 1
        %s232 = scalar_lea.sflag [#allocation5], %s231
        %s233 = sand.u32 %s151, 1
        %s234 = smul.addr %s233, 2
        %s235 = scalar_lea.vmem [#allocation4], %s234
        %p236 = scmp.lt.s32.totalorder %s23, 1
        %s237 = scalar_select %p236, %s23, 1
        %s238 = smul.addr %s237, 54
        %s239 = smul.addr %s238, 8
        %s240 = scalar_lea.vmem %s0, %s239
        %p241 = scmp.lt.s32.totalorder %s23, 1
        %s242 = scalar_select %p241, %s23, 1
        %s243 = smul.addr %s242, 32
        %s244 = smul.addr %s243, 8
        %s245 = scalar_lea.vmem %s3, %s244
        %v246 = vld [vmem:[%s240] sm:$0xff]
        %v247 = vld [vmem:[%s240 + $0x8] sm:$0xff]
        %v248 = vld [vmem:[%s240 + $0x18] sm:$0xff]
        %v249 = vld [vmem:[%s240 + $0x20] sm:$0xff]
        %v250 = vld [vmem:[%s240 + $0x30] sm:$0xff]
        %v251 = vld [vmem:[%s240 + $0x38] sm:$0xff]
        %v252 = vld [vmem:[%s240 + $0x48] sm:$0xff]
        %v253 = vld [vmem:[%s240 + $0x50] sm:$0xff]
        %v254 = vld [vmem:[%s240 + $0x60] sm:$0xff]
        %v255 = vld [vmem:[%s240 + $0x68] sm:$0xff]
        %v256 = vld [vmem:[%s240 + $0x78] sm:$0xff]
        %v257 = vld [vmem:[%s240 + $0x80] sm:$0xff]
        %v258 = vld [vmem:[%s240 + $0x90] sm:$0xff]
        %v259 = vld [vmem:[%s240 + $0x98] sm:$0xff]
        %v260 = vld [vmem:[%s240 + $0xa8] sm:$0xff]
        %v261 = vld [vmem:[%s240 + $0xb0] sm:$0xff]
        %v262 = vld [vmem:[%s240 + $0xc0] sm:$0xff]
        %v263 = vld [vmem:[%s240 + $0xc8] sm:$0xff]
        %v264 = vld [vmem:[%s240 + $0xd8] sm:$0xff]
        %v265 = vld [vmem:[%s240 + $0xe0] sm:$0xff]
        %v266 = vld [vmem:[%s240 + $0xf0] sm:$0xff]
        %v267 = vld [vmem:[%s240 + $0xf8] sm:$0xff]
        %v268 = vld [vmem:[%s240 + $0x108] sm:$0xff]
        %v269 = vld [vmem:[%s240 + $0x110] sm:$0xff]
        %v270 = vld [vmem:[%s240 + $0x120] sm:$0xff]
        %v271 = vld [vmem:[%s240 + $0x128] sm:$0xff]
        %v272 = vld [vmem:[%s240 + $0x138] sm:$0xff]
        %v273 = vld [vmem:[%s240 + $0x140] sm:$0xff]
        %v274 = vld [vmem:[%s240 + $0x150] sm:$0xff]
        %v275 = vld [vmem:[%s240 + $0x158] sm:$0xff]
        %v276 = vld [vmem:[%s240 + $0x168] sm:$0xff]
        %v277 = vld [vmem:[%s240 + $0x170] sm:$0xff]
        %v278 = vld [vmem:[%s1] sm:$0x1]
        %v279 = vlaneseq
        %v280 = vshrl.u32 %v279, 7
        %v281 = vsub.s32 0, %v280
        %v282 = vrot.slane %v278, %v281
        %v283 = vmul.f32 %v246, %v282
        %v284 = vmul.f32 %v247, %v282
        %v285 = vmul.f32 %v248, %v282
        %v286 = vmul.f32 %v249, %v282
        %v287 = vmul.f32 %v250, %v282
        %v288 = vmul.f32 %v251, %v282
        %v289 = vmul.f32 %v252, %v282
        %v290 = vmul.f32 %v253, %v282
        %v291 = vmul.f32 %v254, %v282
        %v292 = vmul.f32 %v255, %v282
        %v293 = vmul.f32 %v256, %v282
        %v294 = vmul.f32 %v257, %v282
        %v295 = vmul.f32 %v258, %v282
        %v296 = vmul.f32 %v259, %v282
        %v297 = vmul.f32 %v260, %v282
        %v298 = vmul.f32 %v261, %v282
        %v299 = vmul.f32 %v262, %v282
        %v300 = vmul.f32 %v263, %v282
        %v301 = vmul.f32 %v264, %v282
        %v302 = vmul.f32 %v265, %v282
        %v303 = vmul.f32 %v266, %v282
        %v304 = vmul.f32 %v267, %v282
        %v305 = vmul.f32 %v268, %v282
        %v306 = vmul.f32 %v269, %v282
        %v307 = vmul.f32 %v270, %v282
        %v308 = vmul.f32 %v271, %v282
        %v309 = vmul.f32 %v272, %v282
        %v310 = vmul.f32 %v273, %v282
        %v311 = vmul.f32 %v274, %v282
        %v312 = vmul.f32 %v275, %v282
        %v313 = vmul.f32 %v276, %v282
        %v314 = vmul.f32 %v277, %v282
        %v315 = vadd.f32 %v283, 0.0
        %v316 = vadd.f32 %v284, 0.0
        %v317 = vadd.f32 %v285, 0.0
        %v318 = vadd.f32 %v286, 0.0
        %v319 = vadd.f32 %v287, 0.0
        %v320 = vadd.f32 %v288, 0.0
        %v321 = vadd.f32 %v289, 0.0
        %v322 = vadd.f32 %v290, 0.0
        %v323 = vadd.f32 %v291, 0.0
        %v324 = vadd.f32 %v292, 0.0
        %v325 = vadd.f32 %v293, 0.0
        %v326 = vadd.f32 %v294, 0.0
        %v327 = vadd.f32 %v295, 0.0
        %v328 = vadd.f32 %v296, 0.0
        %v329 = vadd.f32 %v297, 0.0
        %v330 = vadd.f32 %v298, 0.0
        %v331 = vadd.f32 %v299, 0.0
        %v332 = vadd.f32 %v300, 0.0
        %v333 = vadd.f32 %v301, 0.0
        %v334 = vadd.f32 %v302, 0.0
        %v335 = vadd.f32 %v303, 0.0
        %v336 = vadd.f32 %v304, 0.0
        %v337 = vadd.f32 %v305, 0.0
        %v338 = vadd.f32 %v306, 0.0
        %v339 = vadd.f32 %v307, 0.0
        %v340 = vadd.f32 %v308, 0.0
        %v341 = vadd.f32 %v309, 0.0
        %v342 = vadd.f32 %v310, 0.0
        %v343 = vadd.f32 %v311, 0.0
        %v344 = vadd.f32 %v312, 0.0
        %v345 = vadd.f32 %v313, 0.0
        %v346 = vadd.f32 %v314, 0.0
        %v347 = vld [vmem:[%s240 + $0x1] sm:$0xff]
        %v348 = vld [vmem:[%s240 + $0x9] sm:$0xff]
        %v349 = vld [vmem:[%s240 + $0x19] sm:$0xff]
        %v350 = vld [vmem:[%s240 + $0x21] sm:$0xff]
        %v351 = vld [vmem:[%s240 + $0x31] sm:$0xff]
        %v352 = vld [vmem:[%s240 + $0x39] sm:$0xff]
        %v353 = vld [vmem:[%s240 + $0x49] sm:$0xff]
        %v354 = vld [vmem:[%s240 + $0x51] sm:$0xff]
        %v355 = vld [vmem:[%s240 + $0x61] sm:$0xff]
        %v356 = vld [vmem:[%s240 + $0x69] sm:$0xff]
        %v357 = vld [vmem:[%s240 + $0x79] sm:$0xff]
        %v358 = vld [vmem:[%s240 + $0x81] sm:$0xff]
        %v359 = vld [vmem:[%s240 + $0x91] sm:$0xff]
        %v360 = vld [vmem:[%s240 + $0x99] sm:$0xff]
        %v361 = vld [vmem:[%s240 + $0xa9] sm:$0xff]
        %v362 = vld [vmem:[%s240 + $0xb1] sm:$0xff]
        %v363 = vld [vmem:[%s240 + $0xc1] sm:$0xff]
        %v364 = vld [vmem:[%s240 + $0xc9] sm:$0xff]
        %v365 = vld [vmem:[%s240 + $0xd9] sm:$0xff]
        %v366 = vld [vmem:[%s240 + $0xe1] sm:$0xff]
        %v367 = vld [vmem:[%s240 + $0xf1] sm:$0xff]
        %v368 = vld [vmem:[%s240 + $0xf9] sm:$0xff]
        %v369 = vld [vmem:[%s240 + $0x109] sm:$0xff]
        %v370 = vld [vmem:[%s240 + $0x111] sm:$0xff]
        %v371 = vld [vmem:[%s240 + $0x121] sm:$0xff]
        %v372 = vld [vmem:[%s240 + $0x129] sm:$0xff]
        %v373 = vld [vmem:[%s240 + $0x139] sm:$0xff]
        %v374 = vld [vmem:[%s240 + $0x141] sm:$0xff]
        %v375 = vld [vmem:[%s240 + $0x151] sm:$0xff]
        %v376 = vld [vmem:[%s240 + $0x159] sm:$0xff]
        %v377 = vld [vmem:[%s240 + $0x169] sm:$0xff]
        %v378 = vld [vmem:[%s240 + $0x171] sm:$0xff]
        %v379 = vld [vmem:[%s1 + $0x1] sm:$0x1]
        %v380 = vlaneseq
        %v381 = vshrl.u32 %v380, 7
        %v382 = vsub.s32 0, %v381
        %v383 = vrot.slane %v379, %v382
        %v384 = vmul.f32 %v347, %v383
        %v385 = vmul.f32 %v348, %v383
        %v386 = vmul.f32 %v349, %v383
        %v387 = vmul.f32 %v350, %v383
        %v388 = vmul.f32 %v351, %v383
        %v389 = vmul.f32 %v352, %v383
        %v390 = vmul.f32 %v353, %v383
        %v391 = vmul.f32 %v354, %v383
        %v392 = vmul.f32 %v355, %v383
        %v393 = vmul.f32 %v356, %v383
        %v394 = vmul.f32 %v357, %v383
        %v395 = vmul.f32 %v358, %v383
        %v396 = vmul.f32 %v359, %v383
        %v397 = vmul.f32 %v360, %v383
        %v398 = vmul.f32 %v361, %v383
        %v399 = vmul.f32 %v362, %v383
        %v400 = vmul.f32 %v363, %v383
        %v401 = vmul.f32 %v364, %v383
        %v402 = vmul.f32 %v365, %v383
        %v403 = vmul.f32 %v366, %v383
        %v404 = vmul.f32 %v367, %v383
        %v405 = vmul.f32 %v368, %v383
        %v406 = vmul.f32 %v369, %v383
        %v407 = vmul.f32 %v370, %v383
        %v408 = vmul.f32 %v371, %v383
        %v409 = vmul.f32 %v372, %v383
        %v410 = vmul.f32 %v373, %v383
        %v411 = vmul.f32 %v374, %v383
        %v412 = vmul.f32 %v375, %v383
        %v413 = vmul.f32 %v376, %v383
        %v414 = vmul.f32 %v377, %v383
        %v415 = vmul.f32 %v378, %v383
        %v416 = vadd.f32 %v315, %v384
        %v417 = vadd.f32 %v316, %v385
        %v418 = vadd.f32 %v317, %v386
        %v419 = vadd.f32 %v318, %v387
        %v420 = vadd.f32 %v319, %v388
        %v421 = vadd.f32 %v320, %v389
        %v422 = vadd.f32 %v321, %v390
        %v423 = vadd.f32 %v322, %v391
        %v424 = vadd.f32 %v323, %v392
        %v425 = vadd.f32 %v324, %v393
        %v426 = vadd.f32 %v325, %v394
        %v427 = vadd.f32 %v326, %v395
        %v428 = vadd.f32 %v327, %v396
        %v429 = vadd.f32 %v328, %v397
        %v430 = vadd.f32 %v329, %v398
        %v431 = vadd.f32 %v330, %v399
        %v432 = vadd.f32 %v331, %v400
        %v433 = vadd.f32 %v332, %v401
        %v434 = vadd.f32 %v333, %v402
        %v435 = vadd.f32 %v334, %v403
        %v436 = vadd.f32 %v335, %v404
        %v437 = vadd.f32 %v336, %v405
        %v438 = vadd.f32 %v337, %v406
        %v439 = vadd.f32 %v338, %v407
        %v440 = vadd.f32 %v339, %v408
        %v441 = vadd.f32 %v340, %v409
        %v442 = vadd.f32 %v341, %v410
        %v443 = vadd.f32 %v342, %v411
        %v444 = vadd.f32 %v343, %v412
        %v445 = vadd.f32 %v344, %v413
        %v446 = vadd.f32 %v345, %v414
        %v447 = vadd.f32 %v346, %v415
        %v448 = vld [vmem:[%s240 + $0x2] sm:$0xff]
        %v449 = vld [vmem:[%s240 + $0xa] sm:$0xff]
        %v450 = vld [vmem:[%s240 + $0x1a] sm:$0xff]
        %v451 = vld [vmem:[%s240 + $0x22] sm:$0xff]
        %v452 = vld [vmem:[%s240 + $0x32] sm:$0xff]
        %v453 = vld [vmem:[%s240 + $0x3a] sm:$0xff]
        %v454 = vld [vmem:[%s240 + $0x4a] sm:$0xff]
        %v455 = vld [vmem:[%s240 + $0x52] sm:$0xff]
        %v456 = vld [vmem:[%s240 + $0x62] sm:$0xff]
        %v457 = vld [vmem:[%s240 + $0x6a] sm:$0xff]
        %v458 = vld [vmem:[%s240 + $0x7a] sm:$0xff]
        %v459 = vld [vmem:[%s240 + $0x82] sm:$0xff]
        %v460 = vld [vmem:[%s240 + $0x92] sm:$0xff]
        %v461 = vld [vmem:[%s240 + $0x9a] sm:$0xff]
        %v462 = vld [vmem:[%s240 + $0xaa] sm:$0xff]
        %v463 = vld [vmem:[%s240 + $0xb2] sm:$0xff]
        %v464 = vld [vmem:[%s240 + $0xc2] sm:$0xff]
        %v465 = vld [vmem:[%s240 + $0xca] sm:$0xff]
        %v466 = vld [vmem:[%s240 + $0xda] sm:$0xff]
        %v467 = vld [vmem:[%s240 + $0xe2] sm:$0xff]
        %v468 = vld [vmem:[%s240 + $0xf2] sm:$0xff]
        %v469 = vld [vmem:[%s240 + $0xfa] sm:$0xff]
        %v470 = vld [vmem:[%s240 + $0x10a] sm:$0xff]
        %v471 = vld [vmem:[%s240 + $0x112] sm:$0xff]
        %v472 = vld [vmem:[%s240 + $0x122] sm:$0xff]
        %v473 = vld [vmem:[%s240 + $0x12a] sm:$0xff]
        %v474 = vld [vmem:[%s240 + $0x13a] sm:$0xff]
        %v475 = vld [vmem:[%s240 + $0x142] sm:$0xff]
        %v476 = vld [vmem:[%s240 + $0x152] sm:$0xff]
        %v477 = vld [vmem:[%s240 + $0x15a] sm:$0xff]
        %v478 = vld [vmem:[%s240 + $0x16a] sm:$0xff]
        %v479 = vld [vmem:[%s240 + $0x172] sm:$0xff]
        %v480 = vld [vmem:[%s1 + $0x2] sm:$0x1]
        %v481 = vlaneseq
        %v482 = vshrl.u32 %v481, 7
        %v483 = vsub.s32 0, %v482
        %v484 = vrot.slane %v480, %v483
        %v485 = vmul.f32 %v448, %v484
        %v486 = vmul.f32 %v449, %v484
        %v487 = vmul.f32 %v450, %v484
        %v488 = vmul.f32 %v451, %v484
        %v489 = vmul.f32 %v452, %v484
        %v490 = vmul.f32 %v453, %v484
        %v491 = vmul.f32 %v454, %v484
        %v492 = vmul.f32 %v455, %v484
        %v493 = vmul.f32 %v456, %v484
        %v494 = vmul.f32 %v457, %v484
        %v495 = vmul.f32 %v458, %v484
        %v496 = vmul.f32 %v459, %v484
        %v497 = vmul.f32 %v460, %v484
        %v498 = vmul.f32 %v461, %v484
        %v499 = vmul.f32 %v462, %v484
        %v500 = vmul.f32 %v463, %v484
        %v501 = vmul.f32 %v464, %v484
        %v502 = vmul.f32 %v465, %v484
        %v503 = vmul.f32 %v466, %v484
        %v504 = vmul.f32 %v467, %v484
        %v505 = vmul.f32 %v468, %v484
        %v506 = vmul.f32 %v469, %v484
        %v507 = vmul.f32 %v470, %v484
        %v508 = vmul.f32 %v471, %v484
        %v509 = vmul.f32 %v472, %v484
        %v510 = vmul.f32 %v473, %v484
        %v511 = vmul.f32 %v474, %v484
        %v512 = vmul.f32 %v475, %v484
        %v513 = vmul.f32 %v476, %v484
        %v514 = vmul.f32 %v477, %v484
        %v515 = vmul.f32 %v478, %v484
        %v516 = vmul.f32 %v479, %v484
        %v517 = vadd.f32 %v416, %v485
        %v518 = vadd.f32 %v417, %v486
        %v519 = vadd.f32 %v418, %v487
        %v520 = vadd.f32 %v419, %v488
        %v521 = vadd.f32 %v420, %v489
        %v522 = vadd.f32 %v421, %v490
        %v523 = vadd.f32 %v422, %v491
        %v524 = vadd.f32 %v423, %v492
        %v525 = vadd.f32 %v424, %v493
        %v526 = vadd.f32 %v425, %v494
        %v527 = vadd.f32 %v426, %v495
        %v528 = vadd.f32 %v427, %v496
        %v529 = vadd.f32 %v428, %v497
        %v530 = vadd.f32 %v429, %v498
        %v531 = vadd.f32 %v430, %v499
        %v532 = vadd.f32 %v431, %v500
        %v533 = vadd.f32 %v432, %v501
        %v534 = vadd.f32 %v433, %v502
        %v535 = vadd.f32 %v434, %v503
        %v536 = vadd.f32 %v435, %v504
        %v537 = vadd.f32 %v436, %v505
        %v538 = vadd.f32 %v437, %v506
        %v539 = vadd.f32 %v438, %v507
        %v540 = vadd.f32 %v439, %v508
        %v541 = vadd.f32 %v440, %v509
        %v542 = vadd.f32 %v441, %v510
        %v543 = vadd.f32 %v442, %v511
        %v544 = vadd.f32 %v443, %v512
        %v545 = vadd.f32 %v444, %v513
        %v546 = vadd.f32 %v445, %v514
        %v547 = vadd.f32 %v446, %v515
        %v548 = vadd.f32 %v447, %v516
        %s549 = scalar_lea.vmem %s240, 24
        %v550 = vld [vmem:[%s549] sm:$0xff]
        %v551 = vld [vmem:[%s549 + $0x8] sm:$0xff]
        %v552 = vld [vmem:[%s549 + $0x18] sm:$0xff]
        %v553 = vld [vmem:[%s549 + $0x20] sm:$0xff]
        %v554 = vld [vmem:[%s549 + $0x30] sm:$0xff]
        %v555 = vld [vmem:[%s549 + $0x38] sm:$0xff]
        %v556 = vld [vmem:[%s549 + $0x48] sm:$0xff]
        %v557 = vld [vmem:[%s549 + $0x50] sm:$0xff]
        %v558 = vld [vmem:[%s549 + $0x60] sm:$0xff]
        %v559 = vld [vmem:[%s549 + $0x68] sm:$0xff]
        %v560 = vld [vmem:[%s549 + $0x78] sm:$0xff]
        %v561 = vld [vmem:[%s549 + $0x80] sm:$0xff]
        %v562 = vld [vmem:[%s549 + $0x90] sm:$0xff]
        %v563 = vld [vmem:[%s549 + $0x98] sm:$0xff]
        %v564 = vld [vmem:[%s549 + $0xa8] sm:$0xff]
        %v565 = vld [vmem:[%s549 + $0xb0] sm:$0xff]
        %v566 = vld [vmem:[%s549 + $0xc0] sm:$0xff]
        %v567 = vld [vmem:[%s549 + $0xc8] sm:$0xff]
        %v568 = vld [vmem:[%s549 + $0xd8] sm:$0xff]
        %v569 = vld [vmem:[%s549 + $0xe0] sm:$0xff]
        %v570 = vld [vmem:[%s549 + $0xf0] sm:$0xff]
        %v571 = vld [vmem:[%s549 + $0xf8] sm:$0xff]
        %v572 = vld [vmem:[%s549 + $0x108] sm:$0xff]
        %v573 = vld [vmem:[%s549 + $0x110] sm:$0xff]
        %v574 = vld [vmem:[%s549 + $0x120] sm:$0xff]
        %v575 = vld [vmem:[%s549 + $0x128] sm:$0xff]
        %v576 = vld [vmem:[%s549 + $0x138] sm:$0xff]
        %v577 = vld [vmem:[%s549 + $0x140] sm:$0xff]
        %v578 = vld [vmem:[%s549 + $0x150] sm:$0xff]
        %v579 = vld [vmem:[%s549 + $0x158] sm:$0xff]
        %v580 = vld [vmem:[%s549 + $0x168] sm:$0xff]
        %v581 = vld [vmem:[%s549 + $0x170] sm:$0xff]
        %v582 = vld [vmem:[%s1 + $0x3] sm:$0x1]
        %v583 = vlaneseq
        %v584 = vshrl.u32 %v583, 7
        %v585 = vsub.s32 0, %v584
        %v586 = vrot.slane %v582, %v585
        %v587 = vmul.f32 %v550, %v586
        %v588 = vmul.f32 %v551, %v586
        %v589 = vmul.f32 %v552, %v586
        %v590 = vmul.f32 %v553, %v586
        %v591 = vmul.f32 %v554, %v586
        %v592 = vmul.f32 %v555, %v586
        %v593 = vmul.f32 %v556, %v586
        %v594 = vmul.f32 %v557, %v586
        %v595 = vmul.f32 %v558, %v586
        %v596 = vmul.f32 %v559, %v586
        %v597 = vmul.f32 %v560, %v586
        %v598 = vmul.f32 %v561, %v586
        %v599 = vmul.f32 %v562, %v586
        %v600 = vmul.f32 %v563, %v586
        %v601 = vmul.f32 %v564, %v586
        %v602 = vmul.f32 %v565, %v586
        %v603 = vmul.f32 %v566, %v586
        %v604 = vmul.f32 %v567, %v586
        %v605 = vmul.f32 %v568, %v586
        %v606 = vmul.f32 %v569, %v586
        %v607 = vmul.f32 %v570, %v586
        %v608 = vmul.f32 %v571, %v586
        %v609 = vmul.f32 %v572, %v586
        %v610 = vmul.f32 %v573, %v586
        %v611 = vmul.f32 %v574, %v586
        %v612 = vmul.f32 %v575, %v586
        %v613 = vmul.f32 %v576, %v586
        %v614 = vmul.f32 %v577, %v586
        %v615 = vmul.f32 %v578, %v586
        %v616 = vmul.f32 %v579, %v586
        %v617 = vmul.f32 %v580, %v586
        %v618 = vmul.f32 %v581, %v586
        %v619 = vadd.f32 %v517, %v587
        %v620 = vadd.f32 %v518, %v588
        %v621 = vadd.f32 %v519, %v589
        %v622 = vadd.f32 %v520, %v590
        %v623 = vadd.f32 %v521, %v591
        %v624 = vadd.f32 %v522, %v592
        %v625 = vadd.f32 %v523, %v593
        %v626 = vadd.f32 %v524, %v594
        %v627 = vadd.f32 %v525, %v595
        %v628 = vadd.f32 %v526, %v596
        %v629 = vadd.f32 %v527, %v597
        %v630 = vadd.f32 %v528, %v598
        %v631 = vadd.f32 %v529, %v599
        %v632 = vadd.f32 %v530, %v600
        %v633 = vadd.f32 %v531, %v601
        %v634 = vadd.f32 %v532, %v602
        %v635 = vadd.f32 %v533, %v603
        %v636 = vadd.f32 %v534, %v604
        %v637 = vadd.f32 %v535, %v605
        %v638 = vadd.f32 %v536, %v606
        %v639 = vadd.f32 %v537, %v607
        %v640 = vadd.f32 %v538, %v608
        %v641 = vadd.f32 %v539, %v609
        %v642 = vadd.f32 %v540, %v610
        %v643 = vadd.f32 %v541, %v611
        %v644 = vadd.f32 %v542, %v612
        %v645 = vadd.f32 %v543, %v613
        %v646 = vadd.f32 %v544, %v614
        %v647 = vadd.f32 %v545, %v615
        %v648 = vadd.f32 %v546, %v616
        %v649 = vadd.f32 %v547, %v617
        %v650 = vadd.f32 %v548, %v618
        %v651 = vld [vmem:[%s549 + $0x1] sm:$0xff]
        %v652 = vld [vmem:[%s549 + $0x9] sm:$0xff]
        %v653 = vld [vmem:[%s549 + $0x19] sm:$0xff]
        %v654 = vld [vmem:[%s549 + $0x21] sm:$0xff]
        %v655 = vld [vmem:[%s549 + $0x31] sm:$0xff]
        %v656 = vld [vmem:[%s549 + $0x39] sm:$0xff]
        %v657 = vld [vmem:[%s549 + $0x49] sm:$0xff]
        %v658 = vld [vmem:[%s549 + $0x51] sm:$0xff]
        %v659 = vld [vmem:[%s549 + $0x61] sm:$0xff]
        %v660 = vld [vmem:[%s549 + $0x69] sm:$0xff]
        %v661 = vld [vmem:[%s549 + $0x79] sm:$0xff]
        %v662 = vld [vmem:[%s549 + $0x81] sm:$0xff]
        %v663 = vld [vmem:[%s549 + $0x91] sm:$0xff]
        %v664 = vld [vmem:[%s549 + $0x99] sm:$0xff]
        %v665 = vld [vmem:[%s549 + $0xa9] sm:$0xff]
        %v666 = vld [vmem:[%s549 + $0xb1] sm:$0xff]
        %v667 = vld [vmem:[%s549 + $0xc1] sm:$0xff]
        %v668 = vld [vmem:[%s549 + $0xc9] sm:$0xff]
        %v669 = vld [vmem:[%s549 + $0xd9] sm:$0xff]
        %v670 = vld [vmem:[%s549 + $0xe1] sm:$0xff]
        %v671 = vld [vmem:[%s549 + $0xf1] sm:$0xff]
        %v672 = vld [vmem:[%s549 + $0xf9] sm:$0xff]
        %v673 = vld [vmem:[%s549 + $0x109] sm:$0xff]
        %v674 = vld [vmem:[%s549 + $0x111] sm:$0xff]
        %v675 = vld [vmem:[%s549 + $0x121] sm:$0xff]
        %v676 = vld [vmem:[%s549 + $0x129] sm:$0xff]
        %v677 = vld [vmem:[%s549 + $0x139] sm:$0xff]
        %v678 = vld [vmem:[%s549 + $0x141] sm:$0xff]
        %v679 = vld [vmem:[%s549 + $0x151] sm:$0xff]
        %v680 = vld [vmem:[%s549 + $0x159] sm:$0xff]
        %v681 = vld [vmem:[%s549 + $0x169] sm:$0xff]
        %v682 = vld [vmem:[%s549 + $0x171] sm:$0xff]
        %v683 = vld [vmem:[%s1 + $0x4] sm:$0x1]
        %v684 = vlaneseq
        %v685 = vshrl.u32 %v684, 7
        %v686 = vsub.s32 0, %v685
        %v687 = vrot.slane %v683, %v686
        %v688 = vmul.f32 %v651, %v687
        %v689 = vmul.f32 %v652, %v687
        %v690 = vmul.f32 %v653, %v687
        %v691 = vmul.f32 %v654, %v687
        %v692 = vmul.f32 %v655, %v687
        %v693 = vmul.f32 %v656, %v687
        %v694 = vmul.f32 %v657, %v687
        %v695 = vmul.f32 %v658, %v687
        %v696 = vmul.f32 %v659, %v687
        %v697 = vmul.f32 %v660, %v687
        %v698 = vmul.f32 %v661, %v687
        %v699 = vmul.f32 %v662, %v687
        %v700 = vmul.f32 %v663, %v687
        %v701 = vmul.f32 %v664, %v687
        %v702 = vmul.f32 %v665, %v687
        %v703 = vmul.f32 %v666, %v687
        %v704 = vmul.f32 %v667, %v687
        %v705 = vmul.f32 %v668, %v687
        %v706 = vmul.f32 %v669, %v687
        %v707 = vmul.f32 %v670, %v687
        %v708 = vmul.f32 %v671, %v687
        %v709 = vmul.f32 %v672, %v687
        %v710 = vmul.f32 %v673, %v687
        %v711 = vmul.f32 %v674, %v687
        %v712 = vmul.f32 %v675, %v687
        %v713 = vmul.f32 %v676, %v687
        %v714 = vmul.f32 %v677, %v687
        %v715 = vmul.f32 %v678, %v687
        %v716 = vmul.f32 %v679, %v687
        %v717 = vmul.f32 %v680, %v687
        %v718 = vmul.f32 %v681, %v687
        %v719 = vmul.f32 %v682, %v687
        %v720 = vadd.f32 %v619, %v688
        %v721 = vadd.f32 %v620, %v689
        %v722 = vadd.f32 %v621, %v690
        %v723 = vadd.f32 %v622, %v691
        %v724 = vadd.f32 %v623, %v692
        %v725 = vadd.f32 %v624, %v693
        %v726 = vadd.f32 %v625, %v694
        %v727 = vadd.f32 %v626, %v695
        %v728 = vadd.f32 %v627, %v696
        %v729 = vadd.f32 %v628, %v697
        %v730 = vadd.f32 %v629, %v698
        %v731 = vadd.f32 %v630, %v699
        %v732 = vadd.f32 %v631, %v700
        %v733 = vadd.f32 %v632, %v701
        %v734 = vadd.f32 %v633, %v702
        %v735 = vadd.f32 %v634, %v703
        %v736 = vadd.f32 %v635, %v704
        %v737 = vadd.f32 %v636, %v705
        %v738 = vadd.f32 %v637, %v706
        %v739 = vadd.f32 %v638, %v707
        %v740 = vadd.f32 %v639, %v708
        %v741 = vadd.f32 %v640, %v709
        %v742 = vadd.f32 %v641, %v710
        %v743 = vadd.f32 %v642, %v711
        %v744 = vadd.f32 %v643, %v712
        %v745 = vadd.f32 %v644, %v713
        %v746 = vadd.f32 %v645, %v714
        %v747 = vadd.f32 %v646, %v715
        %v748 = vadd.f32 %v647, %v716
        %v749 = vadd.f32 %v648, %v717
        %v750 = vadd.f32 %v649, %v718
        %v751 = vadd.f32 %v650, %v719
        %v752 = vld [vmem:[%s549 + $0x2] sm:$0xff]
        %v753 = vld [vmem:[%s549 + $0xa] sm:$0xff]
        %v754 = vld [vmem:[%s549 + $0x1a] sm:$0xff]
        %v755 = vld [vmem:[%s549 + $0x22] sm:$0xff]
        %v756 = vld [vmem:[%s549 + $0x32] sm:$0xff]
        %v757 = vld [vmem:[%s549 + $0x3a] sm:$0xff]
        %v758 = vld [vmem:[%s549 + $0x4a] sm:$0xff]
        %v759 = vld [vmem:[%s549 + $0x52] sm:$0xff]
        %v760 = vld [vmem:[%s549 + $0x62] sm:$0xff]
        %v761 = vld [vmem:[%s549 + $0x6a] sm:$0xff]
        %v762 = vld [vmem:[%s549 + $0x7a] sm:$0xff]
        %v763 = vld [vmem:[%s549 + $0x82] sm:$0xff]
        %v764 = vld [vmem:[%s549 + $0x92] sm:$0xff]
        %v765 = vld [vmem:[%s549 + $0x9a] sm:$0xff]
        %v766 = vld [vmem:[%s549 + $0xaa] sm:$0xff]
        %v767 = vld [vmem:[%s549 + $0xb2] sm:$0xff]
        %v768 = vld [vmem:[%s549 + $0xc2] sm:$0xff]
        %v769 = vld [vmem:[%s549 + $0xca] sm:$0xff]
        %v770 = vld [vmem:[%s549 + $0xda] sm:$0xff]
        %v771 = vld [vmem:[%s549 + $0xe2] sm:$0xff]
        %v772 = vld [vmem:[%s549 + $0xf2] sm:$0xff]
        %v773 = vld [vmem:[%s549 + $0xfa] sm:$0xff]
        %v774 = vld [vmem:[%s549 + $0x10a] sm:$0xff]
        %v775 = vld [vmem:[%s549 + $0x112] sm:$0xff]
        %v776 = vld [vmem:[%s549 + $0x122] sm:$0xff]
        %v777 = vld [vmem:[%s549 + $0x12a] sm:$0xff]
        %v778 = vld [vmem:[%s549 + $0x13a] sm:$0xff]
        %v779 = vld [vmem:[%s549 + $0x142] sm:$0xff]
        %v780 = vld [vmem:[%s549 + $0x152] sm:$0xff]
        %v781 = vld [vmem:[%s549 + $0x15a] sm:$0xff]
        %v782 = vld [vmem:[%s549 + $0x16a] sm:$0xff]
        %v783 = vld [vmem:[%s549 + $0x172] sm:$0xff]
        %v784 = vld [vmem:[%s1 + $0x5] sm:$0x1]
        %v785 = vlaneseq
        %v786 = vshrl.u32 %v785, 7
        %v787 = vsub.s32 0, %v786
        %v788 = vrot.slane %v784, %v787
        %v789 = vmul.f32 %v752, %v788
        %v790 = vmul.f32 %v753, %v788
        %v791 = vmul.f32 %v754, %v788
        %v792 = vmul.f32 %v755, %v788
        %v793 = vmul.f32 %v756, %v788
        %v794 = vmul.f32 %v757, %v788
        %v795 = vmul.f32 %v758, %v788
        %v796 = vmul.f32 %v759, %v788
        %v797 = vmul.f32 %v760, %v788
        %v798 = vmul.f32 %v761, %v788
        %v799 = vmul.f32 %v762, %v788
        %v800 = vmul.f32 %v763, %v788
        %v801 = vmul.f32 %v764, %v788
        %v802 = vmul.f32 %v765, %v788
        %v803 = vmul.f32 %v766, %v788
        %v804 = vmul.f32 %v767, %v788
        %v805 = vmul.f32 %v768, %v788
        %v806 = vmul.f32 %v769, %v788
        %v807 = vmul.f32 %v770, %v788
        %v808 = vmul.f32 %v771, %v788
        %v809 = vmul.f32 %v772, %v788
        %v810 = vmul.f32 %v773, %v788
        %v811 = vmul.f32 %v774, %v788
        %v812 = vmul.f32 %v775, %v788
        %v813 = vmul.f32 %v776, %v788
        %v814 = vmul.f32 %v777, %v788
        %v815 = vmul.f32 %v778, %v788
        %v816 = vmul.f32 %v779, %v788
        %v817 = vmul.f32 %v780, %v788
        %v818 = vmul.f32 %v781, %v788
        %v819 = vmul.f32 %v782, %v788
        %v820 = vmul.f32 %v783, %v788
        %v821 = vadd.f32 %v720, %v789
        %v822 = vadd.f32 %v721, %v790
        %v823 = vadd.f32 %v722, %v791
        %v824 = vadd.f32 %v723, %v792
        %v825 = vadd.f32 %v724, %v793
        %v826 = vadd.f32 %v725, %v794
        %v827 = vadd.f32 %v726, %v795
        %v828 = vadd.f32 %v727, %v796
        %v829 = vadd.f32 %v728, %v797
        %v830 = vadd.f32 %v729, %v798
        %v831 = vadd.f32 %v730, %v799
        %v832 = vadd.f32 %v731, %v800
        %v833 = vadd.f32 %v732, %v801
        %v834 = vadd.f32 %v733, %v802
        %v835 = vadd.f32 %v734, %v803
        %v836 = vadd.f32 %v735, %v804
        %v837 = vadd.f32 %v736, %v805
        %v838 = vadd.f32 %v737, %v806
        %v839 = vadd.f32 %v738, %v807
        %v840 = vadd.f32 %v739, %v808
        %v841 = vadd.f32 %v740, %v809
        %v842 = vadd.f32 %v741, %v810
        %v843 = vadd.f32 %v742, %v811
        %v844 = vadd.f32 %v743, %v812
        %v845 = vadd.f32 %v744, %v813
        %v846 = vadd.f32 %v745, %v814
        %v847 = vadd.f32 %v746, %v815
        %v848 = vadd.f32 %v747, %v816
        %v849 = vadd.f32 %v748, %v817
        %v850 = vadd.f32 %v749, %v818
        %v851 = vadd.f32 %v750, %v819
        %v852 = vadd.f32 %v751, %v820
        %s853 = scalar_lea.vmem %s240, 48
        %v854 = vld [vmem:[%s853] sm:$0xff]
        %v855 = vld [vmem:[%s853 + $0x8] sm:$0xff]
        %v856 = vld [vmem:[%s853 + $0x18] sm:$0xff]
        %v857 = vld [vmem:[%s853 + $0x20] sm:$0xff]
        %v858 = vld [vmem:[%s853 + $0x30] sm:$0xff]
        %v859 = vld [vmem:[%s853 + $0x38] sm:$0xff]
        %v860 = vld [vmem:[%s853 + $0x48] sm:$0xff]
        %v861 = vld [vmem:[%s853 + $0x50] sm:$0xff]
        %v862 = vld [vmem:[%s853 + $0x60] sm:$0xff]
        %v863 = vld [vmem:[%s853 + $0x68] sm:$0xff]
        %v864 = vld [vmem:[%s853 + $0x78] sm:$0xff]
        %v865 = vld [vmem:[%s853 + $0x80] sm:$0xff]
        %v866 = vld [vmem:[%s853 + $0x90] sm:$0xff]
        %v867 = vld [vmem:[%s853 + $0x98] sm:$0xff]
        %v868 = vld [vmem:[%s853 + $0xa8] sm:$0xff]
        %v869 = vld [vmem:[%s853 + $0xb0] sm:$0xff]
        %v870 = vld [vmem:[%s853 + $0xc0] sm:$0xff]
        %v871 = vld [vmem:[%s853 + $0xc8] sm:$0xff]
        %v872 = vld [vmem:[%s853 + $0xd8] sm:$0xff]
        %v873 = vld [vmem:[%s853 + $0xe0] sm:$0xff]
        %v874 = vld [vmem:[%s853 + $0xf0] sm:$0xff]
        %v875 = vld [vmem:[%s853 + $0xf8] sm:$0xff]
        %v876 = vld [vmem:[%s853 + $0x108] sm:$0xff]
        %v877 = vld [vmem:[%s853 + $0x110] sm:$0xff]
        %v878 = vld [vmem:[%s853 + $0x120] sm:$0xff]
        %v879 = vld [vmem:[%s853 + $0x128] sm:$0xff]
        %v880 = vld [vmem:[%s853 + $0x138] sm:$0xff]
        %v881 = vld [vmem:[%s853 + $0x140] sm:$0xff]
        %v882 = vld [vmem:[%s853 + $0x150] sm:$0xff]
        %v883 = vld [vmem:[%s853 + $0x158] sm:$0xff]
        %v884 = vld [vmem:[%s853 + $0x168] sm:$0xff]
        %v885 = vld [vmem:[%s853 + $0x170] sm:$0xff]
        %v886 = vld [vmem:[%s1 + $0x6] sm:$0x1]
        %v887 = vlaneseq
        %v888 = vshrl.u32 %v887, 7
        %v889 = vsub.s32 0, %v888
        %v890 = vrot.slane %v886, %v889
        %v891 = vmul.f32 %v854, %v890
        %v892 = vmul.f32 %v855, %v890
        %v893 = vmul.f32 %v856, %v890
        %v894 = vmul.f32 %v857, %v890
        %v895 = vmul.f32 %v858, %v890
        %v896 = vmul.f32 %v859, %v890
        %v897 = vmul.f32 %v860, %v890
        %v898 = vmul.f32 %v861, %v890
        %v899 = vmul.f32 %v862, %v890
        %v900 = vmul.f32 %v863, %v890
        %v901 = vmul.f32 %v864, %v890
        %v902 = vmul.f32 %v865, %v890
        %v903 = vmul.f32 %v866, %v890
        %v904 = vmul.f32 %v867, %v890
        %v905 = vmul.f32 %v868, %v890
        %v906 = vmul.f32 %v869, %v890
        %v907 = vmul.f32 %v870, %v890
        %v908 = vmul.f32 %v871, %v890
        %v909 = vmul.f32 %v872, %v890
        %v910 = vmul.f32 %v873, %v890
        %v911 = vmul.f32 %v874, %v890
        %v912 = vmul.f32 %v875, %v890
        %v913 = vmul.f32 %v876, %v890
        %v914 = vmul.f32 %v877, %v890
        %v915 = vmul.f32 %v878, %v890
        %v916 = vmul.f32 %v879, %v890
        %v917 = vmul.f32 %v880, %v890
        %v918 = vmul.f32 %v881, %v890
        %v919 = vmul.f32 %v882, %v890
        %v920 = vmul.f32 %v883, %v890
        %v921 = vmul.f32 %v884, %v890
        %v922 = vmul.f32 %v885, %v890
        %v923 = vadd.f32 %v821, %v891
        %v924 = vadd.f32 %v822, %v892
        %v925 = vadd.f32 %v823, %v893
        %v926 = vadd.f32 %v824, %v894
        %v927 = vadd.f32 %v825, %v895
        %v928 = vadd.f32 %v826, %v896
        %v929 = vadd.f32 %v827, %v897
        %v930 = vadd.f32 %v828, %v898
        %v931 = vadd.f32 %v829, %v899
        %v932 = vadd.f32 %v830, %v900
        %v933 = vadd.f32 %v831, %v901
        %v934 = vadd.f32 %v832, %v902
        %v935 = vadd.f32 %v833, %v903
        %v936 = vadd.f32 %v834, %v904
        %v937 = vadd.f32 %v835, %v905
        %v938 = vadd.f32 %v836, %v906
        %v939 = vadd.f32 %v837, %v907
        %v940 = vadd.f32 %v838, %v908
        %v941 = vadd.f32 %v839, %v909
        %v942 = vadd.f32 %v840, %v910
        %v943 = vadd.f32 %v841, %v911
        %v944 = vadd.f32 %v842, %v912
        %v945 = vadd.f32 %v843, %v913
        %v946 = vadd.f32 %v844, %v914
        %v947 = vadd.f32 %v845, %v915
        %v948 = vadd.f32 %v846, %v916
        %v949 = vadd.f32 %v847, %v917
        %v950 = vadd.f32 %v848, %v918
        %v951 = vadd.f32 %v849, %v919
        %v952 = vadd.f32 %v850, %v920
        %v953 = vadd.f32 %v851, %v921
        %v954 = vadd.f32 %v852, %v922
        %v955 = vld [vmem:[%s853 + $0x1] sm:$0xff]
        %v956 = vld [vmem:[%s853 + $0x9] sm:$0xff]
        %v957 = vld [vmem:[%s853 + $0x19] sm:$0xff]
        %v958 = vld [vmem:[%s853 + $0x21] sm:$0xff]
        %v959 = vld [vmem:[%s853 + $0x31] sm:$0xff]
        %v960 = vld [vmem:[%s853 + $0x39] sm:$0xff]
        %v961 = vld [vmem:[%s853 + $0x49] sm:$0xff]
        %v962 = vld [vmem:[%s853 + $0x51] sm:$0xff]
        %v963 = vld [vmem:[%s853 + $0x61] sm:$0xff]
        %v964 = vld [vmem:[%s853 + $0x69] sm:$0xff]
        %v965 = vld [vmem:[%s853 + $0x79] sm:$0xff]
        %v966 = vld [vmem:[%s853 + $0x81] sm:$0xff]
        %v967 = vld [vmem:[%s853 + $0x91] sm:$0xff]
        %v968 = vld [vmem:[%s853 + $0x99] sm:$0xff]
        %v969 = vld [vmem:[%s853 + $0xa9] sm:$0xff]
        %v970 = vld [vmem:[%s853 + $0xb1] sm:$0xff]
        %v971 = vld [vmem:[%s853 + $0xc1] sm:$0xff]
        %v972 = vld [vmem:[%s853 + $0xc9] sm:$0xff]
        %v973 = vld [vmem:[%s853 + $0xd9] sm:$0xff]
        %v974 = vld [vmem:[%s853 + $0xe1] sm:$0xff]
        %v975 = vld [vmem:[%s853 + $0xf1] sm:$0xff]
        %v976 = vld [vmem:[%s853 + $0xf9] sm:$0xff]
        %v977 = vld [vmem:[%s853 + $0x109] sm:$0xff]
        %v978 = vld [vmem:[%s853 + $0x111] sm:$0xff]
        %v979 = vld [vmem:[%s853 + $0x121] sm:$0xff]
        %v980 = vld [vmem:[%s853 + $0x129] sm:$0xff]
        %v981 = vld [vmem:[%s853 + $0x139] sm:$0xff]
        %v982 = vld [vmem:[%s853 + $0x141] sm:$0xff]
        %v983 = vld [vmem:[%s853 + $0x151] sm:$0xff]
        %v984 = vld [vmem:[%s853 + $0x159] sm:$0xff]
        %v985 = vld [vmem:[%s853 + $0x169] sm:$0xff]
        %v986 = vld [vmem:[%s853 + $0x171] sm:$0xff]
        %v987 = vld [vmem:[%s1 + $0x7] sm:$0x1]
        %v988 = vlaneseq
        %v989 = vshrl.u32 %v988, 7
        %v990 = vsub.s32 0, %v989
        %v991 = vrot.slane %v987, %v990
        %v992 = vmul.f32 %v955, %v991
        %v993 = vmul.f32 %v956, %v991
        %v994 = vmul.f32 %v957, %v991
        %v995 = vmul.f32 %v958, %v991
        %v996 = vmul.f32 %v959, %v991
        %v997 = vmul.f32 %v960, %v991
        %v998 = vmul.f32 %v961, %v991
        %v999 = vmul.f32 %v962, %v991
        %v1000 = vmul.f32 %v963, %v991
        %v1001 = vmul.f32 %v964, %v991
        %v1002 = vmul.f32 %v965, %v991
        %v1003 = vmul.f32 %v966, %v991
        %v1004 = vmul.f32 %v967, %v991
        %v1005 = vmul.f32 %v968, %v991
        %v1006 = vmul.f32 %v969, %v991
        %v1007 = vmul.f32 %v970, %v991
        %v1008 = vmul.f32 %v971, %v991
        %v1009 = vmul.f32 %v972, %v991
        %v1010 = vmul.f32 %v973, %v991
        %v1011 = vmul.f32 %v974, %v991
        %v1012 = vmul.f32 %v975, %v991
        %v1013 = vmul.f32 %v976, %v991
        %v1014 = vmul.f32 %v977, %v991
        %v1015 = vmul.f32 %v978, %v991
        %v1016 = vmul.f32 %v979, %v991
        %v1017 = vmul.f32 %v980, %v991
        %v1018 = vmul.f32 %v981, %v991
        %v1019 = vmul.f32 %v982, %v991
        %v1020 = vmul.f32 %v983, %v991
        %v1021 = vmul.f32 %v984, %v991
        %v1022 = vmul.f32 %v985, %v991
        %v1023 = vmul.f32 %v986, %v991
        %v1024 = vadd.f32 %v923, %v992
        %v1025 = vadd.f32 %v924, %v993
        %v1026 = vadd.f32 %v925, %v994
        %v1027 = vadd.f32 %v926, %v995
        %v1028 = vadd.f32 %v927, %v996
        %v1029 = vadd.f32 %v928, %v997
        %v1030 = vadd.f32 %v929, %v998
        %v1031 = vadd.f32 %v930, %v999
        %v1032 = vadd.f32 %v931, %v1000
        %v1033 = vadd.f32 %v932, %v1001
        %v1034 = vadd.f32 %v933, %v1002
        %v1035 = vadd.f32 %v934, %v1003
        %v1036 = vadd.f32 %v935, %v1004
        %v1037 = vadd.f32 %v936, %v1005
        %v1038 = vadd.f32 %v937, %v1006
        %v1039 = vadd.f32 %v938, %v1007
        %v1040 = vadd.f32 %v939, %v1008
        %v1041 = vadd.f32 %v940, %v1009
        %v1042 = vadd.f32 %v941, %v1010
        %v1043 = vadd.f32 %v942, %v1011
        %v1044 = vadd.f32 %v943, %v1012
        %v1045 = vadd.f32 %v944, %v1013
        %v1046 = vadd.f32 %v945, %v1014
        %v1047 = vadd.f32 %v946, %v1015
        %v1048 = vadd.f32 %v947, %v1016
        %v1049 = vadd.f32 %v948, %v1017
        %v1050 = vadd.f32 %v949, %v1018
        %v1051 = vadd.f32 %v950, %v1019
        %v1052 = vadd.f32 %v951, %v1020
        %v1053 = vadd.f32 %v952, %v1021
        %v1054 = vadd.f32 %v953, %v1022
        %v1055 = vadd.f32 %v954, %v1023
        %v1056 = vld [vmem:[%s853 + $0x2] sm:$0xff]
        %v1057 = vld [vmem:[%s853 + $0xa] sm:$0xff]
        %v1058 = vld [vmem:[%s853 + $0x1a] sm:$0xff]
        %v1059 = vld [vmem:[%s853 + $0x22] sm:$0xff]
        %v1060 = vld [vmem:[%s853 + $0x32] sm:$0xff]
        %v1061 = vld [vmem:[%s853 + $0x3a] sm:$0xff]
        %v1062 = vld [vmem:[%s853 + $0x4a] sm:$0xff]
        %v1063 = vld [vmem:[%s853 + $0x52] sm:$0xff]
        %v1064 = vld [vmem:[%s853 + $0x62] sm:$0xff]
        %v1065 = vld [vmem:[%s853 + $0x6a] sm:$0xff]
        %v1066 = vld [vmem:[%s853 + $0x7a] sm:$0xff]
        %v1067 = vld [vmem:[%s853 + $0x82] sm:$0xff]
        %v1068 = vld [vmem:[%s853 + $0x92] sm:$0xff]
        %v1069 = vld [vmem:[%s853 + $0x9a] sm:$0xff]
        %v1070 = vld [vmem:[%s853 + $0xaa] sm:$0xff]
        %v1071 = vld [vmem:[%s853 + $0xb2] sm:$0xff]
        %v1072 = vld [vmem:[%s853 + $0xc2] sm:$0xff]
        %v1073 = vld [vmem:[%s853 + $0xca] sm:$0xff]
        %v1074 = vld [vmem:[%s853 + $0xda] sm:$0xff]
        %v1075 = vld [vmem:[%s853 + $0xe2] sm:$0xff]
        %v1076 = vld [vmem:[%s853 + $0xf2] sm:$0xff]
        %v1077 = vld [vmem:[%s853 + $0xfa] sm:$0xff]
        %v1078 = vld [vmem:[%s853 + $0x10a] sm:$0xff]
        %v1079 = vld [vmem:[%s853 + $0x112] sm:$0xff]
        %v1080 = vld [vmem:[%s853 + $0x122] sm:$0xff]
        %v1081 = vld [vmem:[%s853 + $0x12a] sm:$0xff]
        %v1082 = vld [vmem:[%s853 + $0x13a] sm:$0xff]
        %v1083 = vld [vmem:[%s853 + $0x142] sm:$0xff]
        %v1084 = vld [vmem:[%s853 + $0x152] sm:$0xff]
        %v1085 = vld [vmem:[%s853 + $0x15a] sm:$0xff]
        %v1086 = vld [vmem:[%s853 + $0x16a] sm:$0xff]
        %v1087 = vld [vmem:[%s853 + $0x172] sm:$0xff]
        %v1088 = vld [vmem:[%s1 + $0x8] sm:$0x1]
        %v1089 = vlaneseq
        %v1090 = vshrl.u32 %v1089, 7
        %v1091 = vsub.s32 0, %v1090
        %v1092 = vrot.slane %v1088, %v1091
        %v1093 = vmul.f32 %v1056, %v1092
        %v1094 = vmul.f32 %v1057, %v1092
        %v1095 = vmul.f32 %v1058, %v1092
        %v1096 = vmul.f32 %v1059, %v1092
        %v1097 = vmul.f32 %v1060, %v1092
        %v1098 = vmul.f32 %v1061, %v1092
        %v1099 = vmul.f32 %v1062, %v1092
        %v1100 = vmul.f32 %v1063, %v1092
        %v1101 = vmul.f32 %v1064, %v1092
        %v1102 = vmul.f32 %v1065, %v1092
        %v1103 = vmul.f32 %v1066, %v1092
        %v1104 = vmul.f32 %v1067, %v1092
        %v1105 = vmul.f32 %v1068, %v1092
        %v1106 = vmul.f32 %v1069, %v1092
        %v1107 = vmul.f32 %v1070, %v1092
        %v1108 = vmul.f32 %v1071, %v1092
        %v1109 = vmul.f32 %v1072, %v1092
        %v1110 = vmul.f32 %v1073, %v1092
        %v1111 = vmul.f32 %v1074, %v1092
        %v1112 = vmul.f32 %v1075, %v1092
        %v1113 = vmul.f32 %v1076, %v1092
        %v1114 = vmul.f32 %v1077, %v1092
        %v1115 = vmul.f32 %v1078, %v1092
        %v1116 = vmul.f32 %v1079, %v1092
        %v1117 = vmul.f32 %v1080, %v1092
        %v1118 = vmul.f32 %v1081, %v1092
        %v1119 = vmul.f32 %v1082, %v1092
        %v1120 = vmul.f32 %v1083, %v1092
        %v1121 = vmul.f32 %v1084, %v1092
        %v1122 = vmul.f32 %v1085, %v1092
        %v1123 = vmul.f32 %v1086, %v1092
        %v1124 = vmul.f32 %v1087, %v1092
        %v1125 = vadd.f32 %v1024, %v1093
        %v1126 = vadd.f32 %v1025, %v1094
        %v1127 = vadd.f32 %v1026, %v1095
        %v1128 = vadd.f32 %v1027, %v1096
        %v1129 = vadd.f32 %v1028, %v1097
        %v1130 = vadd.f32 %v1029, %v1098
        %v1131 = vadd.f32 %v1030, %v1099
        %v1132 = vadd.f32 %v1031, %v1100
        %v1133 = vadd.f32 %v1032, %v1101
        %v1134 = vadd.f32 %v1033, %v1102
        %v1135 = vadd.f32 %v1034, %v1103
        %v1136 = vadd.f32 %v1035, %v1104
        %v1137 = vadd.f32 %v1036, %v1105
        %v1138 = vadd.f32 %v1037, %v1106
        %v1139 = vadd.f32 %v1038, %v1107
        %v1140 = vadd.f32 %v1039, %v1108
        %v1141 = vadd.f32 %v1040, %v1109
        %v1142 = vadd.f32 %v1041, %v1110
        %v1143 = vadd.f32 %v1042, %v1111
        %v1144 = vadd.f32 %v1043, %v1112
        %v1145 = vadd.f32 %v1044, %v1113
        %v1146 = vadd.f32 %v1045, %v1114
        %v1147 = vadd.f32 %v1046, %v1115
        %v1148 = vadd.f32 %v1047, %v1116
        %v1149 = vadd.f32 %v1048, %v1117
        %v1150 = vadd.f32 %v1049, %v1118
        %v1151 = vadd.f32 %v1050, %v1119
        %v1152 = vadd.f32 %v1051, %v1120
        %v1153 = vadd.f32 %v1052, %v1121
        %v1154 = vadd.f32 %v1053, %v1122
        %v1155 = vadd.f32 %v1054, %v1123
        %v1156 = vadd.f32 %v1055, %v1124
        %v1157 = vld [vmem:[%s2] sm:$0x1]
        %v1158 = vlaneseq
        %v1159 = vshrl.u32 %v1158, 7
        %v1160 = vsub.s32 0, %v1159
        %v1161 = vrot.slane %v1157, %v1160
        %v1162 = vadd.f32 %v1125, %v1161
        %v1163 = vadd.f32 %v1126, %v1161
        %v1164 = vadd.f32 %v1127, %v1161
        %v1165 = vadd.f32 %v1128, %v1161
        %v1166 = vadd.f32 %v1129, %v1161
        %v1167 = vadd.f32 %v1130, %v1161
        %v1168 = vadd.f32 %v1131, %v1161
        %v1169 = vadd.f32 %v1132, %v1161
        %v1170 = vadd.f32 %v1133, %v1161
        %v1171 = vadd.f32 %v1134, %v1161
        %v1172 = vadd.f32 %v1135, %v1161
        %v1173 = vadd.f32 %v1136, %v1161
        %v1174 = vadd.f32 %v1137, %v1161
        %v1175 = vadd.f32 %v1138, %v1161
        %v1176 = vadd.f32 %v1139, %v1161
        %v1177 = vadd.f32 %v1140, %v1161
        %v1178 = vadd.f32 %v1141, %v1161
        %v1179 = vadd.f32 %v1142, %v1161
        %v1180 = vadd.f32 %v1143, %v1161
        %v1181 = vadd.f32 %v1144, %v1161
        %v1182 = vadd.f32 %v1145, %v1161
        %v1183 = vadd.f32 %v1146, %v1161
        %v1184 = vadd.f32 %v1147, %v1161
        %v1185 = vadd.f32 %v1148, %v1161
        %v1186 = vadd.f32 %v1149, %v1161
        %v1187 = vadd.f32 %v1150, %v1161
        %v1188 = vadd.f32 %v1151, %v1161
        %v1189 = vadd.f32 %v1152, %v1161
        %v1190 = vadd.f32 %v1153, %v1161
        %v1191 = vadd.f32 %v1154, %v1161
        %v1192 = vadd.f32 %v1155, %v1161
        %v1193 = vadd.f32 %v1156, %v1161
        %vm1194 = vcmask 31744
        %1195 = vst.msk [vmem:[%s245] sm:$0xff] %vm1194, %v1162
        %1196 = vst.msk [vmem:[%s245 + $0x8] sm:$0xff] %vm1194, %v1163
        %1197 = vst.msk [vmem:[%s245 + $0x10] sm:$0xff] %vm1194, %v1164
        %1198 = vst.msk [vmem:[%s245 + $0x18] sm:$0xff] %vm1194, %v1165
        %1199 = vst.msk [vmem:[%s245 + $0x20] sm:$0xff] %vm1194, %v1166
        %1200 = vst.msk [vmem:[%s245 + $0x28] sm:$0xff] %vm1194, %v1167
        %1201 = vst.msk [vmem:[%s245 + $0x30] sm:$0xff] %vm1194, %v1168
        %1202 = vst.msk [vmem:[%s245 + $0x38] sm:$0xff] %vm1194, %v1169
        %1203 = vst.msk [vmem:[%s245 + $0x40] sm:$0xff] %vm1194, %v1170
        %1204 = vst.msk [vmem:[%s245 + $0x48] sm:$0xff] %vm1194, %v1171
        %1205 = vst.msk [vmem:[%s245 + $0x50] sm:$0xff] %vm1194, %v1172
        %1206 = vst.msk [vmem:[%s245 + $0x58] sm:$0xff] %vm1194, %v1173
        %1207 = vst.msk [vmem:[%s245 + $0x60] sm:$0xff] %vm1194, %v1174
        %1208 = vst.msk [vmem:[%s245 + $0x68] sm:$0xff] %vm1194, %v1175
        %1209 = vst.msk [vmem:[%s245 + $0x70] sm:$0xff] %vm1194, %v1176
        %1210 = vst.msk [vmem:[%s245 + $0x78] sm:$0xff] %vm1194, %v1177
        %1211 = vst.msk [vmem:[%s245 + $0x80] sm:$0xff] %vm1194, %v1178
        %1212 = vst.msk [vmem:[%s245 + $0x88] sm:$0xff] %vm1194, %v1179
        %1213 = vst.msk [vmem:[%s245 + $0x90] sm:$0xff] %vm1194, %v1180
        %1214 = vst.msk [vmem:[%s245 + $0x98] sm:$0xff] %vm1194, %v1181
        %1215 = vst.msk [vmem:[%s245 + $0xa0] sm:$0xff] %vm1194, %v1182
        %1216 = vst.msk [vmem:[%s245 + $0xa8] sm:$0xff] %vm1194, %v1183
        %1217 = vst.msk [vmem:[%s245 + $0xb0] sm:$0xff] %vm1194, %v1184
        %1218 = vst.msk [vmem:[%s245 + $0xb8] sm:$0xff] %vm1194, %v1185
        %1219 = vst.msk [vmem:[%s245 + $0xc0] sm:$0xff] %vm1194, %v1186
        %1220 = vst.msk [vmem:[%s245 + $0xc8] sm:$0xff] %vm1194, %v1187
        %1221 = vst.msk [vmem:[%s245 + $0xd0] sm:$0xff] %vm1194, %v1188
        %1222 = vst.msk [vmem:[%s245 + $0xd8] sm:$0xff] %vm1194, %v1189
        %1223 = vst.msk [vmem:[%s245 + $0xe0] sm:$0xff] %vm1194, %v1190
        %1224 = vst.msk [vmem:[%s245 + $0xe8] sm:$0xff] %vm1194, %v1191
        %1225 = vst.msk [vmem:[%s245 + $0xf0] sm:$0xff] %vm1194, %v1192
        %1226 = vst.msk [vmem:[%s245 + $0xf8] sm:$0xff] %vm1194, %v1193
        %v1227 = vsel %vm1194, %v1162, 0.0
        %v1228 = vsel %vm1194, %v1163, 0.0
        %v1229 = vadd.f32 %v1227, %v1228
        %v1230 = vsel %vm1194, %v1164, 0.0
        %v1231 = vadd.f32 %v1229, %v1230
        %v1232 = vsel %vm1194, %v1165, 0.0
        %v1233 = vadd.f32 %v1231, %v1232
        %v1234 = vsel %vm1194, %v1166, 0.0
        %v1235 = vadd.f32 %v1233, %v1234
        %v1236 = vsel %vm1194, %v1167, 0.0
        %v1237 = vadd.f32 %v1235, %v1236
        %v1238 = vsel %vm1194, %v1168, 0.0
        %v1239 = vadd.f32 %v1237, %v1238
        %v1240 = vsel %vm1194, %v1169, 0.0
        %v1241 = vadd.f32 %v1239, %v1240
        %v1242 = vsel %vm1194, %v1170, 0.0
        %v1243 = vadd.f32 %v1241, %v1242
        %v1244 = vsel %vm1194, %v1171, 0.0
        %v1245 = vadd.f32 %v1243, %v1244
        %v1246 = vsel %vm1194, %v1172, 0.0
        %v1247 = vadd.f32 %v1245, %v1246
        %v1248 = vsel %vm1194, %v1173, 0.0
        %v1249 = vadd.f32 %v1247, %v1248
        %v1250 = vsel %vm1194, %v1174, 0.0
        %v1251 = vadd.f32 %v1249, %v1250
        %v1252 = vsel %vm1194, %v1175, 0.0
        %v1253 = vadd.f32 %v1251, %v1252
        %v1254 = vsel %vm1194, %v1176, 0.0
        %v1255 = vadd.f32 %v1253, %v1254
        %v1256 = vsel %vm1194, %v1177, 0.0
        %v1257 = vadd.f32 %v1255, %v1256
        %v1258 = vsel %vm1194, %v1178, 0.0
        %v1259 = vadd.f32 %v1257, %v1258
        %v1260 = vsel %vm1194, %v1179, 0.0
        %v1261 = vadd.f32 %v1259, %v1260
        %v1262 = vsel %vm1194, %v1180, 0.0
        %v1263 = vadd.f32 %v1261, %v1262
        %v1264 = vsel %vm1194, %v1181, 0.0
        %v1265 = vadd.f32 %v1263, %v1264
        %v1266 = vsel %vm1194, %v1182, 0.0
        %v1267 = vadd.f32 %v1265, %v1266
        %v1268 = vsel %vm1194, %v1183, 0.0
        %v1269 = vadd.f32 %v1267, %v1268
        %v1270 = vsel %vm1194, %v1184, 0.0
        %v1271 = vadd.f32 %v1269, %v1270
        %v1272 = vsel %vm1194, %v1185, 0.0
        %v1273 = vadd.f32 %v1271, %v1272
        %v1274 = vsel %vm1194, %v1186, 0.0
        %v1275 = vadd.f32 %v1273, %v1274
        %v1276 = vsel %vm1194, %v1187, 0.0
        %v1277 = vadd.f32 %v1275, %v1276
        %v1278 = vsel %vm1194, %v1188, 0.0
        %v1279 = vadd.f32 %v1277, %v1278
        %v1280 = vsel %vm1194, %v1189, 0.0
        %v1281 = vadd.f32 %v1279, %v1280
        %v1282 = vsel %vm1194, %v1190, 0.0
        %v1283 = vadd.f32 %v1281, %v1282
        %v1284 = vsel %vm1194, %v1191, 0.0
        %v1285 = vadd.f32 %v1283, %v1284
        %v1286 = vsel %vm1194, %v1192, 0.0
        %v1287 = vadd.f32 %v1285, %v1286
        %v1288 = vsel %vm1194, %v1193, 0.0
        %v1289 = vadd.f32 %v1287, %v1288
        %v1290 = vrot.slane %v1289, 4
        %v1291 = vadd.f32 %v1289, %v1290
        %v1292 = vrot.slane %v1291, 2
        %v1293 = vadd.f32 %v1291, %v1292
        %v1294 = vrot.slane %v1293, 1
        %v1295 = vadd.f32 %v1293, %v1294
        %vm1296 = vcmask 24576
        %1297 = vst.msk [vmem:[%s228] sm:$0x1] %vm1296, %v1295
        %v1298 = vmul.f32 %v1162, %v1162
        %v1299 = vmul.f32 %v1163, %v1163
        %v1300 = vmul.f32 %v1164, %v1164
        %v1301 = vmul.f32 %v1165, %v1165
        %v1302 = vmul.f32 %v1166, %v1166
        %v1303 = vmul.f32 %v1167, %v1167
        %v1304 = vmul.f32 %v1168, %v1168
        %v1305 = vmul.f32 %v1169, %v1169
        %v1306 = vmul.f32 %v1170, %v1170
        %v1307 = vmul.f32 %v1171, %v1171
        %v1308 = vmul.f32 %v1172, %v1172
        %v1309 = vmul.f32 %v1173, %v1173
        %v1310 = vmul.f32 %v1174, %v1174
        %v1311 = vmul.f32 %v1175, %v1175
        %v1312 = vmul.f32 %v1176, %v1176
        %v1313 = vmul.f32 %v1177, %v1177
        %v1314 = vmul.f32 %v1178, %v1178
        %v1315 = vmul.f32 %v1179, %v1179
        %v1316 = vmul.f32 %v1180, %v1180
        %v1317 = vmul.f32 %v1181, %v1181
        %v1318 = vmul.f32 %v1182, %v1182
        %v1319 = vmul.f32 %v1183, %v1183
        %v1320 = vmul.f32 %v1184, %v1184
        %v1321 = vmul.f32 %v1185, %v1185
        %v1322 = vmul.f32 %v1186, %v1186
        %v1323 = vmul.f32 %v1187, %v1187
        %v1324 = vmul.f32 %v1188, %v1188
        %v1325 = vmul.f32 %v1189, %v1189
        %v1326 = vmul.f32 %v1190, %v1190
        %v1327 = vmul.f32 %v1191, %v1191
        %v1328 = vmul.f32 %v1192, %v1192
        %v1329 = vmul.f32 %v1193, %v1193
        %v1330 = vsel %vm1194, %v1298, 0.0
        %v1331 = vsel %vm1194, %v1299, 0.0
        %v1332 = vadd.f32 %v1330, %v1331
        %v1333 = vsel %vm1194, %v1300, 0.0
        %v1334 = vadd.f32 %v1332, %v1333
        %v1335 = vsel %vm1194, %v1301, 0.0
        %v1336 = vadd.f32 %v1334, %v1335
        %v1337 = vsel %vm1194, %v1302, 0.0
        %v1338 = vadd.f32 %v1336, %v1337
        %v1339 = vsel %vm1194, %v1303, 0.0
        %v1340 = vadd.f32 %v1338, %v1339
        %v1341 = vsel %vm1194, %v1304, 0.0
        %v1342 = vadd.f32 %v1340, %v1341
        %v1343 = vsel %vm1194, %v1305, 0.0
        %v1344 = vadd.f32 %v1342, %v1343
        %v1345 = vsel %vm1194, %v1306, 0.0
        %v1346 = vadd.f32 %v1344, %v1345
        %v1347 = vsel %vm1194, %v1307, 0.0
        %v1348 = vadd.f32 %v1346, %v1347
        %v1349 = vsel %vm1194, %v1308, 0.0
        %v1350 = vadd.f32 %v1348, %v1349
        %v1351 = vsel %vm1194, %v1309, 0.0
        %v1352 = vadd.f32 %v1350, %v1351
        %v1353 = vsel %vm1194, %v1310, 0.0
        %v1354 = vadd.f32 %v1352, %v1353
        %v1355 = vsel %vm1194, %v1311, 0.0
        %v1356 = vadd.f32 %v1354, %v1355
        %v1357 = vsel %vm1194, %v1312, 0.0
        %v1358 = vadd.f32 %v1356, %v1357
        %v1359 = vsel %vm1194, %v1313, 0.0
        %v1360 = vadd.f32 %v1358, %v1359
        %v1361 = vsel %vm1194, %v1314, 0.0
        %v1362 = vadd.f32 %v1360, %v1361
        %v1363 = vsel %vm1194, %v1315, 0.0
        %v1364 = vadd.f32 %v1362, %v1363
        %v1365 = vsel %vm1194, %v1316, 0.0
        %v1366 = vadd.f32 %v1364, %v1365
        %v1367 = vsel %vm1194, %v1317, 0.0
        %v1368 = vadd.f32 %v1366, %v1367
        %v1369 = vsel %vm1194, %v1318, 0.0
        %v1370 = vadd.f32 %v1368, %v1369
        %v1371 = vsel %vm1194, %v1319, 0.0
        %v1372 = vadd.f32 %v1370, %v1371
        %v1373 = vsel %vm1194, %v1320, 0.0
        %v1374 = vadd.f32 %v1372, %v1373
        %v1375 = vsel %vm1194, %v1321, 0.0
        %v1376 = vadd.f32 %v1374, %v1375
        %v1377 = vsel %vm1194, %v1322, 0.0
        %v1378 = vadd.f32 %v1376, %v1377
        %v1379 = vsel %vm1194, %v1323, 0.0
        %v1380 = vadd.f32 %v1378, %v1379
        %v1381 = vsel %vm1194, %v1324, 0.0
        %v1382 = vadd.f32 %v1380, %v1381
        %v1383 = vsel %vm1194, %v1325, 0.0
        %v1384 = vadd.f32 %v1382, %v1383
        %v1385 = vsel %vm1194, %v1326, 0.0
        %v1386 = vadd.f32 %v1384, %v1385
        %v1387 = vsel %vm1194, %v1327, 0.0
        %v1388 = vadd.f32 %v1386, %v1387
        %v1389 = vsel %vm1194, %v1328, 0.0
        %v1390 = vadd.f32 %v1388, %v1389
        %v1391 = vsel %vm1194, %v1329, 0.0
        %v1392 = vadd.f32 %v1390, %v1391
        %v1393 = vrot.slane %v1392, 4
        %v1394 = vadd.f32 %v1392, %v1393
        %v1395 = vrot.slane %v1394, 2
        %v1396 = vadd.f32 %v1394, %v1395
        %v1397 = vrot.slane %v1396, 1
        %v1398 = vadd.f32 %v1396, %v1397
        %1399 = vst.msk [vmem:[%s235] sm:$0x1] %vm1296, %v1398
        %v1400 = vld [vmem:[%s240] sm:$0xff]
        %v1401 = vld [vmem:[%s240 + $0x8] sm:$0xff]
        %v1402 = vld [vmem:[%s240 + $0x18] sm:$0xff]
        %v1403 = vld [vmem:[%s240 + $0x20] sm:$0xff]
        %v1404 = vld [vmem:[%s240 + $0x30] sm:$0xff]
        %v1405 = vld [vmem:[%s240 + $0x38] sm:$0xff]
        %v1406 = vld [vmem:[%s240 + $0x48] sm:$0xff]
        %v1407 = vld [vmem:[%s240 + $0x50] sm:$0xff]
        %v1408 = vld [vmem:[%s240 + $0x60] sm:$0xff]
        %v1409 = vld [vmem:[%s240 + $0x68] sm:$0xff]
        %v1410 = vld [vmem:[%s240 + $0x78] sm:$0xff]
        %v1411 = vld [vmem:[%s240 + $0x80] sm:$0xff]
        %v1412 = vld [vmem:[%s240 + $0x90] sm:$0xff]
        %v1413 = vld [vmem:[%s240 + $0x98] sm:$0xff]
        %v1414 = vld [vmem:[%s240 + $0xa8] sm:$0xff]
        %v1415 = vld [vmem:[%s240 + $0xb0] sm:$0xff]
        %v1416 = vld [vmem:[%s240 + $0xc0] sm:$0xff]
        %v1417 = vld [vmem:[%s240 + $0xc8] sm:$0xff]
        %v1418 = vld [vmem:[%s240 + $0xd8] sm:$0xff]
        %v1419 = vld [vmem:[%s240 + $0xe0] sm:$0xff]
        %v1420 = vld [vmem:[%s240 + $0xf0] sm:$0xff]
        %v1421 = vld [vmem:[%s240 + $0xf8] sm:$0xff]
        %v1422 = vld [vmem:[%s240 + $0x108] sm:$0xff]
        %v1423 = vld [vmem:[%s240 + $0x110] sm:$0xff]
        %v1424 = vld [vmem:[%s240 + $0x120] sm:$0xff]
        %v1425 = vld [vmem:[%s240 + $0x128] sm:$0xff]
        %v1426 = vld [vmem:[%s240 + $0x138] sm:$0xff]
        %v1427 = vld [vmem:[%s240 + $0x140] sm:$0xff]
        %v1428 = vld [vmem:[%s240 + $0x150] sm:$0xff]
        %v1429 = vld [vmem:[%s240 + $0x158] sm:$0xff]
        %v1430 = vld [vmem:[%s240 + $0x168] sm:$0xff]
        %v1431 = vld [vmem:[%s240 + $0x170] sm:$0xff]
        %v1432 = vld [vmem:[%s1 + $0x9] sm:$0x1]
        %v1433 = vlaneseq
        %v1434 = vshrl.u32 %v1433, 7
        %v1435 = vsub.s32 0, %v1434
        %v1436 = vrot.slane %v1432, %v1435
        %v1437 = vmul.f32 %v1400, %v1436
        %v1438 = vmul.f32 %v1401, %v1436
        %v1439 = vmul.f32 %v1402, %v1436
        %v1440 = vmul.f32 %v1403, %v1436
        %v1441 = vmul.f32 %v1404, %v1436
        %v1442 = vmul.f32 %v1405, %v1436
        %v1443 = vmul.f32 %v1406, %v1436
        %v1444 = vmul.f32 %v1407, %v1436
        %v1445 = vmul.f32 %v1408, %v1436
        %v1446 = vmul.f32 %v1409, %v1436
        %v1447 = vmul.f32 %v1410, %v1436
        %v1448 = vmul.f32 %v1411, %v1436
        %v1449 = vmul.f32 %v1412, %v1436
        %v1450 = vmul.f32 %v1413, %v1436
        %v1451 = vmul.f32 %v1414, %v1436
        %v1452 = vmul.f32 %v1415, %v1436
        %v1453 = vmul.f32 %v1416, %v1436
        %v1454 = vmul.f32 %v1417, %v1436
        %v1455 = vmul.f32 %v1418, %v1436
        %v1456 = vmul.f32 %v1419, %v1436
        %v1457 = vmul.f32 %v1420, %v1436
        %v1458 = vmul.f32 %v1421, %v1436
        %v1459 = vmul.f32 %v1422, %v1436
        %v1460 = vmul.f32 %v1423, %v1436
        %v1461 = vmul.f32 %v1424, %v1436
        %v1462 = vmul.f32 %v1425, %v1436
        %v1463 = vmul.f32 %v1426, %v1436
        %v1464 = vmul.f32 %v1427, %v1436
        %v1465 = vmul.f32 %v1428, %v1436
        %v1466 = vmul.f32 %v1429, %v1436
        %v1467 = vmul.f32 %v1430, %v1436
        %v1468 = vmul.f32 %v1431, %v1436
        %v1469 = vadd.f32 %v1437, 0.0
        %v1470 = vadd.f32 %v1438, 0.0
        %v1471 = vadd.f32 %v1439, 0.0
        %v1472 = vadd.f32 %v1440, 0.0
        %v1473 = vadd.f32 %v1441, 0.0
        %v1474 = vadd.f32 %v1442, 0.0
        %v1475 = vadd.f32 %v1443, 0.0
        %v1476 = vadd.f32 %v1444, 0.0
        %v1477 = vadd.f32 %v1445, 0.0
        %v1478 = vadd.f32 %v1446, 0.0
        %v1479 = vadd.f32 %v1447, 0.0
        %v1480 = vadd.f32 %v1448, 0.0
        %v1481 = vadd.f32 %v1449, 0.0
        %v1482 = vadd.f32 %v1450, 0.0
        %v1483 = vadd.f32 %v1451, 0.0
        %v1484 = vadd.f32 %v1452, 0.0
        %v1485 = vadd.f32 %v1453, 0.0
        %v1486 = vadd.f32 %v1454, 0.0
        %v1487 = vadd.f32 %v1455, 0.0
        %v1488 = vadd.f32 %v1456, 0.0
        %v1489 = vadd.f32 %v1457, 0.0
        %v1490 = vadd.f32 %v1458, 0.0
        %v1491 = vadd.f32 %v1459, 0.0
        %v1492 = vadd.f32 %v1460, 0.0
        %v1493 = vadd.f32 %v1461, 0.0
        %v1494 = vadd.f32 %v1462, 0.0
        %v1495 = vadd.f32 %v1463, 0.0
        %v1496 = vadd.f32 %v1464, 0.0
        %v1497 = vadd.f32 %v1465, 0.0
        %v1498 = vadd.f32 %v1466, 0.0
        %v1499 = vadd.f32 %v1467, 0.0
        %v1500 = vadd.f32 %v1468, 0.0
        %v1501 = vld [vmem:[%s240 + $0x1] sm:$0xff]
        %v1502 = vld [vmem:[%s240 + $0x9] sm:$0xff]
        %v1503 = vld [vmem:[%s240 + $0x19] sm:$0xff]
        %v1504 = vld [vmem:[%s240 + $0x21] sm:$0xff]
        %v1505 = vld [vmem:[%s240 + $0x31] sm:$0xff]
        %v1506 = vld [vmem:[%s240 + $0x39] sm:$0xff]
        %v1507 = vld [vmem:[%s240 + $0x49] sm:$0xff]
        %v1508 = vld [vmem:[%s240 + $0x51] sm:$0xff]
        %v1509 = vld [vmem:[%s240 + $0x61] sm:$0xff]
        %v1510 = vld [vmem:[%s240 + $0x69] sm:$0xff]
        %v1511 = vld [vmem:[%s240 + $0x79] sm:$0xff]
        %v1512 = vld [vmem:[%s240 + $0x81] sm:$0xff]
        %v1513 = vld [vmem:[%s240 + $0x91] sm:$0xff]
        %v1514 = vld [vmem:[%s240 + $0x99] sm:$0xff]
        %v1515 = vld [vmem:[%s240 + $0xa9] sm:$0xff]
        %v1516 = vld [vmem:[%s240 + $0xb1] sm:$0xff]
        %v1517 = vld [vmem:[%s240 + $0xc1] sm:$0xff]
        %v1518 = vld [vmem:[%s240 + $0xc9] sm:$0xff]
        %v1519 = vld [vmem:[%s240 + $0xd9] sm:$0xff]
        %v1520 = vld [vmem:[%s240 + $0xe1] sm:$0xff]
        %v1521 = vld [vmem:[%s240 + $0xf1] sm:$0xff]
        %v1522 = vld [vmem:[%s240 + $0xf9] sm:$0xff]
        %v1523 = vld [vmem:[%s240 + $0x109] sm:$0xff]
        %v1524 = vld [vmem:[%s240 + $0x111] sm:$0xff]
        %v1525 = vld [vmem:[%s240 + $0x121] sm:$0xff]
        %v1526 = vld [vmem:[%s240 + $0x129] sm:$0xff]
        %v1527 = vld [vmem:[%s240 + $0x139] sm:$0xff]
        %v1528 = vld [vmem:[%s240 + $0x141] sm:$0xff]
        %v1529 = vld [vmem:[%s240 + $0x151] sm:$0xff]
        %v1530 = vld [vmem:[%s240 + $0x159] sm:$0xff]
        %v1531 = vld [vmem:[%s240 + $0x169] sm:$0xff]
        %v1532 = vld [vmem:[%s240 + $0x171] sm:$0xff]
        %v1533 = vld [vmem:[%s1 + $0xa] sm:$0x1]
        %v1534 = vlaneseq
        %v1535 = vshrl.u32 %v1534, 7
        %v1536 = vsub.s32 0, %v1535
        %v1537 = vrot.slane %v1533, %v1536
        %v1538 = vmul.f32 %v1501, %v1537
        %v1539 = vmul.f32 %v1502, %v1537
        %v1540 = vmul.f32 %v1503, %v1537
        %v1541 = vmul.f32 %v1504, %v1537
        %v1542 = vmul.f32 %v1505, %v1537
        %v1543 = vmul.f32 %v1506, %v1537
        %v1544 = vmul.f32 %v1507, %v1537
        %v1545 = vmul.f32 %v1508, %v1537
        %v1546 = vmul.f32 %v1509, %v1537
        %v1547 = vmul.f32 %v1510, %v1537
        %v1548 = vmul.f32 %v1511, %v1537
        %v1549 = vmul.f32 %v1512, %v1537
        %v1550 = vmul.f32 %v1513, %v1537
        %v1551 = vmul.f32 %v1514, %v1537
        %v1552 = vmul.f32 %v1515, %v1537
        %v1553 = vmul.f32 %v1516, %v1537
        %v1554 = vmul.f32 %v1517, %v1537
        %v1555 = vmul.f32 %v1518, %v1537
        %v1556 = vmul.f32 %v1519, %v1537
        %v1557 = vmul.f32 %v1520, %v1537
        %v1558 = vmul.f32 %v1521, %v1537
        %v1559 = vmul.f32 %v1522, %v1537
        %v1560 = vmul.f32 %v1523, %v1537
        %v1561 = vmul.f32 %v1524, %v1537
        %v1562 = vmul.f32 %v1525, %v1537
        %v1563 = vmul.f32 %v1526, %v1537
        %v1564 = vmul.f32 %v1527, %v1537
        %v1565 = vmul.f32 %v1528, %v1537
        %v1566 = vmul.f32 %v1529, %v1537
        %v1567 = vmul.f32 %v1530, %v1537
        %v1568 = vmul.f32 %v1531, %v1537
        %v1569 = vmul.f32 %v1532, %v1537
        %v1570 = vadd.f32 %v1469, %v1538
        %v1571 = vadd.f32 %v1470, %v1539
        %v1572 = vadd.f32 %v1471, %v1540
        %v1573 = vadd.f32 %v1472, %v1541
        %v1574 = vadd.f32 %v1473, %v1542
        %v1575 = vadd.f32 %v1474, %v1543
        %v1576 = vadd.f32 %v1475, %v1544
        %v1577 = vadd.f32 %v1476, %v1545
        %v1578 = vadd.f32 %v1477, %v1546
        %v1579 = vadd.f32 %v1478, %v1547
        %v1580 = vadd.f32 %v1479, %v1548
        %v1581 = vadd.f32 %v1480, %v1549
        %v1582 = vadd.f32 %v1481, %v1550
        %v1583 = vadd.f32 %v1482, %v1551
        %v1584 = vadd.f32 %v1483, %v1552
        %v1585 = vadd.f32 %v1484, %v1553
        %v1586 = vadd.f32 %v1485, %v1554
        %v1587 = vadd.f32 %v1486, %v1555
        %v1588 = vadd.f32 %v1487, %v1556
        %v1589 = vadd.f32 %v1488, %v1557
        %v1590 = vadd.f32 %v1489, %v1558
        %v1591 = vadd.f32 %v1490, %v1559
        %v1592 = vadd.f32 %v1491, %v1560
        %v1593 = vadd.f32 %v1492, %v1561
        %v1594 = vadd.f32 %v1493, %v1562
        %v1595 = vadd.f32 %v1494, %v1563
        %v1596 = vadd.f32 %v1495, %v1564
        %v1597 = vadd.f32 %v1496, %v1565
        %v1598 = vadd.f32 %v1497, %v1566
        %v1599 = vadd.f32 %v1498, %v1567
        %v1600 = vadd.f32 %v1499, %v1568
        %v1601 = vadd.f32 %v1500, %v1569
        %v1602 = vld [vmem:[%s240 + $0x2] sm:$0xff]
        %v1603 = vld [vmem:[%s240 + $0xa] sm:$0xff]
        %v1604 = vld [vmem:[%s240 + $0x1a] sm:$0xff]
        %v1605 = vld [vmem:[%s240 + $0x22] sm:$0xff]
        %v1606 = vld [vmem:[%s240 + $0x32] sm:$0xff]
        %v1607 = vld [vmem:[%s240 + $0x3a] sm:$0xff]
        %v1608 = vld [vmem:[%s240 + $0x4a] sm:$0xff]
        %v1609 = vld [vmem:[%s240 + $0x52] sm:$0xff]
        %v1610 = vld [vmem:[%s240 + $0x62] sm:$0xff]
        %v1611 = vld [vmem:[%s240 + $0x6a] sm:$0xff]
        %v1612 = vld [vmem:[%s240 + $0x7a] sm:$0xff]
        %v1613 = vld [vmem:[%s240 + $0x82] sm:$0xff]
        %v1614 = vld [vmem:[%s240 + $0x92] sm:$0xff]
        %v1615 = vld [vmem:[%s240 + $0x9a] sm:$0xff]
        %v1616 = vld [vmem:[%s240 + $0xaa] sm:$0xff]
        %v1617 = vld [vmem:[%s240 + $0xb2] sm:$0xff]
        %v1618 = vld [vmem:[%s240 + $0xc2] sm:$0xff]
        %v1619 = vld [vmem:[%s240 + $0xca] sm:$0xff]
        %v1620 = vld [vmem:[%s240 + $0xda] sm:$0xff]
        %v1621 = vld [vmem:[%s240 + $0xe2] sm:$0xff]
        %v1622 = vld [vmem:[%s240 + $0xf2] sm:$0xff]
        %v1623 = vld [vmem:[%s240 + $0xfa] sm:$0xff]
        %v1624 = vld [vmem:[%s240 + $0x10a] sm:$0xff]
        %v1625 = vld [vmem:[%s240 + $0x112] sm:$0xff]
        %v1626 = vld [vmem:[%s240 + $0x122] sm:$0xff]
        %v1627 = vld [vmem:[%s240 + $0x12a] sm:$0xff]
        %v1628 = vld [vmem:[%s240 + $0x13a] sm:$0xff]
        %v1629 = vld [vmem:[%s240 + $0x142] sm:$0xff]
        %v1630 = vld [vmem:[%s240 + $0x152] sm:$0xff]
        %v1631 = vld [vmem:[%s240 + $0x15a] sm:$0xff]
        %v1632 = vld [vmem:[%s240 + $0x16a] sm:$0xff]
        %v1633 = vld [vmem:[%s240 + $0x172] sm:$0xff]
        %v1634 = vld [vmem:[%s1 + $0xb] sm:$0x1]
        %v1635 = vlaneseq
        %v1636 = vshrl.u32 %v1635, 7
        %v1637 = vsub.s32 0, %v1636
        %v1638 = vrot.slane %v1634, %v1637
        %v1639 = vmul.f32 %v1602, %v1638
        %v1640 = vmul.f32 %v1603, %v1638
        %v1641 = vmul.f32 %v1604, %v1638
        %v1642 = vmul.f32 %v1605, %v1638
        %v1643 = vmul.f32 %v1606, %v1638
        %v1644 = vmul.f32 %v1607, %v1638
        %v1645 = vmul.f32 %v1608, %v1638
        %v1646 = vmul.f32 %v1609, %v1638
        %v1647 = vmul.f32 %v1610, %v1638
        %v1648 = vmul.f32 %v1611, %v1638
        %v1649 = vmul.f32 %v1612, %v1638
        %v1650 = vmul.f32 %v1613, %v1638
        %v1651 = vmul.f32 %v1614, %v1638
        %v1652 = vmul.f32 %v1615, %v1638
        %v1653 = vmul.f32 %v1616, %v1638
        %v1654 = vmul.f32 %v1617, %v1638
        %v1655 = vmul.f32 %v1618, %v1638
        %v1656 = vmul.f32 %v1619, %v1638
        %v1657 = vmul.f32 %v1620, %v1638
        %v1658 = vmul.f32 %v1621, %v1638
        %v1659 = vmul.f32 %v1622, %v1638
        %v1660 = vmul.f32 %v1623, %v1638
        %v1661 = vmul.f32 %v1624, %v1638
        %v1662 = vmul.f32 %v1625, %v1638
        %v1663 = vmul.f32 %v1626, %v1638
        %v1664 = vmul.f32 %v1627, %v1638
        %v1665 = vmul.f32 %v1628, %v1638
        %v1666 = vmul.f32 %v1629, %v1638
        %v1667 = vmul.f32 %v1630, %v1638
        %v1668 = vmul.f32 %v1631, %v1638
        %v1669 = vmul.f32 %v1632, %v1638
        %v1670 = vmul.f32 %v1633, %v1638
        %v1671 = vadd.f32 %v1570, %v1639
        %v1672 = vadd.f32 %v1571, %v1640
        %v1673 = vadd.f32 %v1572, %v1641
        %v1674 = vadd.f32 %v1573, %v1642
        %v1675 = vadd.f32 %v1574, %v1643
        %v1676 = vadd.f32 %v1575, %v1644
        %v1677 = vadd.f32 %v1576, %v1645
        %v1678 = vadd.f32 %v1577, %v1646
        %v1679 = vadd.f32 %v1578, %v1647
        %v1680 = vadd.f32 %v1579, %v1648
        %v1681 = vadd.f32 %v1580, %v1649
        %v1682 = vadd.f32 %v1581, %v1650
        %v1683 = vadd.f32 %v1582, %v1651
        %v1684 = vadd.f32 %v1583, %v1652
        %v1685 = vadd.f32 %v1584, %v1653
        %v1686 = vadd.f32 %v1585, %v1654
        %v1687 = vadd.f32 %v1586, %v1655
        %v1688 = vadd.f32 %v1587, %v1656
        %v1689 = vadd.f32 %v1588, %v1657
        %v1690 = vadd.f32 %v1589, %v1658
        %v1691 = vadd.f32 %v1590, %v1659
        %v1692 = vadd.f32 %v1591, %v1660
        %v1693 = vadd.f32 %v1592, %v1661
        %v1694 = vadd.f32 %v1593, %v1662
        %v1695 = vadd.f32 %v1594, %v1663
        %v1696 = vadd.f32 %v1595, %v1664
        %v1697 = vadd.f32 %v1596, %v1665
        %v1698 = vadd.f32 %v1597, %v1666
        %v1699 = vadd.f32 %v1598, %v1667
        %v1700 = vadd.f32 %v1599, %v1668
        %v1701 = vadd.f32 %v1600, %v1669
        %v1702 = vadd.f32 %v1601, %v1670
        %v1703 = vld [vmem:[%s549] sm:$0xff]
        %v1704 = vld [vmem:[%s549 + $0x8] sm:$0xff]
        %v1705 = vld [vmem:[%s549 + $0x18] sm:$0xff]
        %v1706 = vld [vmem:[%s549 + $0x20] sm:$0xff]
        %v1707 = vld [vmem:[%s549 + $0x30] sm:$0xff]
        %v1708 = vld [vmem:[%s549 + $0x38] sm:$0xff]
        %v1709 = vld [vmem:[%s549 + $0x48] sm:$0xff]
        %v1710 = vld [vmem:[%s549 + $0x50] sm:$0xff]
        %v1711 = vld [vmem:[%s549 + $0x60] sm:$0xff]
        %v1712 = vld [vmem:[%s549 + $0x68] sm:$0xff]
        %v1713 = vld [vmem:[%s549 + $0x78] sm:$0xff]
        %v1714 = vld [vmem:[%s549 + $0x80] sm:$0xff]
        %v1715 = vld [vmem:[%s549 + $0x90] sm:$0xff]
        %v1716 = vld [vmem:[%s549 + $0x98] sm:$0xff]
        %v1717 = vld [vmem:[%s549 + $0xa8] sm:$0xff]
        %v1718 = vld [vmem:[%s549 + $0xb0] sm:$0xff]
        %v1719 = vld [vmem:[%s549 + $0xc0] sm:$0xff]
        %v1720 = vld [vmem:[%s549 + $0xc8] sm:$0xff]
        %v1721 = vld [vmem:[%s549 + $0xd8] sm:$0xff]
        %v1722 = vld [vmem:[%s549 + $0xe0] sm:$0xff]
        %v1723 = vld [vmem:[%s549 + $0xf0] sm:$0xff]
        %v1724 = vld [vmem:[%s549 + $0xf8] sm:$0xff]
        %v1725 = vld [vmem:[%s549 + $0x108] sm:$0xff]
        %v1726 = vld [vmem:[%s549 + $0x110] sm:$0xff]
        %v1727 = vld [vmem:[%s549 + $0x120] sm:$0xff]
        %v1728 = vld [vmem:[%s549 + $0x128] sm:$0xff]
        %v1729 = vld [vmem:[%s549 + $0x138] sm:$0xff]
        %v1730 = vld [vmem:[%s549 + $0x140] sm:$0xff]
        %v1731 = vld [vmem:[%s549 + $0x150] sm:$0xff]
        %v1732 = vld [vmem:[%s549 + $0x158] sm:$0xff]
        %v1733 = vld [vmem:[%s549 + $0x168] sm:$0xff]
        %v1734 = vld [vmem:[%s549 + $0x170] sm:$0xff]
        %v1735 = vld [vmem:[%s1 + $0xc] sm:$0x1]
        %v1736 = vlaneseq
        %v1737 = vshrl.u32 %v1736, 7
        %v1738 = vsub.s32 0, %v1737
        %v1739 = vrot.slane %v1735, %v1738
        %v1740 = vmul.f32 %v1703, %v1739
        %v1741 = vmul.f32 %v1704, %v1739
        %v1742 = vmul.f32 %v1705, %v1739
        %v1743 = vmul.f32 %v1706, %v1739
        %v1744 = vmul.f32 %v1707, %v1739
        %v1745 = vmul.f32 %v1708, %v1739
        %v1746 = vmul.f32 %v1709, %v1739
        %v1747 = vmul.f32 %v1710, %v1739
        %v1748 = vmul.f32 %v1711, %v1739
        %v1749 = vmul.f32 %v1712, %v1739
        %v1750 = vmul.f32 %v1713, %v1739
        %v1751 = vmul.f32 %v1714, %v1739
        %v1752 = vmul.f32 %v1715, %v1739
        %v1753 = vmul.f32 %v1716, %v1739
        %v1754 = vmul.f32 %v1717, %v1739
        %v1755 = vmul.f32 %v1718, %v1739
        %v1756 = vmul.f32 %v1719, %v1739
        %v1757 = vmul.f32 %v1720, %v1739
        %v1758 = vmul.f32 %v1721, %v1739
        %v1759 = vmul.f32 %v1722, %v1739
        %v1760 = vmul.f32 %v1723, %v1739
        %v1761 = vmul.f32 %v1724, %v1739
        %v1762 = vmul.f32 %v1725, %v1739
        %v1763 = vmul.f32 %v1726, %v1739
        %v1764 = vmul.f32 %v1727, %v1739
        %v1765 = vmul.f32 %v1728, %v1739
        %v1766 = vmul.f32 %v1729, %v1739
        %v1767 = vmul.f32 %v1730, %v1739
        %v1768 = vmul.f32 %v1731, %v1739
        %v1769 = vmul.f32 %v1732, %v1739
        %v1770 = vmul.f32 %v1733, %v1739
        %v1771 = vmul.f32 %v1734, %v1739
        %v1772 = vadd.f32 %v1671, %v1740
        %v1773 = vadd.f32 %v1672, %v1741
        %v1774 = vadd.f32 %v1673, %v1742
        %v1775 = vadd.f32 %v1674, %v1743
        %v1776 = vadd.f32 %v1675, %v1744
        %v1777 = vadd.f32 %v1676, %v1745
        %v1778 = vadd.f32 %v1677, %v1746
        %v1779 = vadd.f32 %v1678, %v1747
        %v1780 = vadd.f32 %v1679, %v1748
        %v1781 = vadd.f32 %v1680, %v1749
        %v1782 = vadd.f32 %v1681, %v1750
        %v1783 = vadd.f32 %v1682, %v1751
        %v1784 = vadd.f32 %v1683, %v1752
        %v1785 = vadd.f32 %v1684, %v1753
        %v1786 = vadd.f32 %v1685, %v1754
        %v1787 = vadd.f32 %v1686, %v1755
        %v1788 = vadd.f32 %v1687, %v1756
        %v1789 = vadd.f32 %v1688, %v1757
        %v1790 = vadd.f32 %v1689, %v1758
        %v1791 = vadd.f32 %v1690, %v1759
        %v1792 = vadd.f32 %v1691, %v1760
        %v1793 = vadd.f32 %v1692, %v1761
        %v1794 = vadd.f32 %v1693, %v1762
        %v1795 = vadd.f32 %v1694, %v1763
        %v1796 = vadd.f32 %v1695, %v1764
        %v1797 = vadd.f32 %v1696, %v1765
        %v1798 = vadd.f32 %v1697, %v1766
        %v1799 = vadd.f32 %v1698, %v1767
        %v1800 = vadd.f32 %v1699, %v1768
        %v1801 = vadd.f32 %v1700, %v1769
        %v1802 = vadd.f32 %v1701, %v1770
        %v1803 = vadd.f32 %v1702, %v1771
        %v1804 = vld [vmem:[%s549 + $0x1] sm:$0xff]
        %v1805 = vld [vmem:[%s549 + $0x9] sm:$0xff]
        %v1806 = vld [vmem:[%s549 + $0x19] sm:$0xff]
        %v1807 = vld [vmem:[%s549 + $0x21] sm:$0xff]
        %v1808 = vld [vmem:[%s549 + $0x31] sm:$0xff]
        %v1809 = vld [vmem:[%s549 + $0x39] sm:$0xff]
        %v1810 = vld [vmem:[%s549 + $0x49] sm:$0xff]
        %v1811 = vld [vmem:[%s549 + $0x51] sm:$0xff]
        %v1812 = vld [vmem:[%s549 + $0x61] sm:$0xff]
        %v1813 = vld [vmem:[%s549 + $0x69] sm:$0xff]
        %v1814 = vld [vmem:[%s549 + $0x79] sm:$0xff]
        %v1815 = vld [vmem:[%s549 + $0x81] sm:$0xff]
        %v1816 = vld [vmem:[%s549 + $0x91] sm:$0xff]
        %v1817 = vld [vmem:[%s549 + $0x99] sm:$0xff]
        %v1818 = vld [vmem:[%s549 + $0xa9] sm:$0xff]
        %v1819 = vld [vmem:[%s549 + $0xb1] sm:$0xff]
        %v1820 = vld [vmem:[%s549 + $0xc1] sm:$0xff]
        %v1821 = vld [vmem:[%s549 + $0xc9] sm:$0xff]
        %v1822 = vld [vmem:[%s549 + $0xd9] sm:$0xff]
        %v1823 = vld [vmem:[%s549 + $0xe1] sm:$0xff]
        %v1824 = vld [vmem:[%s549 + $0xf1] sm:$0xff]
        %v1825 = vld [vmem:[%s549 + $0xf9] sm:$0xff]
        %v1826 = vld [vmem:[%s549 + $0x109] sm:$0xff]
        %v1827 = vld [vmem:[%s549 + $0x111] sm:$0xff]
        %v1828 = vld [vmem:[%s549 + $0x121] sm:$0xff]
        %v1829 = vld [vmem:[%s549 + $0x129] sm:$0xff]
        %v1830 = vld [vmem:[%s549 + $0x139] sm:$0xff]
        %v1831 = vld [vmem:[%s549 + $0x141] sm:$0xff]
        %v1832 = vld [vmem:[%s549 + $0x151] sm:$0xff]
        %v1833 = vld [vmem:[%s549 + $0x159] sm:$0xff]
        %v1834 = vld [vmem:[%s549 + $0x169] sm:$0xff]
        %v1835 = vld [vmem:[%s549 + $0x171] sm:$0xff]
        %v1836 = vld [vmem:[%s1 + $0xd] sm:$0x1]
        %v1837 = vlaneseq
        %v1838 = vshrl.u32 %v1837, 7
        %v1839 = vsub.s32 0, %v1838
        %v1840 = vrot.slane %v1836, %v1839
        %v1841 = vmul.f32 %v1804, %v1840
        %v1842 = vmul.f32 %v1805, %v1840
        %v1843 = vmul.f32 %v1806, %v1840
        %v1844 = vmul.f32 %v1807, %v1840
        %v1845 = vmul.f32 %v1808, %v1840
        %v1846 = vmul.f32 %v1809, %v1840
        %v1847 = vmul.f32 %v1810, %v1840
        %v1848 = vmul.f32 %v1811, %v1840
        %v1849 = vmul.f32 %v1812, %v1840
        %v1850 = vmul.f32 %v1813, %v1840
        %v1851 = vmul.f32 %v1814, %v1840
        %v1852 = vmul.f32 %v1815, %v1840
        %v1853 = vmul.f32 %v1816, %v1840
        %v1854 = vmul.f32 %v1817, %v1840
        %v1855 = vmul.f32 %v1818, %v1840
        %v1856 = vmul.f32 %v1819, %v1840
        %v1857 = vmul.f32 %v1820, %v1840
        %v1858 = vmul.f32 %v1821, %v1840
        %v1859 = vmul.f32 %v1822, %v1840
        %v1860 = vmul.f32 %v1823, %v1840
        %v1861 = vmul.f32 %v1824, %v1840
        %v1862 = vmul.f32 %v1825, %v1840
        %v1863 = vmul.f32 %v1826, %v1840
        %v1864 = vmul.f32 %v1827, %v1840
        %v1865 = vmul.f32 %v1828, %v1840
        %v1866 = vmul.f32 %v1829, %v1840
        %v1867 = vmul.f32 %v1830, %v1840
        %v1868 = vmul.f32 %v1831, %v1840
        %v1869 = vmul.f32 %v1832, %v1840
        %v1870 = vmul.f32 %v1833, %v1840
        %v1871 = vmul.f32 %v1834, %v1840
        %v1872 = vmul.f32 %v1835, %v1840
        %v1873 = vadd.f32 %v1772, %v1841
        %v1874 = vadd.f32 %v1773, %v1842
        %v1875 = vadd.f32 %v1774, %v1843
        %v1876 = vadd.f32 %v1775, %v1844
        %v1877 = vadd.f32 %v1776, %v1845
        %v1878 = vadd.f32 %v1777, %v1846
        %v1879 = vadd.f32 %v1778, %v1847
        %v1880 = vadd.f32 %v1779, %v1848
        %v1881 = vadd.f32 %v1780, %v1849
        %v1882 = vadd.f32 %v1781, %v1850
        %v1883 = vadd.f32 %v1782, %v1851
        %v1884 = vadd.f32 %v1783, %v1852
        %v1885 = vadd.f32 %v1784, %v1853
        %v1886 = vadd.f32 %v1785, %v1854
        %v1887 = vadd.f32 %v1786, %v1855
        %v1888 = vadd.f32 %v1787, %v1856
        %v1889 = vadd.f32 %v1788, %v1857
        %v1890 = vadd.f32 %v1789, %v1858
        %v1891 = vadd.f32 %v1790, %v1859
        %v1892 = vadd.f32 %v1791, %v1860
        %v1893 = vadd.f32 %v1792, %v1861
        %v1894 = vadd.f32 %v1793, %v1862
        %v1895 = vadd.f32 %v1794, %v1863
        %v1896 = vadd.f32 %v1795, %v1864
        %v1897 = vadd.f32 %v1796, %v1865
        %v1898 = vadd.f32 %v1797, %v1866
        %v1899 = vadd.f32 %v1798, %v1867
        %v1900 = vadd.f32 %v1799, %v1868
        %v1901 = vadd.f32 %v1800, %v1869
        %v1902 = vadd.f32 %v1801, %v1870
        %v1903 = vadd.f32 %v1802, %v1871
        %v1904 = vadd.f32 %v1803, %v1872
        %v1905 = vld [vmem:[%s549 + $0x2] sm:$0xff]
        %v1906 = vld [vmem:[%s549 + $0xa] sm:$0xff]
        %v1907 = vld [vmem:[%s549 + $0x1a] sm:$0xff]
        %v1908 = vld [vmem:[%s549 + $0x22] sm:$0xff]
        %v1909 = vld [vmem:[%s549 + $0x32] sm:$0xff]
        %v1910 = vld [vmem:[%s549 + $0x3a] sm:$0xff]
        %v1911 = vld [vmem:[%s549 + $0x4a] sm:$0xff]
        %v1912 = vld [vmem:[%s549 + $0x52] sm:$0xff]
        %v1913 = vld [vmem:[%s549 + $0x62] sm:$0xff]
        %v1914 = vld [vmem:[%s549 + $0x6a] sm:$0xff]
        %v1915 = vld [vmem:[%s549 + $0x7a] sm:$0xff]
        %v1916 = vld [vmem:[%s549 + $0x82] sm:$0xff]
        %v1917 = vld [vmem:[%s549 + $0x92] sm:$0xff]
        %v1918 = vld [vmem:[%s549 + $0x9a] sm:$0xff]
        %v1919 = vld [vmem:[%s549 + $0xaa] sm:$0xff]
        %v1920 = vld [vmem:[%s549 + $0xb2] sm:$0xff]
        %v1921 = vld [vmem:[%s549 + $0xc2] sm:$0xff]
        %v1922 = vld [vmem:[%s549 + $0xca] sm:$0xff]
        %v1923 = vld [vmem:[%s549 + $0xda] sm:$0xff]
        %v1924 = vld [vmem:[%s549 + $0xe2] sm:$0xff]
        %v1925 = vld [vmem:[%s549 + $0xf2] sm:$0xff]
        %v1926 = vld [vmem:[%s549 + $0xfa] sm:$0xff]
        %v1927 = vld [vmem:[%s549 + $0x10a] sm:$0xff]
        %v1928 = vld [vmem:[%s549 + $0x112] sm:$0xff]
        %v1929 = vld [vmem:[%s549 + $0x122] sm:$0xff]
        %v1930 = vld [vmem:[%s549 + $0x12a] sm:$0xff]
        %v1931 = vld [vmem:[%s549 + $0x13a] sm:$0xff]
        %v1932 = vld [vmem:[%s549 + $0x142] sm:$0xff]
        %v1933 = vld [vmem:[%s549 + $0x152] sm:$0xff]
        %v1934 = vld [vmem:[%s549 + $0x15a] sm:$0xff]
        %v1935 = vld [vmem:[%s549 + $0x16a] sm:$0xff]
        %v1936 = vld [vmem:[%s549 + $0x172] sm:$0xff]
        %v1937 = vld [vmem:[%s1 + $0xe] sm:$0x1]
        %v1938 = vlaneseq
        %v1939 = vshrl.u32 %v1938, 7
        %v1940 = vsub.s32 0, %v1939
        %v1941 = vrot.slane %v1937, %v1940
        %v1942 = vmul.f32 %v1905, %v1941
        %v1943 = vmul.f32 %v1906, %v1941
        %v1944 = vmul.f32 %v1907, %v1941
        %v1945 = vmul.f32 %v1908, %v1941
        %v1946 = vmul.f32 %v1909, %v1941
        %v1947 = vmul.f32 %v1910, %v1941
        %v1948 = vmul.f32 %v1911, %v1941
        %v1949 = vmul.f32 %v1912, %v1941
        %v1950 = vmul.f32 %v1913, %v1941
        %v1951 = vmul.f32 %v1914, %v1941
        %v1952 = vmul.f32 %v1915, %v1941
        %v1953 = vmul.f32 %v1916, %v1941
        %v1954 = vmul.f32 %v1917, %v1941
        %v1955 = vmul.f32 %v1918, %v1941
        %v1956 = vmul.f32 %v1919, %v1941
        %v1957 = vmul.f32 %v1920, %v1941
        %v1958 = vmul.f32 %v1921, %v1941
        %v1959 = vmul.f32 %v1922, %v1941
        %v1960 = vmul.f32 %v1923, %v1941
        %v1961 = vmul.f32 %v1924, %v1941
        %v1962 = vmul.f32 %v1925, %v1941
        %v1963 = vmul.f32 %v1926, %v1941
        %v1964 = vmul.f32 %v1927, %v1941
        %v1965 = vmul.f32 %v1928, %v1941
        %v1966 = vmul.f32 %v1929, %v1941
        %v1967 = vmul.f32 %v1930, %v1941
        %v1968 = vmul.f32 %v1931, %v1941
        %v1969 = vmul.f32 %v1932, %v1941
        %v1970 = vmul.f32 %v1933, %v1941
        %v1971 = vmul.f32 %v1934, %v1941
        %v1972 = vmul.f32 %v1935, %v1941
        %v1973 = vmul.f32 %v1936, %v1941
        %v1974 = vadd.f32 %v1873, %v1942
        %v1975 = vadd.f32 %v1874, %v1943
        %v1976 = vadd.f32 %v1875, %v1944
        %v1977 = vadd.f32 %v1876, %v1945
        %v1978 = vadd.f32 %v1877, %v1946
        %v1979 = vadd.f32 %v1878, %v1947
        %v1980 = vadd.f32 %v1879, %v1948
        %v1981 = vadd.f32 %v1880, %v1949
        %v1982 = vadd.f32 %v1881, %v1950
        %v1983 = vadd.f32 %v1882, %v1951
        %v1984 = vadd.f32 %v1883, %v1952
        %v1985 = vadd.f32 %v1884, %v1953
        %v1986 = vadd.f32 %v1885, %v1954
        %v1987 = vadd.f32 %v1886, %v1955
        %v1988 = vadd.f32 %v1887, %v1956
        %v1989 = vadd.f32 %v1888, %v1957
        %v1990 = vadd.f32 %v1889, %v1958
        %v1991 = vadd.f32 %v1890, %v1959
        %v1992 = vadd.f32 %v1891, %v1960
        %v1993 = vadd.f32 %v1892, %v1961
        %v1994 = vadd.f32 %v1893, %v1962
        %v1995 = vadd.f32 %v1894, %v1963
        %v1996 = vadd.f32 %v1895, %v1964
        %v1997 = vadd.f32 %v1896, %v1965
        %v1998 = vadd.f32 %v1897, %v1966
        %v1999 = vadd.f32 %v1898, %v1967
        %v2000 = vadd.f32 %v1899, %v1968
        %v2001 = vadd.f32 %v1900, %v1969
        %v2002 = vadd.f32 %v1901, %v1970
        %v2003 = vadd.f32 %v1902, %v1971
        %v2004 = vadd.f32 %v1903, %v1972
        %v2005 = vadd.f32 %v1904, %v1973
        %v2006 = vld [vmem:[%s853] sm:$0xff]
        %v2007 = vld [vmem:[%s853 + $0x8] sm:$0xff]
        %v2008 = vld [vmem:[%s853 + $0x18] sm:$0xff]
        %v2009 = vld [vmem:[%s853 + $0x20] sm:$0xff]
        %v2010 = vld [vmem:[%s853 + $0x30] sm:$0xff]
        %v2011 = vld [vmem:[%s853 + $0x38] sm:$0xff]
        %v2012 = vld [vmem:[%s853 + $0x48] sm:$0xff]
        %v2013 = vld [vmem:[%s853 + $0x50] sm:$0xff]
        %v2014 = vld [vmem:[%s853 + $0x60] sm:$0xff]
        %v2015 = vld [vmem:[%s853 + $0x68] sm:$0xff]
        %v2016 = vld [vmem:[%s853 + $0x78] sm:$0xff]
        %v2017 = vld [vmem:[%s853 + $0x80] sm:$0xff]
        %v2018 = vld [vmem:[%s853 + $0x90] sm:$0xff]
        %v2019 = vld [vmem:[%s853 + $0x98] sm:$0xff]
        %v2020 = vld [vmem:[%s853 + $0xa8] sm:$0xff]
        %v2021 = vld [vmem:[%s853 + $0xb0] sm:$0xff]
        %v2022 = vld [vmem:[%s853 + $0xc0] sm:$0xff]
        %v2023 = vld [vmem:[%s853 + $0xc8] sm:$0xff]
        %v2024 = vld [vmem:[%s853 + $0xd8] sm:$0xff]
        %v2025 = vld [vmem:[%s853 + $0xe0] sm:$0xff]
        %v2026 = vld [vmem:[%s853 + $0xf0] sm:$0xff]
        %v2027 = vld [vmem:[%s853 + $0xf8] sm:$0xff]
        %v2028 = vld [vmem:[%s853 + $0x108] sm:$0xff]
        %v2029 = vld [vmem:[%s853 + $0x110] sm:$0xff]
        %v2030 = vld [vmem:[%s853 + $0x120] sm:$0xff]
        %v2031 = vld [vmem:[%s853 + $0x128] sm:$0xff]
        %v2032 = vld [vmem:[%s853 + $0x138] sm:$0xff]
        %v2033 = vld [vmem:[%s853 + $0x140] sm:$0xff]
        %v2034 = vld [vmem:[%s853 + $0x150] sm:$0xff]
        %v2035 = vld [vmem:[%s853 + $0x158] sm:$0xff]
        %v2036 = vld [vmem:[%s853 + $0x168] sm:$0xff]
        %v2037 = vld [vmem:[%s853 + $0x170] sm:$0xff]
        %v2038 = vld [vmem:[%s1 + $0xf] sm:$0x1]
        %v2039 = vlaneseq
        %v2040 = vshrl.u32 %v2039, 7
        %v2041 = vsub.s32 0, %v2040
        %v2042 = vrot.slane %v2038, %v2041
        %v2043 = vmul.f32 %v2006, %v2042
        %v2044 = vmul.f32 %v2007, %v2042
        %v2045 = vmul.f32 %v2008, %v2042
        %v2046 = vmul.f32 %v2009, %v2042
        %v2047 = vmul.f32 %v2010, %v2042
        %v2048 = vmul.f32 %v2011, %v2042
        %v2049 = vmul.f32 %v2012, %v2042
        %v2050 = vmul.f32 %v2013, %v2042
        %v2051 = vmul.f32 %v2014, %v2042
        %v2052 = vmul.f32 %v2015, %v2042
        %v2053 = vmul.f32 %v2016, %v2042
        %v2054 = vmul.f32 %v2017, %v2042
        %v2055 = vmul.f32 %v2018, %v2042
        %v2056 = vmul.f32 %v2019, %v2042
        %v2057 = vmul.f32 %v2020, %v2042
        %v2058 = vmul.f32 %v2021, %v2042
        %v2059 = vmul.f32 %v2022, %v2042
        %v2060 = vmul.f32 %v2023, %v2042
        %v2061 = vmul.f32 %v2024, %v2042
        %v2062 = vmul.f32 %v2025, %v2042
        %v2063 = vmul.f32 %v2026, %v2042
        %v2064 = vmul.f32 %v2027, %v2042
        %v2065 = vmul.f32 %v2028, %v2042
        %v2066 = vmul.f32 %v2029, %v2042
        %v2067 = vmul.f32 %v2030, %v2042
        %v2068 = vmul.f32 %v2031, %v2042
        %v2069 = vmul.f32 %v2032, %v2042
        %v2070 = vmul.f32 %v2033, %v2042
        %v2071 = vmul.f32 %v2034, %v2042
        %v2072 = vmul.f32 %v2035, %v2042
        %v2073 = vmul.f32 %v2036, %v2042
        %v2074 = vmul.f32 %v2037, %v2042
        %v2075 = vadd.f32 %v1974, %v2043
        %v2076 = vadd.f32 %v1975, %v2044
        %v2077 = vadd.f32 %v1976, %v2045
        %v2078 = vadd.f32 %v1977, %v2046
        %v2079 = vadd.f32 %v1978, %v2047
        %v2080 = vadd.f32 %v1979, %v2048
        %v2081 = vadd.f32 %v1980, %v2049
        %v2082 = vadd.f32 %v1981, %v2050
        %v2083 = vadd.f32 %v1982, %v2051
        %v2084 = vadd.f32 %v1983, %v2052
        %v2085 = vadd.f32 %v1984, %v2053
        %v2086 = vadd.f32 %v1985, %v2054
        %v2087 = vadd.f32 %v1986, %v2055
        %v2088 = vadd.f32 %v1987, %v2056
        %v2089 = vadd.f32 %v1988, %v2057
        %v2090 = vadd.f32 %v1989, %v2058
        %v2091 = vadd.f32 %v1990, %v2059
        %v2092 = vadd.f32 %v1991, %v2060
        %v2093 = vadd.f32 %v1992, %v2061
        %v2094 = vadd.f32 %v1993, %v2062
        %v2095 = vadd.f32 %v1994, %v2063
        %v2096 = vadd.f32 %v1995, %v2064
        %v2097 = vadd.f32 %v1996, %v2065
        %v2098 = vadd.f32 %v1997, %v2066
        %v2099 = vadd.f32 %v1998, %v2067
        %v2100 = vadd.f32 %v1999, %v2068
        %v2101 = vadd.f32 %v2000, %v2069
        %v2102 = vadd.f32 %v2001, %v2070
        %v2103 = vadd.f32 %v2002, %v2071
        %v2104 = vadd.f32 %v2003, %v2072
        %v2105 = vadd.f32 %v2004, %v2073
        %v2106 = vadd.f32 %v2005, %v2074
        %v2107 = vld [vmem:[%s853 + $0x1] sm:$0xff]
        %v2108 = vld [vmem:[%s853 + $0x9] sm:$0xff]
        %v2109 = vld [vmem:[%s853 + $0x19] sm:$0xff]
        %v2110 = vld [vmem:[%s853 + $0x21] sm:$0xff]
        %v2111 = vld [vmem:[%s853 + $0x31] sm:$0xff]
        %v2112 = vld [vmem:[%s853 + $0x39] sm:$0xff]
        %v2113 = vld [vmem:[%s853 + $0x49] sm:$0xff]
        %v2114 = vld [vmem:[%s853 + $0x51] sm:$0xff]
        %v2115 = vld [vmem:[%s853 + $0x61] sm:$0xff]
        %v2116 = vld [vmem:[%s853 + $0x69] sm:$0xff]
        %v2117 = vld [vmem:[%s853 + $0x79] sm:$0xff]
        %v2118 = vld [vmem:[%s853 + $0x81] sm:$0xff]
        %v2119 = vld [vmem:[%s853 + $0x91] sm:$0xff]
        %v2120 = vld [vmem:[%s853 + $0x99] sm:$0xff]
        %v2121 = vld [vmem:[%s853 + $0xa9] sm:$0xff]
        %v2122 = vld [vmem:[%s853 + $0xb1] sm:$0xff]
        %v2123 = vld [vmem:[%s853 + $0xc1] sm:$0xff]
        %v2124 = vld [vmem:[%s853 + $0xc9] sm:$0xff]
        %v2125 = vld [vmem:[%s853 + $0xd9] sm:$0xff]
        %v2126 = vld [vmem:[%s853 + $0xe1] sm:$0xff]
        %v2127 = vld [vmem:[%s853 + $0xf1] sm:$0xff]
        %v2128 = vld [vmem:[%s853 + $0xf9] sm:$0xff]
        %v2129 = vld [vmem:[%s853 + $0x109] sm:$0xff]
        %v2130 = vld [vmem:[%s853 + $0x111] sm:$0xff]
        %v2131 = vld [vmem:[%s853 + $0x121] sm:$0xff]
        %v2132 = vld [vmem:[%s853 + $0x129] sm:$0xff]
        %v2133 = vld [vmem:[%s853 + $0x139] sm:$0xff]
        %v2134 = vld [vmem:[%s853 + $0x141] sm:$0xff]
        %v2135 = vld [vmem:[%s853 + $0x151] sm:$0xff]
        %v2136 = vld [vmem:[%s853 + $0x159] sm:$0xff]
        %v2137 = vld [vmem:[%s853 + $0x169] sm:$0xff]
        %v2138 = vld [vmem:[%s853 + $0x171] sm:$0xff]
        %v2139 = vld [vmem:[%s1 + $0x10] sm:$0x1]
        %v2140 = vlaneseq
        %v2141 = vshrl.u32 %v2140, 7
        %v2142 = vsub.s32 0, %v2141
        %v2143 = vrot.slane %v2139, %v2142
        %v2144 = vmul.f32 %v2107, %v2143
        %v2145 = vmul.f32 %v2108, %v2143
        %v2146 = vmul.f32 %v2109, %v2143
        %v2147 = vmul.f32 %v2110, %v2143
        %v2148 = vmul.f32 %v2111, %v2143
        %v2149 = vmul.f32 %v2112, %v2143
        %v2150 = vmul.f32 %v2113, %v2143
        %v2151 = vmul.f32 %v2114, %v2143
        %v2152 = vmul.f32 %v2115, %v2143
        %v2153 = vmul.f32 %v2116, %v2143
        %v2154 = vmul.f32 %v2117, %v2143
        %v2155 = vmul.f32 %v2118, %v2143
        %v2156 = vmul.f32 %v2119, %v2143
        %v2157 = vmul.f32 %v2120, %v2143
        %v2158 = vmul.f32 %v2121, %v2143
        %v2159 = vmul.f32 %v2122, %v2143
        %v2160 = vmul.f32 %v2123, %v2143
        %v2161 = vmul.f32 %v2124, %v2143
        %v2162 = vmul.f32 %v2125, %v2143
        %v2163 = vmul.f32 %v2126, %v2143
        %v2164 = vmul.f32 %v2127, %v2143
        %v2165 = vmul.f32 %v2128, %v2143
        %v2166 = vmul.f32 %v2129, %v2143
        %v2167 = vmul.f32 %v2130, %v2143
        %v2168 = vmul.f32 %v2131, %v2143
        %v2169 = vmul.f32 %v2132, %v2143
        %v2170 = vmul.f32 %v2133, %v2143
        %v2171 = vmul.f32 %v2134, %v2143
        %v2172 = vmul.f32 %v2135, %v2143
        %v2173 = vmul.f32 %v2136, %v2143
        %v2174 = vmul.f32 %v2137, %v2143
        %v2175 = vmul.f32 %v2138, %v2143
        %v2176 = vadd.f32 %v2075, %v2144
        %v2177 = vadd.f32 %v2076, %v2145
        %v2178 = vadd.f32 %v2077, %v2146
        %v2179 = vadd.f32 %v2078, %v2147
        %v2180 = vadd.f32 %v2079, %v2148
        %v2181 = vadd.f32 %v2080, %v2149
        %v2182 = vadd.f32 %v2081, %v2150
        %v2183 = vadd.f32 %v2082, %v2151
        %v2184 = vadd.f32 %v2083, %v2152
        %v2185 = vadd.f32 %v2084, %v2153
        %v2186 = vadd.f32 %v2085, %v2154
        %v2187 = vadd.f32 %v2086, %v2155
        %v2188 = vadd.f32 %v2087, %v2156
        %v2189 = vadd.f32 %v2088, %v2157
        %v2190 = vadd.f32 %v2089, %v2158
        %v2191 = vadd.f32 %v2090, %v2159
        %v2192 = vadd.f32 %v2091, %v2160
        %v2193 = vadd.f32 %v2092, %v2161
        %v2194 = vadd.f32 %v2093, %v2162
        %v2195 = vadd.f32 %v2094, %v2163
        %v2196 = vadd.f32 %v2095, %v2164
        %v2197 = vadd.f32 %v2096, %v2165
        %v2198 = vadd.f32 %v2097, %v2166
        %v2199 = vadd.f32 %v2098, %v2167
        %v2200 = vadd.f32 %v2099, %v2168
        %v2201 = vadd.f32 %v2100, %v2169
        %v2202 = vadd.f32 %v2101, %v2170
        %v2203 = vadd.f32 %v2102, %v2171
        %v2204 = vadd.f32 %v2103, %v2172
        %v2205 = vadd.f32 %v2104, %v2173
        %v2206 = vadd.f32 %v2105, %v2174
        %v2207 = vadd.f32 %v2106, %v2175
        %v2208 = vld [vmem:[%s853 + $0x2] sm:$0xff]
        %v2209 = vld [vmem:[%s853 + $0xa] sm:$0xff]
        %v2210 = vld [vmem:[%s853 + $0x1a] sm:$0xff]
        %v2211 = vld [vmem:[%s853 + $0x22] sm:$0xff]
        %v2212 = vld [vmem:[%s853 + $0x32] sm:$0xff]
        %v2213 = vld [vmem:[%s853 + $0x3a] sm:$0xff]
        %v2214 = vld [vmem:[%s853 + $0x4a] sm:$0xff]
        %v2215 = vld [vmem:[%s853 + $0x52] sm:$0xff]
        %v2216 = vld [vmem:[%s853 + $0x62] sm:$0xff]
        %v2217 = vld [vmem:[%s853 + $0x6a] sm:$0xff]
        %v2218 = vld [vmem:[%s853 + $0x7a] sm:$0xff]
        %v2219 = vld [vmem:[%s853 + $0x82] sm:$0xff]
        %v2220 = vld [vmem:[%s853 + $0x92] sm:$0xff]
        %v2221 = vld [vmem:[%s853 + $0x9a] sm:$0xff]
        %v2222 = vld [vmem:[%s853 + $0xaa] sm:$0xff]
        %v2223 = vld [vmem:[%s853 + $0xb2] sm:$0xff]
        %v2224 = vld [vmem:[%s853 + $0xc2] sm:$0xff]
        %v2225 = vld [vmem:[%s853 + $0xca] sm:$0xff]
        %v2226 = vld [vmem:[%s853 + $0xda] sm:$0xff]
        %v2227 = vld [vmem:[%s853 + $0xe2] sm:$0xff]
        %v2228 = vld [vmem:[%s853 + $0xf2] sm:$0xff]
        %v2229 = vld [vmem:[%s853 + $0xfa] sm:$0xff]
        %v2230 = vld [vmem:[%s853 + $0x10a] sm:$0xff]
        %v2231 = vld [vmem:[%s853 + $0x112] sm:$0xff]
        %v2232 = vld [vmem:[%s853 + $0x122] sm:$0xff]
        %v2233 = vld [vmem:[%s853 + $0x12a] sm:$0xff]
        %v2234 = vld [vmem:[%s853 + $0x13a] sm:$0xff]
        %v2235 = vld [vmem:[%s853 + $0x142] sm:$0xff]
        %v2236 = vld [vmem:[%s853 + $0x152] sm:$0xff]
        %v2237 = vld [vmem:[%s853 + $0x15a] sm:$0xff]
        %v2238 = vld [vmem:[%s853 + $0x16a] sm:$0xff]
        %v2239 = vld [vmem:[%s853 + $0x172] sm:$0xff]
        %v2240 = vld [vmem:[%s1 + $0x11] sm:$0x1]
        %v2241 = vlaneseq
        %v2242 = vshrl.u32 %v2241, 7
        %v2243 = vsub.s32 0, %v2242
        %v2244 = vrot.slane %v2240, %v2243
        %v2245 = vmul.f32 %v2208, %v2244
        %v2246 = vmul.f32 %v2209, %v2244
        %v2247 = vmul.f32 %v2210, %v2244
        %v2248 = vmul.f32 %v2211, %v2244
        %v2249 = vmul.f32 %v2212, %v2244
        %v2250 = vmul.f32 %v2213, %v2244
        %v2251 = vmul.f32 %v2214, %v2244
        %v2252 = vmul.f32 %v2215, %v2244
        %v2253 = vmul.f32 %v2216, %v2244
        %v2254 = vmul.f32 %v2217, %v2244
        %v2255 = vmul.f32 %v2218, %v2244
        %v2256 = vmul.f32 %v2219, %v2244
        %v2257 = vmul.f32 %v2220, %v2244
        %v2258 = vmul.f32 %v2221, %v2244
        %v2259 = vmul.f32 %v2222, %v2244
        %v2260 = vmul.f32 %v2223, %v2244
        %v2261 = vmul.f32 %v2224, %v2244
        %v2262 = vmul.f32 %v2225, %v2244
        %v2263 = vmul.f32 %v2226, %v2244
        %v2264 = vmul.f32 %v2227, %v2244
        %v2265 = vmul.f32 %v2228, %v2244
        %v2266 = vmul.f32 %v2229, %v2244
        %v2267 = vmul.f32 %v2230, %v2244
        %v2268 = vmul.f32 %v2231, %v2244
        %v2269 = vmul.f32 %v2232, %v2244
        %v2270 = vmul.f32 %v2233, %v2244
        %v2271 = vmul.f32 %v2234, %v2244
        %v2272 = vmul.f32 %v2235, %v2244
        %v2273 = vmul.f32 %v2236, %v2244
        %v2274 = vmul.f32 %v2237, %v2244
        %v2275 = vmul.f32 %v2238, %v2244
        %v2276 = vmul.f32 %v2239, %v2244
        %v2277 = vadd.f32 %v2176, %v2245
        %v2278 = vadd.f32 %v2177, %v2246
        %v2279 = vadd.f32 %v2178, %v2247
        %v2280 = vadd.f32 %v2179, %v2248
        %v2281 = vadd.f32 %v2180, %v2249
        %v2282 = vadd.f32 %v2181, %v2250
        %v2283 = vadd.f32 %v2182, %v2251
        %v2284 = vadd.f32 %v2183, %v2252
        %v2285 = vadd.f32 %v2184, %v2253
        %v2286 = vadd.f32 %v2185, %v2254
        %v2287 = vadd.f32 %v2186, %v2255
        %v2288 = vadd.f32 %v2187, %v2256
        %v2289 = vadd.f32 %v2188, %v2257
        %v2290 = vadd.f32 %v2189, %v2258
        %v2291 = vadd.f32 %v2190, %v2259
        %v2292 = vadd.f32 %v2191, %v2260
        %v2293 = vadd.f32 %v2192, %v2261
        %v2294 = vadd.f32 %v2193, %v2262
        %v2295 = vadd.f32 %v2194, %v2263
        %v2296 = vadd.f32 %v2195, %v2264
        %v2297 = vadd.f32 %v2196, %v2265
        %v2298 = vadd.f32 %v2197, %v2266
        %v2299 = vadd.f32 %v2198, %v2267
        %v2300 = vadd.f32 %v2199, %v2268
        %v2301 = vadd.f32 %v2200, %v2269
        %v2302 = vadd.f32 %v2201, %v2270
        %v2303 = vadd.f32 %v2202, %v2271
        %v2304 = vadd.f32 %v2203, %v2272
        %v2305 = vadd.f32 %v2204, %v2273
        %v2306 = vadd.f32 %v2205, %v2274
        %v2307 = vadd.f32 %v2206, %v2275
        %v2308 = vadd.f32 %v2207, %v2276
        %v2309 = vld [vmem:[%s2 + $0x1] sm:$0x1]
        %v2310 = vlaneseq
        %v2311 = vshrl.u32 %v2310, 7
        %v2312 = vsub.s32 0, %v2311
        %v2313 = vrot.slane %v2309, %v2312
        %v2314 = vadd.f32 %v2277, %v2313
        %v2315 = vadd.f32 %v2278, %v2313
        %v2316 = vadd.f32 %v2279, %v2313
        %v2317 = vadd.f32 %v2280, %v2313
        %v2318 = vadd.f32 %v2281, %v2313
        %v2319 = vadd.f32 %v2282, %v2313
        %v2320 = vadd.f32 %v2283, %v2313
        %v2321 = vadd.f32 %v2284, %v2313
        %v2322 = vadd.f32 %v2285, %v2313
        %v2323 = vadd.f32 %v2286, %v2313
        %v2324 = vadd.f32 %v2287, %v2313
        %v2325 = vadd.f32 %v2288, %v2313
        %v2326 = vadd.f32 %v2289, %v2313
        %v2327 = vadd.f32 %v2290, %v2313
        %v2328 = vadd.f32 %v2291, %v2313
        %v2329 = vadd.f32 %v2292, %v2313
        %v2330 = vadd.f32 %v2293, %v2313
        %v2331 = vadd.f32 %v2294, %v2313
        %v2332 = vadd.f32 %v2295, %v2313
        %v2333 = vadd.f32 %v2296, %v2313
        %v2334 = vadd.f32 %v2297, %v2313
        %v2335 = vadd.f32 %v2298, %v2313
        %v2336 = vadd.f32 %v2299, %v2313
        %v2337 = vadd.f32 %v2300, %v2313
        %v2338 = vadd.f32 %v2301, %v2313
        %v2339 = vadd.f32 %v2302, %v2313
        %v2340 = vadd.f32 %v2303, %v2313
        %v2341 = vadd.f32 %v2304, %v2313
        %v2342 = vadd.f32 %v2305, %v2313
        %v2343 = vadd.f32 %v2306, %v2313
        %v2344 = vadd.f32 %v2307, %v2313
        %v2345 = vadd.f32 %v2308, %v2313
        %2378 = vrot.lane.b32.xlu0 %v2314, 4
        %v2379 = vpop.permute.xlu0 %2378
        %2380 = vrot.lane.b32.xlu0 %v2315, 4
        %v2381 = vpop.permute.xlu0 %2380
        %2382 = vrot.lane.b32.xlu0 %v2316, 4
        %v2383 = vpop.permute.xlu0 %2382
        %2384 = vrot.lane.b32.xlu0 %v2317, 4
        %v2385 = vpop.permute.xlu0 %2384
        %2386 = vrot.lane.b32.xlu0 %v2318, 4
        %v2387 = vpop.permute.xlu0 %2386
        %2388 = vrot.lane.b32.xlu0 %v2319, 4
        %v2389 = vpop.permute.xlu0 %2388
        %2390 = vrot.lane.b32.xlu0 %v2320, 4
        %v2391 = vpop.permute.xlu0 %2390
        %2392 = vrot.lane.b32.xlu0 %v2321, 4
        %v2393 = vpop.permute.xlu0 %2392
        %2394 = vrot.lane.b32.xlu0 %v2322, 4
        %v2395 = vpop.permute.xlu0 %2394
        %2396 = vrot.lane.b32.xlu0 %v2323, 4
        %v2397 = vpop.permute.xlu0 %2396
        %2398 = vrot.lane.b32.xlu0 %v2324, 4
        %v2399 = vpop.permute.xlu0 %2398
        %2400 = vrot.lane.b32.xlu0 %v2325, 4
        %v2401 = vpop.permute.xlu0 %2400
        %2402 = vrot.lane.b32.xlu0 %v2326, 4
        %v2403 = vpop.permute.xlu0 %2402
        %2404 = vrot.lane.b32.xlu0 %v2327, 4
        %v2405 = vpop.permute.xlu0 %2404
        %2406 = vrot.lane.b32.xlu0 %v2328, 4
        %v2407 = vpop.permute.xlu0 %2406
        %2408 = vrot.lane.b32.xlu0 %v2329, 4
        %v2409 = vpop.permute.xlu0 %2408
        %2410 = vrot.lane.b32.xlu0 %v2330, 4
        %v2411 = vpop.permute.xlu0 %2410
        %2412 = vrot.lane.b32.xlu0 %v2331, 4
        %v2413 = vpop.permute.xlu0 %2412
        %2414 = vrot.lane.b32.xlu0 %v2332, 4
        %v2415 = vpop.permute.xlu0 %2414
        %2416 = vrot.lane.b32.xlu0 %v2333, 4
        %v2417 = vpop.permute.xlu0 %2416
        %2418 = vrot.lane.b32.xlu0 %v2334, 4
        %v2419 = vpop.permute.xlu0 %2418
        %2420 = vrot.lane.b32.xlu0 %v2335, 4
        %v2421 = vpop.permute.xlu0 %2420
        %2422 = vrot.lane.b32.xlu0 %v2336, 4
        %v2423 = vpop.permute.xlu0 %2422
        %2424 = vrot.lane.b32.xlu0 %v2337, 4
        %v2425 = vpop.permute.xlu0 %2424
        %2426 = vrot.lane.b32.xlu0 %v2338, 4
        %v2427 = vpop.permute.xlu0 %2426
        %2428 = vrot.lane.b32.xlu0 %v2339, 4
        %v2429 = vpop.permute.xlu0 %2428
        %2430 = vrot.lane.b32.xlu0 %v2340, 4
        %v2431 = vpop.permute.xlu0 %2430
        %2432 = vrot.lane.b32.xlu0 %v2341, 4
        %v2433 = vpop.permute.xlu0 %2432
        %2434 = vrot.lane.b32.xlu0 %v2342, 4
        %v2435 = vpop.permute.xlu0 %2434
        %2436 = vrot.lane.b32.xlu0 %v2343, 4
        %v2437 = vpop.permute.xlu0 %2436
        %2438 = vrot.lane.b32.xlu0 %v2344, 4
        %v2439 = vpop.permute.xlu0 %2438
        %2440 = vrot.lane.b32.xlu0 %v2345, 4
        %v2441 = vpop.permute.xlu0 %2440
        %vm2474 = vcmask 64544
        %2475 = vst.msk [vmem:[%s245] sm:$0xff] %vm2474, %v2379
        %2476 = vst.msk [vmem:[%s245 + $0x8] sm:$0xff] %vm2474, %v2381
        %2477 = vst.msk [vmem:[%s245 + $0x10] sm:$0xff] %vm2474, %v2383
        %2478 = vst.msk [vmem:[%s245 + $0x18] sm:$0xff] %vm2474, %v2385
        %2479 = vst.msk [vmem:[%s245 + $0x20] sm:$0xff] %vm2474, %v2387
        %2480 = vst.msk [vmem:[%s245 + $0x28] sm:$0xff] %vm2474, %v2389
        %2481 = vst.msk [vmem:[%s245 + $0x30] sm:$0xff] %vm2474, %v2391
        %2482 = vst.msk [vmem:[%s245 + $0x38] sm:$0xff] %vm2474, %v2393
        %2483 = vst.msk [vmem:[%s245 + $0x40] sm:$0xff] %vm2474, %v2395
        %2484 = vst.msk [vmem:[%s245 + $0x48] sm:$0xff] %vm2474, %v2397
        %2485 = vst.msk [vmem:[%s245 + $0x50] sm:$0xff] %vm2474, %v2399
        %2486 = vst.msk [vmem:[%s245 + $0x58] sm:$0xff] %vm2474, %v2401
        %2487 = vst.msk [vmem:[%s245 + $0x60] sm:$0xff] %vm2474, %v2403
        %2488 = vst.msk [vmem:[%s245 + $0x68] sm:$0xff] %vm2474, %v2405
        %2489 = vst.msk [vmem:[%s245 + $0x70] sm:$0xff] %vm2474, %v2407
        %2490 = vst.msk [vmem:[%s245 + $0x78] sm:$0xff] %vm2474, %v2409
        %2491 = vst.msk [vmem:[%s245 + $0x80] sm:$0xff] %vm2474, %v2411
        %2492 = vst.msk [vmem:[%s245 + $0x88] sm:$0xff] %vm2474, %v2413
        %2493 = vst.msk [vmem:[%s245 + $0x90] sm:$0xff] %vm2474, %v2415
        %2494 = vst.msk [vmem:[%s245 + $0x98] sm:$0xff] %vm2474, %v2417
        %2495 = vst.msk [vmem:[%s245 + $0xa0] sm:$0xff] %vm2474, %v2419
        %2496 = vst.msk [vmem:[%s245 + $0xa8] sm:$0xff] %vm2474, %v2421
        %2497 = vst.msk [vmem:[%s245 + $0xb0] sm:$0xff] %vm2474, %v2423
        %2498 = vst.msk [vmem:[%s245 + $0xb8] sm:$0xff] %vm2474, %v2425
        %2499 = vst.msk [vmem:[%s245 + $0xc0] sm:$0xff] %vm2474, %v2427
        %2500 = vst.msk [vmem:[%s245 + $0xc8] sm:$0xff] %vm2474, %v2429
        %2501 = vst.msk [vmem:[%s245 + $0xd0] sm:$0xff] %vm2474, %v2431
        %2502 = vst.msk [vmem:[%s245 + $0xd8] sm:$0xff] %vm2474, %v2433
        %2503 = vst.msk [vmem:[%s245 + $0xe0] sm:$0xff] %vm2474, %v2435
        %2504 = vst.msk [vmem:[%s245 + $0xe8] sm:$0xff] %vm2474, %v2437
        %2505 = vst.msk [vmem:[%s245 + $0xf0] sm:$0xff] %vm2474, %v2439
        %2506 = vst.msk [vmem:[%s245 + $0xf8] sm:$0xff] %vm2474, %v2441
        %v2507 = vsel %vm1194, %v2314, 0.0
        %v2508 = vsel %vm1194, %v2315, 0.0
        %v2509 = vadd.f32 %v2507, %v2508
        %v2510 = vsel %vm1194, %v2316, 0.0
        %v2511 = vadd.f32 %v2509, %v2510
        %v2512 = vsel %vm1194, %v2317, 0.0
        %v2513 = vadd.f32 %v2511, %v2512
        %v2514 = vsel %vm1194, %v2318, 0.0
        %v2515 = vadd.f32 %v2513, %v2514
        %v2516 = vsel %vm1194, %v2319, 0.0
        %v2517 = vadd.f32 %v2515, %v2516
        %v2518 = vsel %vm1194, %v2320, 0.0
        %v2519 = vadd.f32 %v2517, %v2518
        %v2520 = vsel %vm1194, %v2321, 0.0
        %v2521 = vadd.f32 %v2519, %v2520
        %v2522 = vsel %vm1194, %v2322, 0.0
        %v2523 = vadd.f32 %v2521, %v2522
        %v2524 = vsel %vm1194, %v2323, 0.0
        %v2525 = vadd.f32 %v2523, %v2524
        %v2526 = vsel %vm1194, %v2324, 0.0
        %v2527 = vadd.f32 %v2525, %v2526
        %v2528 = vsel %vm1194, %v2325, 0.0
        %v2529 = vadd.f32 %v2527, %v2528
        %v2530 = vsel %vm1194, %v2326, 0.0
        %v2531 = vadd.f32 %v2529, %v2530
        %v2532 = vsel %vm1194, %v2327, 0.0
        %v2533 = vadd.f32 %v2531, %v2532
        %v2534 = vsel %vm1194, %v2328, 0.0
        %v2535 = vadd.f32 %v2533, %v2534
        %v2536 = vsel %vm1194, %v2329, 0.0
        %v2537 = vadd.f32 %v2535, %v2536
        %v2538 = vsel %vm1194, %v2330, 0.0
        %v2539 = vadd.f32 %v2537, %v2538
        %v2540 = vsel %vm1194, %v2331, 0.0
        %v2541 = vadd.f32 %v2539, %v2540
        %v2542 = vsel %vm1194, %v2332, 0.0
        %v2543 = vadd.f32 %v2541, %v2542
        %v2544 = vsel %vm1194, %v2333, 0.0
        %v2545 = vadd.f32 %v2543, %v2544
        %v2546 = vsel %vm1194, %v2334, 0.0
        %v2547 = vadd.f32 %v2545, %v2546
        %v2548 = vsel %vm1194, %v2335, 0.0
        %v2549 = vadd.f32 %v2547, %v2548
        %v2550 = vsel %vm1194, %v2336, 0.0
        %v2551 = vadd.f32 %v2549, %v2550
        %v2552 = vsel %vm1194, %v2337, 0.0
        %v2553 = vadd.f32 %v2551, %v2552
        %v2554 = vsel %vm1194, %v2338, 0.0
        %v2555 = vadd.f32 %v2553, %v2554
        %v2556 = vsel %vm1194, %v2339, 0.0
        %v2557 = vadd.f32 %v2555, %v2556
        %v2558 = vsel %vm1194, %v2340, 0.0
        %v2559 = vadd.f32 %v2557, %v2558
        %v2560 = vsel %vm1194, %v2341, 0.0
        %v2561 = vadd.f32 %v2559, %v2560
        %v2562 = vsel %vm1194, %v2342, 0.0
        %v2563 = vadd.f32 %v2561, %v2562
        %v2564 = vsel %vm1194, %v2343, 0.0
        %v2565 = vadd.f32 %v2563, %v2564
        %v2566 = vsel %vm1194, %v2344, 0.0
        %v2567 = vadd.f32 %v2565, %v2566
        %v2568 = vsel %vm1194, %v2345, 0.0
        %v2569 = vadd.f32 %v2567, %v2568
        %v2570 = vrot.slane %v2569, 4
        %v2571 = vadd.f32 %v2569, %v2570
        %v2572 = vrot.slane %v2571, 2
        %v2573 = vadd.f32 %v2571, %v2572
        %v2574 = vrot.slane %v2573, 1
        %v2575 = vadd.f32 %v2573, %v2574
        %2576 = vst.msk [vmem:[%s228 + $0x1] sm:$0x1] %vm1296, %v2575
        %v2577 = vmul.f32 %v2314, %v2314
        %v2578 = vmul.f32 %v2315, %v2315
        %v2579 = vmul.f32 %v2316, %v2316
        %v2580 = vmul.f32 %v2317, %v2317
        %v2581 = vmul.f32 %v2318, %v2318
        %v2582 = vmul.f32 %v2319, %v2319
        %v2583 = vmul.f32 %v2320, %v2320
        %v2584 = vmul.f32 %v2321, %v2321
        %v2585 = vmul.f32 %v2322, %v2322
        %v2586 = vmul.f32 %v2323, %v2323
        %v2587 = vmul.f32 %v2324, %v2324
        %v2588 = vmul.f32 %v2325, %v2325
        %v2589 = vmul.f32 %v2326, %v2326
        %v2590 = vmul.f32 %v2327, %v2327
        %v2591 = vmul.f32 %v2328, %v2328
        %v2592 = vmul.f32 %v2329, %v2329
        %v2593 = vmul.f32 %v2330, %v2330
        %v2594 = vmul.f32 %v2331, %v2331
        %v2595 = vmul.f32 %v2332, %v2332
        %v2596 = vmul.f32 %v2333, %v2333
        %v2597 = vmul.f32 %v2334, %v2334
        %v2598 = vmul.f32 %v2335, %v2335
        %v2599 = vmul.f32 %v2336, %v2336
        %v2600 = vmul.f32 %v2337, %v2337
        %v2601 = vmul.f32 %v2338, %v2338
        %v2602 = vmul.f32 %v2339, %v2339
        %v2603 = vmul.f32 %v2340, %v2340
        %v2604 = vmul.f32 %v2341, %v2341
        %v2605 = vmul.f32 %v2342, %v2342
        %v2606 = vmul.f32 %v2343, %v2343
        %v2607 = vmul.f32 %v2344, %v2344
        %v2608 = vmul.f32 %v2345, %v2345
        %v2609 = vsel %vm1194, %v2577, 0.0
        %v2610 = vsel %vm1194, %v2578, 0.0
        %v2611 = vadd.f32 %v2609, %v2610
        %v2612 = vsel %vm1194, %v2579, 0.0
        %v2613 = vadd.f32 %v2611, %v2612
        %v2614 = vsel %vm1194, %v2580, 0.0
        %v2615 = vadd.f32 %v2613, %v2614
        %v2616 = vsel %vm1194, %v2581, 0.0
        %v2617 = vadd.f32 %v2615, %v2616
        %v2618 = vsel %vm1194, %v2582, 0.0
        %v2619 = vadd.f32 %v2617, %v2618
        %v2620 = vsel %vm1194, %v2583, 0.0
        %v2621 = vadd.f32 %v2619, %v2620
        %v2622 = vsel %vm1194, %v2584, 0.0
        %v2623 = vadd.f32 %v2621, %v2622
        %v2624 = vsel %vm1194, %v2585, 0.0
        %v2625 = vadd.f32 %v2623, %v2624
        %v2626 = vsel %vm1194, %v2586, 0.0
        %v2627 = vadd.f32 %v2625, %v2626
        %v2628 = vsel %vm1194, %v2587, 0.0
        %v2629 = vadd.f32 %v2627, %v2628
        %v2630 = vsel %vm1194, %v2588, 0.0
        %v2631 = vadd.f32 %v2629, %v2630
        %v2632 = vsel %vm1194, %v2589, 0.0
        %v2633 = vadd.f32 %v2631, %v2632
        %v2634 = vsel %vm1194, %v2590, 0.0
        %v2635 = vadd.f32 %v2633, %v2634
        %v2636 = vsel %vm1194, %v2591, 0.0
        %v2637 = vadd.f32 %v2635, %v2636
        %v2638 = vsel %vm1194, %v2592, 0.0
        %v2639 = vadd.f32 %v2637, %v2638
        %v2640 = vsel %vm1194, %v2593, 0.0
        %v2641 = vadd.f32 %v2639, %v2640
        %v2642 = vsel %vm1194, %v2594, 0.0
        %v2643 = vadd.f32 %v2641, %v2642
        %v2644 = vsel %vm1194, %v2595, 0.0
        %v2645 = vadd.f32 %v2643, %v2644
        %v2646 = vsel %vm1194, %v2596, 0.0
        %v2647 = vadd.f32 %v2645, %v2646
        %v2648 = vsel %vm1194, %v2597, 0.0
        %v2649 = vadd.f32 %v2647, %v2648
        %v2650 = vsel %vm1194, %v2598, 0.0
        %v2651 = vadd.f32 %v2649, %v2650
        %v2652 = vsel %vm1194, %v2599, 0.0
        %v2653 = vadd.f32 %v2651, %v2652
        %v2654 = vsel %vm1194, %v2600, 0.0
        %v2655 = vadd.f32 %v2653, %v2654
        %v2656 = vsel %vm1194, %v2601, 0.0
        %v2657 = vadd.f32 %v2655, %v2656
        %v2658 = vsel %vm1194, %v2602, 0.0
        %v2659 = vadd.f32 %v2657, %v2658
        %v2660 = vsel %vm1194, %v2603, 0.0
        %v2661 = vadd.f32 %v2659, %v2660
        %v2662 = vsel %vm1194, %v2604, 0.0
        %v2663 = vadd.f32 %v2661, %v2662
        %v2664 = vsel %vm1194, %v2605, 0.0
        %v2665 = vadd.f32 %v2663, %v2664
        %v2666 = vsel %vm1194, %v2606, 0.0
        %v2667 = vadd.f32 %v2665, %v2666
        %v2668 = vsel %vm1194, %v2607, 0.0
        %v2669 = vadd.f32 %v2667, %v2668
        %v2670 = vsel %vm1194, %v2608, 0.0
        %v2671 = vadd.f32 %v2669, %v2670
        %v2672 = vrot.slane %v2671, 4
        %v2673 = vadd.f32 %v2671, %v2672
        %v2674 = vrot.slane %v2673, 2
        %v2675 = vadd.f32 %v2673, %v2674
        %v2676 = vrot.slane %v2675, 1
        %v2677 = vadd.f32 %v2675, %v2676
        %2678 = vst.msk [vmem:[%s235 + $0x1] sm:$0x1] %vm1296, %v2677
        %p2679 = scmp.lt.s32.totalorder %s23, 1
        %s2680 = scalar_select %p2679, %s23, 1
        %s2681 = smul.addr %s2680, 32
        %s2682 = smul.addr %s2681, 8
        %s2683 = scalar_lea.vmem %s3, %s2682
        %s2684 = sand.u32 %s125, 1
        %s2685 = scalar_lea.sflag [#allocation3], %s2684
        %s2686 = sand.u32 %s125, 1
        %s2687 = smul.addr %s2686, 2
        %s2688 = scalar_lea.vmem [#allocation2], %s2687
        %s2689 = sand.u32 %s151, 1
        %s2690 = scalar_lea.sflag [#allocation5], %s2689
        %s2691 = sand.u32 %s151, 1
        %s2692 = smul.addr %s2691, 2
        %s2693 = scalar_lea.vmem [#allocation4], %s2692
        // Predicated region
        $region33: #{tpu_custom_call.1} parent=31 // pred_check
          %p2694 = pneg %p109
        $region34: #{tpu_custom_call.1} parent=31 // pred_check_branch
          %2696 = sbr.rel (%p2694) target = $region36
        $region35: #{tpu_custom_call.1} parent=31 // pred_region
          _
        $region36: #{tpu_custom_call.1} parent=31 // pred_fallthru
          _
        // Predicated region
        $region37: #{tpu_custom_call.1} parent=31 // pred_check
          %p2697 = pneg %p135
        $region38: #{tpu_custom_call.1} parent=31 // pred_check_branch
          %2699 = sbr.rel (%p2697) target = $region40
        $region39: #{tpu_custom_call.1} parent=31 // pred_region
          %s2701 = ssub.s32 32, 32
          %2702 = vsyncadd %s2685, %s2701
          %s2703 = smul.addr %s23, 32
          %s2704 = scalar_lea.hbm %s4, %s2703
          %s2706 = sshll.u32 %s2688, 4
          %s2707 = int_to_ptr.vmem [resolvable:$true] %s2706
          %2709 = dma.vmem_to_hbm [thread:$0]  %s2707, 32, %s2704, %s2685
        $region40: #{tpu_custom_call.1} parent=31 // pred_fallthru
          _
        // Predicated region
        $region41: #{tpu_custom_call.1} parent=31 // pred_check
          %p2710 = pneg %p161
        $region42: #{tpu_custom_call.1} parent=31 // pred_check_branch
          %2712 = sbr.rel (%p2710) target = $region44
        $region43: #{tpu_custom_call.1} parent=31 // pred_region
          %s2714 = ssub.s32 32, 32
          %2715 = vsyncadd %s2690, %s2714
          %s2716 = smul.addr %s23, 32
          %s2717 = scalar_lea.hbm %s5, %s2716
          %s2719 = sshll.u32 %s2693, 4
          %s2720 = int_to_ptr.vmem [resolvable:$true] %s2719
          %2722 = dma.vmem_to_hbm [thread:$0]  %s2720, 32, %s2717, %s2690
        $region44: #{tpu_custom_call.1} parent=31 // pred_fallthru
          _
      $region32: #{tpu_custom_call.1} parent=5 // pred_fallthru
        _
      %p2723 = scmp.le.s32.totalorder 2, %s18
      // Predicated region
      $region45: #{tpu_custom_call.1} parent=5 // pred_check
        %p2724 = pneg %p2723
      $region46: #{tpu_custom_call.1} parent=5 // pred_check_branch
        %2726 = sbr.rel (%p2724) target = $region48
      $region47: #{tpu_custom_call.1} parent=5 // pred_region
        %s2727 = ssub.s32 %s18, 2
        // Predicated region
        $region49: #{tpu_custom_call.1} parent=47 // pred_check
          %p2728 = pneg %p115
        $region50: #{tpu_custom_call.1} parent=47 // pred_check_branch
          %2730 = sbr.rel (%p2728) target = $region52
        $region51: #{tpu_custom_call.1} parent=47 // pred_region
          %p2731 = scmp.lt.s32.totalorder %s24, 1
          %s2732 = scalar_select %p2731, %s24, 1
          %s2733 = smul.addr %s2732, 32
          %s2734 = smul.addr %s2733, 8
          %s2735 = scalar_lea.vmem %s3, %s2734
        $region52: #{tpu_custom_call.1} parent=47 // pred_fallthru
          _
        // Predicated region
        $region53: #{tpu_custom_call.1} parent=47 // pred_check
          %p2736 = pneg %p141
        $region54: #{tpu_custom_call.1} parent=47 // pred_check_branch
          %2738 = sbr.rel (%p2736) target = $region56
        $region55: #{tpu_custom_call.1} parent=47 // pred_region
          %s2739 = sand.u32 %s126, 1
          %s2740 = scalar_lea.sflag [#allocation3], %s2739
          %s2741 = sand.u32 %s126, 1
          %s2742 = smul.addr %s2741, 2
          %s2743 = scalar_lea.vmem [#allocation2], %s2742
          %2744 = dma.done %s2740, 32
        $region56: #{tpu_custom_call.1} parent=47 // pred_fallthru
          _
        // Predicated region
        $region57: #{tpu_custom_call.1} parent=47 // pred_check
          %p2745 = pneg %p167
        $region58: #{tpu_custom_call.1} parent=47 // pred_check_branch
          %2747 = sbr.rel (%p2745) target = $region60
        $region59: #{tpu_custom_call.1} parent=47 // pred_region
          %s2748 = sand.u32 %s152, 1
          %s2749 = scalar_lea.sflag [#allocation5], %s2748
          %s2750 = sand.u32 %s152, 1
          %s2751 = smul.addr %s2750, 2
          %s2752 = scalar_lea.vmem [#allocation4], %s2751
          %2753 = dma.done %s2749, 32
        $region60: #{tpu_custom_call.1} parent=47 // pred_fallthru
          _
      $region48: #{tpu_custom_call.1} parent=5 // pred_fallthru
        _
    $region6: #{tpu_custom_call.1} parent=1 // loop_footer
      %s22 = sadd.s32 1, %s18
    $region7: #{tpu_custom_call.1} parent=1 // loop_footer_branch
      %17 = sbr.rel target = $region3
    $region8: #{tpu_custom_call.1} parent=1 // loop_exit
      _
    %2754 = vsyncpa [#allocation3], 1
    %s2755 = scalar_lea.sflag [#allocation3], 1
    %2756 = vsyncpa %s2755, 1
    %2757 = vsyncpa [#allocation5], 1
    %s2758 = scalar_lea.sflag [#allocation5], 1
    %2759 = vsyncpa %s2758, 1

</llo_original>
